<compile_context>
chip_gen: v7x
topology: tpu7x:2x2x1
jax: 0.10.0
libtpu: 0.0.40
codegen_flags: <defaults>
</compile_context>

<pallas_src>
import random

import jax
import jax.numpy as jnp
from jax.experimental import pallas as pl
from jax.experimental.pallas import tpu as pltpu

# ---- problem sizes (small, consistent with the module's forward) ------------------
SRC_LEN, TRG_LEN, BATCH = 8, 8, 2
SRC_VOCAB, TRG_VOCAB = 16, 16
EMB, ENC_H, DEC_H = 32, 32, 32

B_PAD = 8          # pad batch to full sublane occupancy
VOCAB_PAD = 128    # pad vocab to a full lane tile (lane-dense logits / one-hots)

_VMEM = pl.BlockSpec(memory_space=pltpu.MemorySpace.VMEM)


# ===================================================================================
# Encoder kernel: in-kernel embedding + bidirectional fused-gate GRU + hoisted
# attention projection + initial decoder state.
# ===================================================================================
def encoder_kernel(src_ref, emb_ref,
                   wih_f_ref, whh_f_ref, bih_f_ref, bhh_f_ref,
                   wih_b_ref, whh_b_ref, bih_b_ref, bhh_b_ref,
                   wfc_f_ref, wfc_b_ref, bfc_ref,
                   wenc_f_ref, wenc_b_ref,
                   enc_f_ref, enc_b_ref, encproj_ref, s0_ref):
    L, B = src_ref.shape
    Vp = emb_ref.shape[0]
    H = ENC_H

    # ---- embedding of all source tokens via one-hot matmul (no host gather) -------
    tok = src_ref[...]                                              # (L, B) int32
    lane = jax.lax.broadcasted_iota(jnp.int32, (L, B, Vp), 2)
    onehot = (tok[:, :, None] == lane).astype(jnp.float32)          # (L, B, Vp)
    emb_flat = jnp.dot(onehot.reshape(L * B, Vp), emb_ref[...],
                       preferred_element_type=jnp.float32)          # (L*B, E)

    # ---- hoisted GRU input projections, fused (r,z,n) gates ------------------------
    gi_f = jnp.dot(emb_flat, wih_f_ref[...],
                   preferred_element_type=jnp.float32) + bih_f_ref[...]   # (L*B, 3H)
    gi_b = jnp.dot(emb_flat, wih_b_ref[...],
                   preferred_element_type=jnp.float32) + bih_b_ref[...]   # (L*B, 3H)

    # hoisted bias broadcasts (JAX does not CSE broadcast_in_dim)
    bhh_f = jnp.broadcast_to(bhh_f_ref[...], (B, 3 * H))
    bhh_b = jnp.broadcast_to(bhh_b_ref[...], (B, 3 * H))

    def gru_step(gi_t, h, whh_ref, bhh):
        gh = jnp.dot(h, whh_ref[...], preferred_element_type=jnp.float32) + bhh
        r = jax.nn.sigmoid(gi_t[:, :H] + gh[:, :H])
        z = jax.nn.sigmoid(gi_t[:, H:2 * H] + gh[:, H:2 * H])
        n = jnp.tanh(gi_t[:, 2 * H:] + r * gh[:, 2 * H:])
        return (1.0 - z) * n + z * h

    # forward direction
    h_f = jnp.zeros((B, H), jnp.float32)
    for t in range(L):                                   # static unroll, L = 8
        h_f = gru_step(gi_f[t * B:(t + 1) * B], h_f, whh_f_ref, bhh_f)
        enc_f_ref[t] = h_f

    # backward direction
    h_b = jnp.zeros((B, H), jnp.float32)
    for t in range(L - 1, -1, -1):
        h_b = gru_step(gi_b[t * B:(t + 1) * B], h_b, whh_b_ref, bhh_b)
        enc_b_ref[t] = h_b

    # initial decoder state s0 = tanh(fc([h_fwd_final, h_bwd_final])) (split matmuls)
    s0_ref[...] = jnp.tanh(
        jnp.dot(h_f, wfc_f_ref[...], preferred_element_type=jnp.float32)
        + jnp.dot(h_b, wfc_b_ref[...], preferred_element_type=jnp.float32)
        + bfc_ref[...])

    # hoisted encoder-side attention projection: enc_proj = enc_out @ W_enc
    ef = enc_f_ref[...].reshape(L * B, H)
    eb = enc_b_ref[...].reshape(L * B, H)
    proj = (jnp.dot(ef, wenc_f_ref[...], preferred_element_type=jnp.float32)
            + jnp.dot(eb, wenc_b_ref[...], preferred_element_type=jnp.float32))
    encproj_ref[...] = proj.reshape(L, B, DEC_H)


# ===================================================================================
# Fused decoder kernel: grid over decoding steps, state carried in VMEM scratch.
# ===================================================================================
def decoder_kernel(flags_ref,                     # scalar-prefetch: (TRG_LEN,) int32 SMEM
                   trg_oh_ref, s0_ref, enc_f_ref, enc_b_ref, encproj_ref, demb_ref,
                   attn_ws_ref, attn_v_ref,
                   wih_e_ref, wih_cf_ref, wih_cb_ref, whh_ref, bih_ref, bhh_ref,
                   wout_h_ref, wout_cf_ref, wout_cb_ref, wout_e_ref, bout_ref,
                   out_ref, s_scr, oh_scr):
    i = pl.program_id(0)
    D = DEC_H

    @pl.when(i == 0)
    def _init():
        s_scr[...] = s0_ref[...]
        oh_scr[...] = jnp.zeros_like(oh_scr)

    # ---- decoder input: teacher-forced trg token vs previous greedy token ----------
    tf = flags_ref[i]
    onehot_in = jnp.where(tf != 0, trg_oh_ref[0], oh_scr[...])          # (B, Vp)
    emb = jnp.dot(onehot_in, demb_ref[...],
                  preferred_element_type=jnp.float32)                   # (B, E)

    s = s_scr[...]                                                      # (B, D)
    enc_f = enc_f_ref[...]                                              # (L, B, H)
    enc_b = enc_b_ref[...]                                              # (L, B, H)

    # ---- additive attention (encoder-side projection precomputed) ------------------
    s_proj = jnp.dot(s, attn_ws_ref[...],
                     preferred_element_type=jnp.float32)                # (B, D)
    energy = jnp.tanh(s_proj[None, :, :] + encproj_ref[...])            # (L, B, D)
    scores = jnp.sum(energy * attn_v_ref[...], axis=-1)                 # (L, B)
    scores = scores - jnp.max(scores, axis=0, keepdims=True)
    e = jnp.exp(scores)
    a = e * pl.reciprocal(jnp.sum(e, axis=0, keepdims=True), approx=True)   # softmax
    cf = jnp.sum(a[:, :, None] * enc_f, axis=0)                         # (B, H)
    cb = jnp.sum(a[:, :, None] * enc_b, axis=0)                         # (B, H)

    # ---- GRU cell, fused gates, split matmuls instead of concat([emb, c]) ----------
    gi = (jnp.dot(emb, wih_e_ref[...], preferred_element_type=jnp.float32)
          + jnp.dot(cf, wih_cf_ref[...], preferred_element_type=jnp.float32)
          + jnp.dot(cb, wih_cb_ref[...], preferred_element_type=jnp.float32)
          + bih_ref[...])                                               # (B, 3D)
    gh = jnp.dot(s, whh_ref[...], preferred_element_type=jnp.float32) + bhh_ref[...]
    r = jax.nn.sigmoid(gi[:, :D] + gh[:, :D])
    z = jax.nn.sigmoid(gi[:, D:2 * D] + gh[:, D:2 * D])
    n = jnp.tanh(gi[:, 2 * D:] + r * gh[:, 2 * D:])
    h_new = (1.0 - z) * n + z * s

    # ---- output projection on [h_new, c, emb] (split matmuls, lane-dense Vp=128) ---
    logits = (jnp.dot(h_new, wout_h_ref[...], preferred_element_type=jnp.float32)
              + jnp.dot(cf, wout_cf_ref[...], preferred_element_type=jnp.float32)
              + jnp.dot(cb, wout_cb_ref[...], preferred_element_type=jnp.float32)
              + jnp.dot(emb, wout_e_ref[...], preferred_element_type=jnp.float32)
              + bout_ref[...])                                          # (B, Vp)
    out_ref[0] = logits

    # ---- greedy argmax over the real vocab columns -> one-hot for next step --------
    lane = jax.lax.broadcasted_iota(jnp.int32, logits.shape, 1)
    masked = jnp.where(lane < TRG_VOCAB, logits, -1e30)
    m = jnp.max(masked, axis=-1, keepdims=True)
    first = jnp.min(jnp.where(masked >= m, lane, VOCAB_PAD), axis=-1, keepdims=True)
    oh_scr[...] = (lane == first).astype(jnp.float32)
    s_scr[...] = h_new


# ===================================================================================
# Wrappers
# ===================================================================================
def run_encoder(src_p, p):
    inputs = (src_p, p['enc_emb'],
              p['enc_wih_f'], p['enc_whh_f'], p['enc_bih_f'], p['enc_bhh_f'],
              p['enc_wih_b'], p['enc_whh_b'], p['enc_bih_b'], p['enc_bhh_b'],
              p['enc_wfc_f'], p['enc_wfc_b'], p['enc_bfc'],
              p['attn_wef'], p['attn_web'])
    out_shape = (jax.ShapeDtypeStruct((SRC_LEN, B_PAD, ENC_H), jnp.float32),   # fwd states
                 jax.ShapeDtypeStruct((SRC_LEN, B_PAD, ENC_H), jnp.float32),   # bwd states
                 jax.ShapeDtypeStruct((SRC_LEN, B_PAD, DEC_H), jnp.float32),   # enc @ W_enc
                 jax.ShapeDtypeStruct((B_PAD, DEC_H), jnp.float32))            # s0
    return pl.pallas_call(
        encoder_kernel,
        out_shape=out_shape,
        in_specs=[_VMEM] * len(inputs),
        out_specs=(_VMEM, _VMEM, _VMEM, _VMEM),
    )(*inputs)


def run_decoder(flags, trg_oh, s0, enc_f, enc_b, enc_proj, p):
    steps = trg_oh.shape[0] - 1
    inputs = (trg_oh, s0, enc_f, enc_b, enc_proj, p['dec_emb'],
              p['attn_ws'], p['attn_v'],
              p['dec_wih_e'], p['dec_wih_cf'], p['dec_wih_cb'],
              p['dec_whh'], p['dec_bih'], p['dec_bhh'],
              p['out_wh'], p['out_wcf'], p['out_wcb'], p['out_we'], p['out_b'])

    def full_spec(x):
        nd = x.ndim
        return pl.BlockSpec(x.shape, lambda i, f, nd=nd: (0,) * nd)

    in_specs = [pl.BlockSpec((1, B_PAD, VOCAB_PAD), lambda i, f: (i, 0, 0))]
    in_specs += [full_spec(x) for x in inputs[1:]]

    grid_spec = pltpu.PrefetchScalarGridSpec(
        num_scalar_prefetch=1,
        grid=(steps,),
        in_specs=in_specs,
        out_specs=pl.BlockSpec((1, B_PAD, VOCAB_PAD), lambda i, f: (i, 0, 0)),
        scratch_shapes=[pltpu.VMEM((B_PAD, DEC_H), jnp.float32),      # carried state s
                        pltpu.VMEM((B_PAD, VOCAB_PAD), jnp.float32)])  # prev greedy one-hot

    return pl.pallas_call(
        decoder_kernel,
        out_shape=jax.ShapeDtypeStruct((steps, B_PAD, VOCAB_PAD), jnp.float32),
        grid_spec=grid_spec,
        compiler_params=pltpu.CompilerParams(dimension_semantics=("arbitrary",)),
    )(flags, *inputs)


def seq2seq_forward(src, trg, params, teacher_forcing_ratio=0.5, seed=0):
    """Mirrors Seq2Seq.forward: outputs[0] stays zero, loop from t=1."""
    rng = random.Random(seed)  # deterministic stand-in for random.random()
    trg_len, batch = trg.shape

    # pad batch to full sublane occupancy (extra rows are sliced off at the end)
    pad_b = B_PAD - batch
    src_p = jnp.pad(src, ((0, 0), (0, pad_b)))
    trg_p = jnp.pad(trg, ((0, 0), (0, pad_b)))

    # teacher-forcing flags: flag[t] is the coin flip drawn at host iteration t; the
    # kernel's step i uses flag[i] (flag[0]=1 forces trg[0] as the first input).
    flags = [1] + [1 if rng.random() < teacher_forcing_ratio else 0
                   for _ in range(1, trg_len)]
    flags = jnp.asarray(flags, dtype=jnp.int32)

    # one-hot target tokens over the padded vocab (built once, consumed in-kernel)
    trg_oh = (trg_p[:, :, None] ==
              jnp.arange(VOCAB_PAD, dtype=jnp.int32)[None, None, :]).astype(jnp.float32)

    enc_f, enc_b, enc_proj, s0 = run_encoder(src_p, params)
    logits = run_decoder(flags, trg_oh, s0, enc_f, enc_b, enc_proj, params)

    out = jnp.concatenate(
        [jnp.zeros((1, B_PAD, VOCAB_PAD), jnp.float32), logits], axis=0)
    return out[:, :batch, :TRG_VOCAB]                     # (trg_len, B, V)


# ===================================================================================
# Deterministic parameter init (weights stored pre-split / pre-fused / pre-padded)
# ===================================================================================
def init_params(key):
    keys = iter(jax.random.split(key, 32))

    def nrm(shape, scale=0.1):
        return jax.random.normal(next(keys), shape, jnp.float32) * scale

    def pad_rows(a, n):
        return jnp.pad(a, ((0, n - a.shape[0]), (0, 0)))

    def pad_cols(a, n):
        return jnp.pad(a, ((0, 0), (0, n - a.shape[1])))

    p = {}
    # embeddings (row-padded to VOCAB_PAD; padded rows never selected by one-hots)
    p['enc_emb'] = pad_rows(nrm((SRC_VOCAB, EMB)), VOCAB_PAD)
    p['dec_emb'] = pad_rows(nrm((TRG_VOCAB, EMB)), VOCAB_PAD)
    # encoder bidirectional GRU, fused gate layout (In, 3H) with gate order (r, z, n)
    p['enc_wih_f'] = nrm((EMB, 3 * ENC_H))
    p['enc_whh_f'] = nrm((ENC_H, 3 * ENC_H))
    p['enc_bih_f'] = nrm((1, 3 * ENC_H))
    p['enc_bhh_f'] = nrm((1, 3 * ENC_H))
    p['enc_wih_b'] = nrm((EMB, 3 * ENC_H))
    p['enc_whh_b'] = nrm((ENC_H, 3 * ENC_H))
    p['enc_bih_b'] = nrm((1, 3 * ENC_H))
    p['enc_bhh_b'] = nrm((1, 3 * ENC_H))
    # encoder fc (split over fwd / bwd halves of the hidden concat)
    p['enc_wfc_f'] = nrm((ENC_H, DEC_H))
    p['enc_wfc_b'] = nrm((ENC_H, DEC_H))
    p['enc_bfc'] = nrm((1, DEC_H))
    # attention: attn = Linear(dec_hid + 2*enc_hid, dec_hid), v = Linear(dec_hid, 1)
    p['attn_ws'] = nrm((DEC_H, DEC_H))
    p['attn_wef'] = nrm((ENC_H, DEC_H))
    p['attn_web'] = nrm((ENC_H, DEC_H))
    p['attn_v'] = nrm((1, DEC_H))
    # decoder GRU (input = [emb, c_fwd, c_bwd]), fused gates
    p['dec_wih_e'] = nrm((EMB, 3 * DEC_H))
    p['dec_wih_cf'] = nrm((ENC_H, 3 * DEC_H))
    p['dec_wih_cb'] = nrm((ENC_H, 3 * DEC_H))
    p['dec_whh'] = nrm((DEC_H, 3 * DEC_H))
    p['dec_bih'] = nrm((1, 3 * DEC_H))
    p['dec_bhh'] = nrm((1, 3 * DEC_H))
    # output head on [h, c_fwd, c_bwd, emb]; columns zero-padded to VOCAB_PAD (lane-dense)
    p['out_wh'] = pad_cols(nrm((DEC_H, TRG_VOCAB)), VOCAB_PAD)
    p['out_wcf'] = pad_cols(nrm((ENC_H, TRG_VOCAB)), VOCAB_PAD)
    p['out_wcb'] = pad_cols(nrm((ENC_H, TRG_VOCAB)), VOCAB_PAD)
    p['out_we'] = pad_cols(nrm((EMB, TRG_VOCAB)), VOCAB_PAD)
    p['out_b'] = pad_cols(nrm((1, TRG_VOCAB)), VOCAB_PAD)
    return p


if __name__ == "__main__":
    key = jax.random.PRNGKey(0)
    k_p, k_src, k_trg = jax.random.split(key, 3)
    params = init_params(k_p)
    src = jax.random.randint(k_src, (SRC_LEN, BATCH), 0, SRC_VOCAB, dtype=jnp.int32)
    trg = jax.random.randint(k_trg, (TRG_LEN, BATCH), 0, TRG_VOCAB, dtype=jnp.int32)

    out = seq2seq_forward(src, trg, params, teacher_forcing_ratio=0.5, seed=0)
    out = jax.block_until_ready(out)
    assert out.shape == (TRG_LEN, BATCH, TRG_VOCAB)
    assert bool(jnp.all(jnp.isfinite(out)))
    assert bool(jnp.all(out[0] == 0.0))
    print("KERNEL_OK")
</pallas_src>

<mosaic_0001>
module attributes {stable_mosaic.version = 11 : i64} {
  func.func @encoder_kernel(%arg0: memref<8x8xi32, #tpu.memory_space<vmem>>, %arg1: memref<128x32xf32, #tpu.memory_space<vmem>>, %arg2: memref<32x96xf32, #tpu.memory_space<vmem>>, %arg3: memref<32x96xf32, #tpu.memory_space<vmem>>, %arg4: memref<1x96xf32, #tpu.memory_space<vmem>>, %arg5: memref<1x96xf32, #tpu.memory_space<vmem>>, %arg6: memref<32x96xf32, #tpu.memory_space<vmem>>, %arg7: memref<32x96xf32, #tpu.memory_space<vmem>>, %arg8: memref<1x96xf32, #tpu.memory_space<vmem>>, %arg9: memref<1x96xf32, #tpu.memory_space<vmem>>, %arg10: memref<32x32xf32, #tpu.memory_space<vmem>>, %arg11: memref<32x32xf32, #tpu.memory_space<vmem>>, %arg12: memref<1x32xf32, #tpu.memory_space<vmem>>, %arg13: memref<32x32xf32, #tpu.memory_space<vmem>>, %arg14: memref<32x32xf32, #tpu.memory_space<vmem>>, %arg15: memref<8x8x32xf32, #tpu.memory_space<vmem>>, %arg16: memref<8x8x32xf32, #tpu.memory_space<vmem>>, %arg17: memref<8x8x32xf32, #tpu.memory_space<vmem>>, %arg18: memref<8x32xf32, #tpu.memory_space<vmem>>) attributes {dimension_semantics = [], scalar_prefetch = 0 : i64, scratch_operands = 0 : i64, tpu.core_type = #tpu.core_type<tc>} {
    %c0 = arith.constant 0 : index
    %c0_0 = arith.constant 0 : index
    %0 = vector.load %arg0[%c0, %c0_0] : memref<8x8xi32, #tpu.memory_space<vmem>>, vector<8x8xi32>
    %1 = tpu.iota {dimensions = array<i32: 2>} : vector<8x8x128xi32>
    %2 = vector.shape_cast %0 : vector<8x8xi32> to vector<8x8x1xi32>
    %3 = vector.broadcast %2 : vector<8x8x1xi32> to vector<8x8x128xi32>
    %4 = arith.cmpi eq, %3, %1 : vector<8x8x128xi32>
    %5 = arith.extui %4 : vector<8x8x128xi1> to vector<8x8x128xi32>
    %6 = arith.sitofp %5 : vector<8x8x128xi32> to vector<8x8x128xf32>
    %7 = vector.shape_cast %6 : vector<8x8x128xf32> to vector<64x128xf32>
    %c0_1 = arith.constant 0 : index
    %c0_2 = arith.constant 0 : index
    %8 = vector.load %arg1[%c0_1, %c0_2] : memref<128x32xf32, #tpu.memory_space<vmem>>, vector<128x32xf32>
    %cst = arith.constant dense<0.000000e+00> : vector<64x32xf32>
    %9 = tpu.matmul %7, %8, %cst {dimension_numbers = #tpu.dot_dimension_numbers<[1], [0], [0], [1], [0, 0, 1, 1], [], []>} : vector<64x128xf32>, vector<128x32xf32>, vector<64x32xf32> -> vector<64x32xf32>
    %c0_3 = arith.constant 0 : index
    %c0_4 = arith.constant 0 : index
    %10 = vector.load %arg2[%c0_3, %c0_4] : memref<32x96xf32, #tpu.memory_space<vmem>>, vector<32x96xf32>
    %cst_5 = arith.constant dense<0.000000e+00> : vector<64x96xf32>
    %11 = tpu.matmul %9, %10, %cst_5 {dimension_numbers = #tpu.dot_dimension_numbers<[1], [0], [0], [1], [0, 0, 1, 1], [], []>} : vector<64x32xf32>, vector<32x96xf32>, vector<64x96xf32> -> vector<64x96xf32>
    %c0_6 = arith.constant 0 : index
    %c0_7 = arith.constant 0 : index
    %12 = vector.load %arg4[%c0_6, %c0_7] : memref<1x96xf32, #tpu.memory_space<vmem>>, vector<1x96xf32>
    %13 = vector.broadcast %12 : vector<1x96xf32> to vector<64x96xf32>
    %14 = arith.addf %11, %13 : vector<64x96xf32>
    %c0_8 = arith.constant 0 : index
    %c0_9 = arith.constant 0 : index
    %15 = vector.load %arg6[%c0_8, %c0_9] : memref<32x96xf32, #tpu.memory_space<vmem>>, vector<32x96xf32>
    %cst_10 = arith.constant dense<0.000000e+00> : vector<64x96xf32>
    %16 = tpu.matmul %9, %15, %cst_10 {dimension_numbers = #tpu.dot_dimension_numbers<[1], [0], [0], [1], [0, 0, 1, 1], [], []>} : vector<64x32xf32>, vector<32x96xf32>, vector<64x96xf32> -> vector<64x96xf32>
    %c0_11 = arith.constant 0 : index
    %c0_12 = arith.constant 0 : index
    %17 = vector.load %arg8[%c0_11, %c0_12] : memref<1x96xf32, #tpu.memory_space<vmem>>, vector<1x96xf32>
    %18 = vector.broadcast %17 : vector<1x96xf32> to vector<64x96xf32>
    %19 = arith.addf %16, %18 : vector<64x96xf32>
    %c0_13 = arith.constant 0 : index
    %c0_14 = arith.constant 0 : index
    %20 = vector.load %arg5[%c0_13, %c0_14] : memref<1x96xf32, #tpu.memory_space<vmem>>, vector<1x96xf32>
    %21 = vector.shape_cast %20 : vector<1x96xf32> to vector<1x96xf32>
    %22 = vector.broadcast %21 : vector<1x96xf32> to vector<8x96xf32>
    %c0_15 = arith.constant 0 : index
    %c0_16 = arith.constant 0 : index
    %23 = vector.load %arg9[%c0_15, %c0_16] : memref<1x96xf32, #tpu.memory_space<vmem>>, vector<1x96xf32>
    %24 = vector.shape_cast %23 : vector<1x96xf32> to vector<1x96xf32>
    %25 = vector.broadcast %24 : vector<1x96xf32> to vector<8x96xf32>
    %cst_17 = arith.constant 0.000000e+00 : f32
    %26 = vector.broadcast %cst_17 : f32 to vector<8x32xf32>
    %27 = vector.extract_strided_slice %14 {offsets = [0, 0], sizes = [8, 96], strides = [1, 1]} : vector<64x96xf32> to vector<8x96xf32>
    %c0_18 = arith.constant 0 : index
    %c0_19 = arith.constant 0 : index
    %28 = vector.load %arg3[%c0_18, %c0_19] : memref<32x96xf32, #tpu.memory_space<vmem>>, vector<32x96xf32>
    %cst_20 = arith.constant dense<0.000000e+00> : vector<8x96xf32>
    %29 = tpu.matmul %26, %28, %cst_20 {dimension_numbers = #tpu.dot_dimension_numbers<[1], [0], [0], [1], [0, 0, 1, 1], [], []>} : vector<8x32xf32>, vector<32x96xf32>, vector<8x96xf32> -> vector<8x96xf32>
    %30 = arith.addf %29, %22 : vector<8x96xf32>
    %31 = vector.extract_strided_slice %27 {offsets = [0, 0], sizes = [8, 32], strides = [1, 1]} : vector<8x96xf32> to vector<8x32xf32>
    %32 = vector.extract_strided_slice %30 {offsets = [0, 0], sizes = [8, 32], strides = [1, 1]} : vector<8x96xf32> to vector<8x32xf32>
    %33 = arith.addf %31, %32 : vector<8x32xf32>
    %34 = arith.negf %33 : vector<8x32xf32>
    %35 = math.exp %34 : vector<8x32xf32>
    %cst_21 = arith.constant 1.000000e+00 : f32
    %36 = vector.broadcast %cst_21 : f32 to vector<8x32xf32>
    %37 = arith.addf %36, %35 : vector<8x32xf32>
    %38 = arith.divf %36, %37 : vector<8x32xf32>
    %39 = vector.extract_strided_slice %27 {offsets = [0, 32], sizes = [8, 32], strides = [1, 1]} : vector<8x96xf32> to vector<8x32xf32>
    %40 = vector.extract_strided_slice %30 {offsets = [0, 32], sizes = [8, 32], strides = [1, 1]} : vector<8x96xf32> to vector<8x32xf32>
    %41 = arith.addf %39, %40 : vector<8x32xf32>
    %42 = arith.negf %41 : vector<8x32xf32>
    %43 = math.exp %42 : vector<8x32xf32>
    %cst_22 = arith.constant 1.000000e+00 : f32
    %44 = vector.broadcast %cst_22 : f32 to vector<8x32xf32>
    %45 = arith.addf %44, %43 : vector<8x32xf32>
    %46 = arith.divf %44, %45 : vector<8x32xf32>
    %47 = vector.extract_strided_slice %27 {offsets = [0, 64], sizes = [8, 32], strides = [1, 1]} : vector<8x96xf32> to vector<8x32xf32>
    %48 = vector.extract_strided_slice %30 {offsets = [0, 64], sizes = [8, 32], strides = [1, 1]} : vector<8x96xf32> to vector<8x32xf32>
    %49 = arith.mulf %38, %48 : vector<8x32xf32>
    %50 = arith.addf %47, %49 : vector<8x32xf32>
    %51 = math.tanh %50 : vector<8x32xf32>
    %cst_23 = arith.constant 1.000000e+00 : f32
    %52 = vector.broadcast %cst_23 : f32 to vector<8x32xf32>
    %53 = arith.subf %52, %46 : vector<8x32xf32>
    %54 = arith.mulf %53, %51 : vector<8x32xf32>
    %55 = arith.mulf %46, %26 : vector<8x32xf32>
    %56 = arith.addf %54, %55 : vector<8x32xf32>
    %c0_24 = arith.constant 0 : index
    %c0_25 = arith.constant 0 : index
    %c0_26 = arith.constant 0 : index
    %57 = vector.load %arg15[%c0_24, %c0_25, %c0_26] : memref<8x8x32xf32, #tpu.memory_space<vmem>>, vector<1x8x32xf32>
    %58 = vector.shape_cast %57 : vector<1x8x32xf32> to vector<8x32xf32>
    %59 = vector.shape_cast %56 : vector<8x32xf32> to vector<1x8x32xf32>
    tpu.vector_store %arg15[%c0_24, %c0_25, %c0_26], %59 {strides = array<i32>} : memref<8x8x32xf32, #tpu.memory_space<vmem>>, vector<1x8x32xf32>,
    %60 = vector.extract_strided_slice %14 {offsets = [8, 0], sizes = [8, 96], strides = [1, 1]} : vector<64x96xf32> to vector<8x96xf32>
    %c0_27 = arith.constant 0 : index
    %c0_28 = arith.constant 0 : index
    %61 = vector.load %arg3[%c0_27, %c0_28] : memref<32x96xf32, #tpu.memory_space<vmem>>, vector<32x96xf32>
    %cst_29 = arith.constant dense<0.000000e+00> : vector<8x96xf32>
    %62 = tpu.matmul %56, %61, %cst_29 {dimension_numbers = #tpu.dot_dimension_numbers<[1], [0], [0], [1], [0, 0, 1, 1], [], []>} : vector<8x32xf32>, vector<32x96xf32>, vector<8x96xf32> -> vector<8x96xf32>
    %63 = arith.addf %62, %22 : vector<8x96xf32>
    %64 = vector.extract_strided_slice %60 {offsets = [0, 0], sizes = [8, 32], strides = [1, 1]} : vector<8x96xf32> to vector<8x32xf32>
    %65 = vector.extract_strided_slice %63 {offsets = [0, 0], sizes = [8, 32], strides = [1, 1]} : vector<8x96xf32> to vector<8x32xf32>
    %66 = arith.addf %64, %65 : vector<8x32xf32>
    %67 = arith.negf %66 : vector<8x32xf32>
    %68 = math.exp %67 : vector<8x32xf32>
    %cst_30 = arith.constant 1.000000e+00 : f32
    %69 = vector.broadcast %cst_30 : f32 to vector<8x32xf32>
    %70 = arith.addf %69, %68 : vector<8x32xf32>
    %71 = arith.divf %69, %70 : vector<8x32xf32>
    %72 = vector.extract_strided_slice %60 {offsets = [0, 32], sizes = [8, 32], strides = [1, 1]} : vector<8x96xf32> to vector<8x32xf32>
    %73 = vector.extract_strided_slice %63 {offsets = [0, 32], sizes = [8, 32], strides = [1, 1]} : vector<8x96xf32> to vector<8x32xf32>
    %74 = arith.addf %72, %73 : vector<8x32xf32>
    %75 = arith.negf %74 : vector<8x32xf32>
    %76 = math.exp %75 : vector<8x32xf32>
    %cst_31 = arith.constant 1.000000e+00 : f32
    %77 = vector.broadcast %cst_31 : f32 to vector<8x32xf32>
    %78 = arith.addf %77, %76 : vector<8x32xf32>
    %79 = arith.divf %77, %78 : vector<8x32xf32>
    %80 = vector.extract_strided_slice %60 {offsets = [0, 64], sizes = [8, 32], strides = [1, 1]} : vector<8x96xf32> to vector<8x32xf32>
    %81 = vector.extract_strided_slice %63 {offsets = [0, 64], sizes = [8, 32], strides = [1, 1]} : vector<8x96xf32> to vector<8x32xf32>
    %82 = arith.mulf %71, %81 : vector<8x32xf32>
    %83 = arith.addf %80, %82 : vector<8x32xf32>
    %84 = math.tanh %83 : vector<8x32xf32>
    %cst_32 = arith.constant 1.000000e+00 : f32
    %85 = vector.broadcast %cst_32 : f32 to vector<8x32xf32>
    %86 = arith.subf %85, %79 : vector<8x32xf32>
    %87 = arith.mulf %86, %84 : vector<8x32xf32>
    %88 = arith.mulf %79, %56 : vector<8x32xf32>
    %89 = arith.addf %87, %88 : vector<8x32xf32>
    %c1 = arith.constant 1 : index
    %c0_33 = arith.constant 0 : index
    %c0_34 = arith.constant 0 : index
    %90 = vector.load %arg15[%c1, %c0_33, %c0_34] : memref<8x8x32xf32, #tpu.memory_space<vmem>>, vector<1x8x32xf32>
    %91 = vector.shape_cast %90 : vector<1x8x32xf32> to vector<8x32xf32>
    %92 = vector.shape_cast %89 : vector<8x32xf32> to vector<1x8x32xf32>
    tpu.vector_store %arg15[%c1, %c0_33, %c0_34], %92 {strides = array<i32>} : memref<8x8x32xf32, #tpu.memory_space<vmem>>, vector<1x8x32xf32>,
    %93 = vector.extract_strided_slice %14 {offsets = [16, 0], sizes = [8, 96], strides = [1, 1]} : vector<64x96xf32> to vector<8x96xf32>
    %c0_35 = arith.constant 0 : index
    %c0_36 = arith.constant 0 : index
    %94 = vector.load %arg3[%c0_35, %c0_36] : memref<32x96xf32, #tpu.memory_space<vmem>>, vector<32x96xf32>
    %cst_37 = arith.constant dense<0.000000e+00> : vector<8x96xf32>
    %95 = tpu.matmul %89, %94, %cst_37 {dimension_numbers = #tpu.dot_dimension_numbers<[1], [0], [0], [1], [0, 0, 1, 1], [], []>} : vector<8x32xf32>, vector<32x96xf32>, vector<8x96xf32> -> vector<8x96xf32>
    %96 = arith.addf %95, %22 : vector<8x96xf32>
    %97 = vector.extract_strided_slice %93 {offsets = [0, 0], sizes = [8, 32], strides = [1, 1]} : vector<8x96xf32> to vector<8x32xf32>
    %98 = vector.extract_strided_slice %96 {offsets = [0, 0], sizes = [8, 32], strides = [1, 1]} : vector<8x96xf32> to vector<8x32xf32>
    %99 = arith.addf %97, %98 : vector<8x32xf32>
    %100 = arith.negf %99 : vector<8x32xf32>
    %101 = math.exp %100 : vector<8x32xf32>
    %cst_38 = arith.constant 1.000000e+00 : f32
    %102 = vector.broadcast %cst_38 : f32 to vector<8x32xf32>
    %103 = arith.addf %102, %101 : vector<8x32xf32>
    %104 = arith.divf %102, %103 : vector<8x32xf32>
    %105 = vector.extract_strided_slice %93 {offsets = [0, 32], sizes = [8, 32], strides = [1, 1]} : vector<8x96xf32> to vector<8x32xf32>
    %106 = vector.extract_strided_slice %96 {offsets = [0, 32], sizes = [8, 32], strides = [1, 1]} : vector<8x96xf32> to vector<8x32xf32>
    %107 = arith.addf %105, %106 : vector<8x32xf32>
    %108 = arith.negf %107 : vector<8x32xf32>
    %109 = math.exp %108 : vector<8x32xf32>
    %cst_39 = arith.constant 1.000000e+00 : f32
    %110 = vector.broadcast %cst_39 : f32 to vector<8x32xf32>
    %111 = arith.addf %110, %109 : vector<8x32xf32>
    %112 = arith.divf %110, %111 : vector<8x32xf32>
    %113 = vector.extract_strided_slice %93 {offsets = [0, 64], sizes = [8, 32], strides = [1, 1]} : vector<8x96xf32> to vector<8x32xf32>
    %114 = vector.extract_strided_slice %96 {offsets = [0, 64], sizes = [8, 32], strides = [1, 1]} : vector<8x96xf32> to vector<8x32xf32>
    %115 = arith.mulf %104, %114 : vector<8x32xf32>
    %116 = arith.addf %113, %115 : vector<8x32xf32>
    %117 = math.tanh %116 : vector<8x32xf32>
    %cst_40 = arith.constant 1.000000e+00 : f32
    %118 = vector.broadcast %cst_40 : f32 to vector<8x32xf32>
    %119 = arith.subf %118, %112 : vector<8x32xf32>
    %120 = arith.mulf %119, %117 : vector<8x32xf32>
    %121 = arith.mulf %112, %89 : vector<8x32xf32>
    %122 = arith.addf %120, %121 : vector<8x32xf32>
    %c2 = arith.constant 2 : index
    %c0_41 = arith.constant 0 : index
    %c0_42 = arith.constant 0 : index
    %123 = vector.load %arg15[%c2, %c0_41, %c0_42] : memref<8x8x32xf32, #tpu.memory_space<vmem>>, vector<1x8x32xf32>
    %124 = vector.shape_cast %123 : vector<1x8x32xf32> to vector<8x32xf32>
    %125 = vector.shape_cast %122 : vector<8x32xf32> to vector<1x8x32xf32>
    tpu.vector_store %arg15[%c2, %c0_41, %c0_42], %125 {strides = array<i32>} : memref<8x8x32xf32, #tpu.memory_space<vmem>>, vector<1x8x32xf32>,
    %126 = vector.extract_strided_slice %14 {offsets = [24, 0], sizes = [8, 96], strides = [1, 1]} : vector<64x96xf32> to vector<8x96xf32>
    %c0_43 = arith.constant 0 : index
    %c0_44 = arith.constant 0 : index
    %127 = vector.load %arg3[%c0_43, %c0_44] : memref<32x96xf32, #tpu.memory_space<vmem>>, vector<32x96xf32>
    %cst_45 = arith.constant dense<0.000000e+00> : vector<8x96xf32>
    %128 = tpu.matmul %122, %127, %cst_45 {dimension_numbers = #tpu.dot_dimension_numbers<[1], [0], [0], [1], [0, 0, 1, 1], [], []>} : vector<8x32xf32>, vector<32x96xf32>, vector<8x96xf32> -> vector<8x96xf32>
    %129 = arith.addf %128, %22 : vector<8x96xf32>
    %130 = vector.extract_strided_slice %126 {offsets = [0, 0], sizes = [8, 32], strides = [1, 1]} : vector<8x96xf32> to vector<8x32xf32>
    %131 = vector.extract_strided_slice %129 {offsets = [0, 0], sizes = [8, 32], strides = [1, 1]} : vector<8x96xf32> to vector<8x32xf32>
    %132 = arith.addf %130, %131 : vector<8x32xf32>
    %133 = arith.negf %132 : vector<8x32xf32>
    %134 = math.exp %133 : vector<8x32xf32>
    %cst_46 = arith.constant 1.000000e+00 : f32
    %135 = vector.broadcast %cst_46 : f32 to vector<8x32xf32>
    %136 = arith.addf %135, %134 : vector<8x32xf32>
    %137 = arith.divf %135, %136 : vector<8x32xf32>
    %138 = vector.extract_strided_slice %126 {offsets = [0, 32], sizes = [8, 32], strides = [1, 1]} : vector<8x96xf32> to vector<8x32xf32>
    %139 = vector.extract_strided_slice %129 {offsets = [0, 32], sizes = [8, 32], strides = [1, 1]} : vector<8x96xf32> to vector<8x32xf32>
    %140 = arith.addf %138, %139 : vector<8x32xf32>
    %141 = arith.negf %140 : vector<8x32xf32>
    %142 = math.exp %141 : vector<8x32xf32>
    %cst_47 = arith.constant 1.000000e+00 : f32
    %143 = vector.broadcast %cst_47 : f32 to vector<8x32xf32>
    %144 = arith.addf %143, %142 : vector<8x32xf32>
    %145 = arith.divf %143, %144 : vector<8x32xf32>
    %146 = vector.extract_strided_slice %126 {offsets = [0, 64], sizes = [8, 32], strides = [1, 1]} : vector<8x96xf32> to vector<8x32xf32>
    %147 = vector.extract_strided_slice %129 {offsets = [0, 64], sizes = [8, 32], strides = [1, 1]} : vector<8x96xf32> to vector<8x32xf32>
    %148 = arith.mulf %137, %147 : vector<8x32xf32>
    %149 = arith.addf %146, %148 : vector<8x32xf32>
    %150 = math.tanh %149 : vector<8x32xf32>
    %cst_48 = arith.constant 1.000000e+00 : f32
    %151 = vector.broadcast %cst_48 : f32 to vector<8x32xf32>
    %152 = arith.subf %151, %145 : vector<8x32xf32>
    %153 = arith.mulf %152, %150 : vector<8x32xf32>
    %154 = arith.mulf %145, %122 : vector<8x32xf32>
    %155 = arith.addf %153, %154 : vector<8x32xf32>
    %c3 = arith.constant 3 : index
    %c0_49 = arith.constant 0 : index
    %c0_50 = arith.constant 0 : index
    %156 = vector.load %arg15[%c3, %c0_49, %c0_50] : memref<8x8x32xf32, #tpu.memory_space<vmem>>, vector<1x8x32xf32>
    %157 = vector.shape_cast %156 : vector<1x8x32xf32> to vector<8x32xf32>
    %158 = vector.shape_cast %155 : vector<8x32xf32> to vector<1x8x32xf32>
    tpu.vector_store %arg15[%c3, %c0_49, %c0_50], %158 {strides = array<i32>} : memref<8x8x32xf32, #tpu.memory_space<vmem>>, vector<1x8x32xf32>,
    %159 = vector.extract_strided_slice %14 {offsets = [32, 0], sizes = [8, 96], strides = [1, 1]} : vector<64x96xf32> to vector<8x96xf32>
    %c0_51 = arith.constant 0 : index
    %c0_52 = arith.constant 0 : index
    %160 = vector.load %arg3[%c0_51, %c0_52] : memref<32x96xf32, #tpu.memory_space<vmem>>, vector<32x96xf32>
    %cst_53 = arith.constant dense<0.000000e+00> : vector<8x96xf32>
    %161 = tpu.matmul %155, %160, %cst_53 {dimension_numbers = #tpu.dot_dimension_numbers<[1], [0], [0], [1], [0, 0, 1, 1], [], []>} : vector<8x32xf32>, vector<32x96xf32>, vector<8x96xf32> -> vector<8x96xf32>
    %162 = arith.addf %161, %22 : vector<8x96xf32>
    %163 = vector.extract_strided_slice %159 {offsets = [0, 0], sizes = [8, 32], strides = [1, 1]} : vector<8x96xf32> to vector<8x32xf32>
    %164 = vector.extract_strided_slice %162 {offsets = [0, 0], sizes = [8, 32], strides = [1, 1]} : vector<8x96xf32> to vector<8x32xf32>
    %165 = arith.addf %163, %164 : vector<8x32xf32>
    %166 = arith.negf %165 : vector<8x32xf32>
    %167 = math.exp %166 : vector<8x32xf32>
    %cst_54 = arith.constant 1.000000e+00 : f32
    %168 = vector.broadcast %cst_54 : f32 to vector<8x32xf32>
    %169 = arith.addf %168, %167 : vector<8x32xf32>
    %170 = arith.divf %168, %169 : vector<8x32xf32>
    %171 = vector.extract_strided_slice %159 {offsets = [0, 32], sizes = [8, 32], strides = [1, 1]} : vector<8x96xf32> to vector<8x32xf32>
    %172 = vector.extract_strided_slice %162 {offsets = [0, 32], sizes = [8, 32], strides = [1, 1]} : vector<8x96xf32> to vector<8x32xf32>
    %173 = arith.addf %171, %172 : vector<8x32xf32>
    %174 = arith.negf %173 : vector<8x32xf32>
    %175 = math.exp %174 : vector<8x32xf32>
    %cst_55 = arith.constant 1.000000e+00 : f32
    %176 = vector.broadcast %cst_55 : f32 to vector<8x32xf32>
    %177 = arith.addf %176, %175 : vector<8x32xf32>
    %178 = arith.divf %176, %177 : vector<8x32xf32>
    %179 = vector.extract_strided_slice %159 {offsets = [0, 64], sizes = [8, 32], strides = [1, 1]} : vector<8x96xf32> to vector<8x32xf32>
    %180 = vector.extract_strided_slice %162 {offsets = [0, 64], sizes = [8, 32], strides = [1, 1]} : vector<8x96xf32> to vector<8x32xf32>
    %181 = arith.mulf %170, %180 : vector<8x32xf32>
    %182 = arith.addf %179, %181 : vector<8x32xf32>
    %183 = math.tanh %182 : vector<8x32xf32>
    %cst_56 = arith.constant 1.000000e+00 : f32
    %184 = vector.broadcast %cst_56 : f32 to vector<8x32xf32>
    %185 = arith.subf %184, %178 : vector<8x32xf32>
    %186 = arith.mulf %185, %183 : vector<8x32xf32>
    %187 = arith.mulf %178, %155 : vector<8x32xf32>
    %188 = arith.addf %186, %187 : vector<8x32xf32>
    %c4 = arith.constant 4 : index
    %c0_57 = arith.constant 0 : index
    %c0_58 = arith.constant 0 : index
    %189 = vector.load %arg15[%c4, %c0_57, %c0_58] : memref<8x8x32xf32, #tpu.memory_space<vmem>>, vector<1x8x32xf32>
    %190 = vector.shape_cast %189 : vector<1x8x32xf32> to vector<8x32xf32>
    %191 = vector.shape_cast %188 : vector<8x32xf32> to vector<1x8x32xf32>
    tpu.vector_store %arg15[%c4, %c0_57, %c0_58], %191 {strides = array<i32>} : memref<8x8x32xf32, #tpu.memory_space<vmem>>, vector<1x8x32xf32>,
    %192 = vector.extract_strided_slice %14 {offsets = [40, 0], sizes = [8, 96], strides = [1, 1]} : vector<64x96xf32> to vector<8x96xf32>
    %c0_59 = arith.constant 0 : index
    %c0_60 = arith.constant 0 : index
    %193 = vector.load %arg3[%c0_59, %c0_60] : memref<32x96xf32, #tpu.memory_space<vmem>>, vector<32x96xf32>
    %cst_61 = arith.constant dense<0.000000e+00> : vector<8x96xf32>
    %194 = tpu.matmul %188, %193, %cst_61 {dimension_numbers = #tpu.dot_dimension_numbers<[1], [0], [0], [1], [0, 0, 1, 1], [], []>} : vector<8x32xf32>, vector<32x96xf32>, vector<8x96xf32> -> vector<8x96xf32>
    %195 = arith.addf %194, %22 : vector<8x96xf32>
    %196 = vector.extract_strided_slice %192 {offsets = [0, 0], sizes = [8, 32], strides = [1, 1]} : vector<8x96xf32> to vector<8x32xf32>
    %197 = vector.extract_strided_slice %195 {offsets = [0, 0], sizes = [8, 32], strides = [1, 1]} : vector<8x96xf32> to vector<8x32xf32>
    %198 = arith.addf %196, %197 : vector<8x32xf32>
    %199 = arith.negf %198 : vector<8x32xf32>
    %200 = math.exp %199 : vector<8x32xf32>
    %cst_62 = arith.constant 1.000000e+00 : f32
    %201 = vector.broadcast %cst_62 : f32 to vector<8x32xf32>
    %202 = arith.addf %201, %200 : vector<8x32xf32>
    %203 = arith.divf %201, %202 : vector<8x32xf32>
    %204 = vector.extract_strided_slice %192 {offsets = [0, 32], sizes = [8, 32], strides = [1, 1]} : vector<8x96xf32> to vector<8x32xf32>
    %205 = vector.extract_strided_slice %195 {offsets = [0, 32], sizes = [8, 32], strides = [1, 1]} : vector<8x96xf32> to vector<8x32xf32>
    %206 = arith.addf %204, %205 : vector<8x32xf32>
    %207 = arith.negf %206 : vector<8x32xf32>
    %208 = math.exp %207 : vector<8x32xf32>
    %cst_63 = arith.constant 1.000000e+00 : f32
    %209 = vector.broadcast %cst_63 : f32 to vector<8x32xf32>
    %210 = arith.addf %209, %208 : vector<8x32xf32>
    %211 = arith.divf %209, %210 : vector<8x32xf32>
    %212 = vector.extract_strided_slice %192 {offsets = [0, 64], sizes = [8, 32], strides = [1, 1]} : vector<8x96xf32> to vector<8x32xf32>
    %213 = vector.extract_strided_slice %195 {offsets = [0, 64], sizes = [8, 32], strides = [1, 1]} : vector<8x96xf32> to vector<8x32xf32>
    %214 = arith.mulf %203, %213 : vector<8x32xf32>
    %215 = arith.addf %212, %214 : vector<8x32xf32>
    %216 = math.tanh %215 : vector<8x32xf32>
    %cst_64 = arith.constant 1.000000e+00 : f32
    %217 = vector.broadcast %cst_64 : f32 to vector<8x32xf32>
    %218 = arith.subf %217, %211 : vector<8x32xf32>
    %219 = arith.mulf %218, %216 : vector<8x32xf32>
    %220 = arith.mulf %211, %188 : vector<8x32xf32>
    %221 = arith.addf %219, %220 : vector<8x32xf32>
    %c5 = arith.constant 5 : index
    %c0_65 = arith.constant 0 : index
    %c0_66 = arith.constant 0 : index
    %222 = vector.load %arg15[%c5, %c0_65, %c0_66] : memref<8x8x32xf32, #tpu.memory_space<vmem>>, vector<1x8x32xf32>
    %223 = vector.shape_cast %222 : vector<1x8x32xf32> to vector<8x32xf32>
    %224 = vector.shape_cast %221 : vector<8x32xf32> to vector<1x8x32xf32>
    tpu.vector_store %arg15[%c5, %c0_65, %c0_66], %224 {strides = array<i32>} : memref<8x8x32xf32, #tpu.memory_space<vmem>>, vector<1x8x32xf32>,
    %225 = vector.extract_strided_slice %14 {offsets = [48, 0], sizes = [8, 96], strides = [1, 1]} : vector<64x96xf32> to vector<8x96xf32>
    %c0_67 = arith.constant 0 : index
    %c0_68 = arith.constant 0 : index
    %226 = vector.load %arg3[%c0_67, %c0_68] : memref<32x96xf32, #tpu.memory_space<vmem>>, vector<32x96xf32>
    %cst_69 = arith.constant dense<0.000000e+00> : vector<8x96xf32>
    %227 = tpu.matmul %221, %226, %cst_69 {dimension_numbers = #tpu.dot_dimension_numbers<[1], [0], [0], [1], [0, 0, 1, 1], [], []>} : vector<8x32xf32>, vector<32x96xf32>, vector<8x96xf32> -> vector<8x96xf32>
    %228 = arith.addf %227, %22 : vector<8x96xf32>
    %229 = vector.extract_strided_slice %225 {offsets = [0, 0], sizes = [8, 32], strides = [1, 1]} : vector<8x96xf32> to vector<8x32xf32>
    %230 = vector.extract_strided_slice %228 {offsets = [0, 0], sizes = [8, 32], strides = [1, 1]} : vector<8x96xf32> to vector<8x32xf32>
    %231 = arith.addf %229, %230 : vector<8x32xf32>
    %232 = arith.negf %231 : vector<8x32xf32>
    %233 = math.exp %232 : vector<8x32xf32>
    %cst_70 = arith.constant 1.000000e+00 : f32
    %234 = vector.broadcast %cst_70 : f32 to vector<8x32xf32>
    %235 = arith.addf %234, %233 : vector<8x32xf32>
    %236 = arith.divf %234, %235 : vector<8x32xf32>
    %237 = vector.extract_strided_slice %225 {offsets = [0, 32], sizes = [8, 32], strides = [1, 1]} : vector<8x96xf32> to vector<8x32xf32>
    %238 = vector.extract_strided_slice %228 {offsets = [0, 32], sizes = [8, 32], strides = [1, 1]} : vector<8x96xf32> to vector<8x32xf32>
    %239 = arith.addf %237, %238 : vector<8x32xf32>
    %240 = arith.negf %239 : vector<8x32xf32>
    %241 = math.exp %240 : vector<8x32xf32>
    %cst_71 = arith.constant 1.000000e+00 : f32
    %242 = vector.broadcast %cst_71 : f32 to vector<8x32xf32>
    %243 = arith.addf %242, %241 : vector<8x32xf32>
    %244 = arith.divf %242, %243 : vector<8x32xf32>
    %245 = vector.extract_strided_slice %225 {offsets = [0, 64], sizes = [8, 32], strides = [1, 1]} : vector<8x96xf32> to vector<8x32xf32>
    %246 = vector.extract_strided_slice %228 {offsets = [0, 64], sizes = [8, 32], strides = [1, 1]} : vector<8x96xf32> to vector<8x32xf32>
    %247 = arith.mulf %236, %246 : vector<8x32xf32>
    %248 = arith.addf %245, %247 : vector<8x32xf32>
    %249 = math.tanh %248 : vector<8x32xf32>
    %cst_72 = arith.constant 1.000000e+00 : f32
    %250 = vector.broadcast %cst_72 : f32 to vector<8x32xf32>
    %251 = arith.subf %250, %244 : vector<8x32xf32>
    %252 = arith.mulf %251, %249 : vector<8x32xf32>
    %253 = arith.mulf %244, %221 : vector<8x32xf32>
    %254 = arith.addf %252, %253 : vector<8x32xf32>
    %c6 = arith.constant 6 : index
    %c0_73 = arith.constant 0 : index
    %c0_74 = arith.constant 0 : index
    %255 = vector.load %arg15[%c6, %c0_73, %c0_74] : memref<8x8x32xf32, #tpu.memory_space<vmem>>, vector<1x8x32xf32>
    %256 = vector.shape_cast %255 : vector<1x8x32xf32> to vector<8x32xf32>
    %257 = vector.shape_cast %254 : vector<8x32xf32> to vector<1x8x32xf32>
    tpu.vector_store %arg15[%c6, %c0_73, %c0_74], %257 {strides = array<i32>} : memref<8x8x32xf32, #tpu.memory_space<vmem>>, vector<1x8x32xf32>,
    %258 = vector.extract_strided_slice %14 {offsets = [56, 0], sizes = [8, 96], strides = [1, 1]} : vector<64x96xf32> to vector<8x96xf32>
    %c0_75 = arith.constant 0 : index
    %c0_76 = arith.constant 0 : index
    %259 = vector.load %arg3[%c0_75, %c0_76] : memref<32x96xf32, #tpu.memory_space<vmem>>, vector<32x96xf32>
    %cst_77 = arith.constant dense<0.000000e+00> : vector<8x96xf32>
    %260 = tpu.matmul %254, %259, %cst_77 {dimension_numbers = #tpu.dot_dimension_numbers<[1], [0], [0], [1], [0, 0, 1, 1], [], []>} : vector<8x32xf32>, vector<32x96xf32>, vector<8x96xf32> -> vector<8x96xf32>
    %261 = arith.addf %260, %22 : vector<8x96xf32>
    %262 = vector.extract_strided_slice %258 {offsets = [0, 0], sizes = [8, 32], strides = [1, 1]} : vector<8x96xf32> to vector<8x32xf32>
    %263 = vector.extract_strided_slice %261 {offsets = [0, 0], sizes = [8, 32], strides = [1, 1]} : vector<8x96xf32> to vector<8x32xf32>
    %264 = arith.addf %262, %263 : vector<8x32xf32>
    %265 = arith.negf %264 : vector<8x32xf32>
    %266 = math.exp %265 : vector<8x32xf32>
    %cst_78 = arith.constant 1.000000e+00 : f32
    %267 = vector.broadcast %cst_78 : f32 to vector<8x32xf32>
    %268 = arith.addf %267, %266 : vector<8x32xf32>
    %269 = arith.divf %267, %268 : vector<8x32xf32>
    %270 = vector.extract_strided_slice %258 {offsets = [0, 32], sizes = [8, 32], strides = [1, 1]} : vector<8x96xf32> to vector<8x32xf32>
    %271 = vector.extract_strided_slice %261 {offsets = [0, 32], sizes = [8, 32], strides = [1, 1]} : vector<8x96xf32> to vector<8x32xf32>
    %272 = arith.addf %270, %271 : vector<8x32xf32>
    %273 = arith.negf %272 : vector<8x32xf32>
    %274 = math.exp %273 : vector<8x32xf32>
    %cst_79 = arith.constant 1.000000e+00 : f32
    %275 = vector.broadcast %cst_79 : f32 to vector<8x32xf32>
    %276 = arith.addf %275, %274 : vector<8x32xf32>
    %277 = arith.divf %275, %276 : vector<8x32xf32>
    %278 = vector.extract_strided_slice %258 {offsets = [0, 64], sizes = [8, 32], strides = [1, 1]} : vector<8x96xf32> to vector<8x32xf32>
    %279 = vector.extract_strided_slice %261 {offsets = [0, 64], sizes = [8, 32], strides = [1, 1]} : vector<8x96xf32> to vector<8x32xf32>
    %280 = arith.mulf %269, %279 : vector<8x32xf32>
    %281 = arith.addf %278, %280 : vector<8x32xf32>
    %282 = math.tanh %281 : vector<8x32xf32>
    %cst_80 = arith.constant 1.000000e+00 : f32
    %283 = vector.broadcast %cst_80 : f32 to vector<8x32xf32>
    %284 = arith.subf %283, %277 : vector<8x32xf32>
    %285 = arith.mulf %284, %282 : vector<8x32xf32>
    %286 = arith.mulf %277, %254 : vector<8x32xf32>
    %287 = arith.addf %285, %286 : vector<8x32xf32>
    %c7 = arith.constant 7 : index
    %c0_81 = arith.constant 0 : index
    %c0_82 = arith.constant 0 : index
    %288 = vector.load %arg15[%c7, %c0_81, %c0_82] : memref<8x8x32xf32, #tpu.memory_space<vmem>>, vector<1x8x32xf32>
    %289 = vector.shape_cast %288 : vector<1x8x32xf32> to vector<8x32xf32>
    %290 = vector.shape_cast %287 : vector<8x32xf32> to vector<1x8x32xf32>
    tpu.vector_store %arg15[%c7, %c0_81, %c0_82], %290 {strides = array<i32>} : memref<8x8x32xf32, #tpu.memory_space<vmem>>, vector<1x8x32xf32>,
    %cst_83 = arith.constant 0.000000e+00 : f32
    %291 = vector.broadcast %cst_83 : f32 to vector<8x32xf32>
    %292 = vector.extract_strided_slice %19 {offsets = [56, 0], sizes = [8, 96], strides = [1, 1]} : vector<64x96xf32> to vector<8x96xf32>
    %c0_84 = arith.constant 0 : index
    %c0_85 = arith.constant 0 : index
    %293 = vector.load %arg7[%c0_84, %c0_85] : memref<32x96xf32, #tpu.memory_space<vmem>>, vector<32x96xf32>
    %cst_86 = arith.constant dense<0.000000e+00> : vector<8x96xf32>
    %294 = tpu.matmul %291, %293, %cst_86 {dimension_numbers = #tpu.dot_dimension_numbers<[1], [0], [0], [1], [0, 0, 1, 1], [], []>} : vector<8x32xf32>, vector<32x96xf32>, vector<8x96xf32> -> vector<8x96xf32>
    %295 = arith.addf %294, %25 : vector<8x96xf32>
    %296 = vector.extract_strided_slice %292 {offsets = [0, 0], sizes = [8, 32], strides = [1, 1]} : vector<8x96xf32> to vector<8x32xf32>
    %297 = vector.extract_strided_slice %295 {offsets = [0, 0], sizes = [8, 32], strides = [1, 1]} : vector<8x96xf32> to vector<8x32xf32>
    %298 = arith.addf %296, %297 : vector<8x32xf32>
    %299 = arith.negf %298 : vector<8x32xf32>
    %300 = math.exp %299 : vector<8x32xf32>
    %cst_87 = arith.constant 1.000000e+00 : f32
    %301 = vector.broadcast %cst_87 : f32 to vector<8x32xf32>
    %302 = arith.addf %301, %300 : vector<8x32xf32>
    %303 = arith.divf %301, %302 : vector<8x32xf32>
    %304 = vector.extract_strided_slice %292 {offsets = [0, 32], sizes = [8, 32], strides = [1, 1]} : vector<8x96xf32> to vector<8x32xf32>
    %305 = vector.extract_strided_slice %295 {offsets = [0, 32], sizes = [8, 32], strides = [1, 1]} : vector<8x96xf32> to vector<8x32xf32>
    %306 = arith.addf %304, %305 : vector<8x32xf32>
    %307 = arith.negf %306 : vector<8x32xf32>
    %308 = math.exp %307 : vector<8x32xf32>
    %cst_88 = arith.constant 1.000000e+00 : f32
    %309 = vector.broadcast %cst_88 : f32 to vector<8x32xf32>
    %310 = arith.addf %309, %308 : vector<8x32xf32>
    %311 = arith.divf %309, %310 : vector<8x32xf32>
    %312 = vector.extract_strided_slice %292 {offsets = [0, 64], sizes = [8, 32], strides = [1, 1]} : vector<8x96xf32> to vector<8x32xf32>
    %313 = vector.extract_strided_slice %295 {offsets = [0, 64], sizes = [8, 32], strides = [1, 1]} : vector<8x96xf32> to vector<8x32xf32>
    %314 = arith.mulf %303, %313 : vector<8x32xf32>
    %315 = arith.addf %312, %314 : vector<8x32xf32>
    %316 = math.tanh %315 : vector<8x32xf32>
    %cst_89 = arith.constant 1.000000e+00 : f32
    %317 = vector.broadcast %cst_89 : f32 to vector<8x32xf32>
    %318 = arith.subf %317, %311 : vector<8x32xf32>
    %319 = arith.mulf %318, %316 : vector<8x32xf32>
    %320 = arith.mulf %311, %291 : vector<8x32xf32>
    %321 = arith.addf %319, %320 : vector<8x32xf32>
    %c7_90 = arith.constant 7 : index
    %c0_91 = arith.constant 0 : index
    %c0_92 = arith.constant 0 : index
    %322 = vector.load %arg16[%c7_90, %c0_91, %c0_92] : memref<8x8x32xf32, #tpu.memory_space<vmem>>, vector<1x8x32xf32>
    %323 = vector.shape_cast %322 : vector<1x8x32xf32> to vector<8x32xf32>
    %324 = vector.shape_cast %321 : vector<8x32xf32> to vector<1x8x32xf32>
    tpu.vector_store %arg16[%c7_90, %c0_91, %c0_92], %324 {strides = array<i32>} : memref<8x8x32xf32, #tpu.memory_space<vmem>>, vector<1x8x32xf32>,
    %325 = vector.extract_strided_slice %19 {offsets = [48, 0], sizes = [8, 96], strides = [1, 1]} : vector<64x96xf32> to vector<8x96xf32>
    %c0_93 = arith.constant 0 : index
    %c0_94 = arith.constant 0 : index
    %326 = vector.load %arg7[%c0_93, %c0_94] : memref<32x96xf32, #tpu.memory_space<vmem>>, vector<32x96xf32>
    %cst_95 = arith.constant dense<0.000000e+00> : vector<8x96xf32>
    %327 = tpu.matmul %321, %326, %cst_95 {dimension_numbers = #tpu.dot_dimension_numbers<[1], [0], [0], [1], [0, 0, 1, 1], [], []>} : vector<8x32xf32>, vector<32x96xf32>, vector<8x96xf32> -> vector<8x96xf32>
    %328 = arith.addf %327, %25 : vector<8x96xf32>
    %329 = vector.extract_strided_slice %325 {offsets = [0, 0], sizes = [8, 32], strides = [1, 1]} : vector<8x96xf32> to vector<8x32xf32>
    %330 = vector.extract_strided_slice %328 {offsets = [0, 0], sizes = [8, 32], strides = [1, 1]} : vector<8x96xf32> to vector<8x32xf32>
    %331 = arith.addf %329, %330 : vector<8x32xf32>
    %332 = arith.negf %331 : vector<8x32xf32>
    %333 = math.exp %332 : vector<8x32xf32>
    %cst_96 = arith.constant 1.000000e+00 : f32
    %334 = vector.broadcast %cst_96 : f32 to vector<8x32xf32>
    %335 = arith.addf %334, %333 : vector<8x32xf32>
    %336 = arith.divf %334, %335 : vector<8x32xf32>
    %337 = vector.extract_strided_slice %325 {offsets = [0, 32], sizes = [8, 32], strides = [1, 1]} : vector<8x96xf32> to vector<8x32xf32>
    %338 = vector.extract_strided_slice %328 {offsets = [0, 32], sizes = [8, 32], strides = [1, 1]} : vector<8x96xf32> to vector<8x32xf32>
    %339 = arith.addf %337, %338 : vector<8x32xf32>
    %340 = arith.negf %339 : vector<8x32xf32>
    %341 = math.exp %340 : vector<8x32xf32>
    %cst_97 = arith.constant 1.000000e+00 : f32
    %342 = vector.broadcast %cst_97 : f32 to vector<8x32xf32>
    %343 = arith.addf %342, %341 : vector<8x32xf32>
    %344 = arith.divf %342, %343 : vector<8x32xf32>
    %345 = vector.extract_strided_slice %325 {offsets = [0, 64], sizes = [8, 32], strides = [1, 1]} : vector<8x96xf32> to vector<8x32xf32>
    %346 = vector.extract_strided_slice %328 {offsets = [0, 64], sizes = [8, 32], strides = [1, 1]} : vector<8x96xf32> to vector<8x32xf32>
    %347 = arith.mulf %336, %346 : vector<8x32xf32>
    %348 = arith.addf %345, %347 : vector<8x32xf32>
    %349 = math.tanh %348 : vector<8x32xf32>
    %cst_98 = arith.constant 1.000000e+00 : f32
    %350 = vector.broadcast %cst_98 : f32 to vector<8x32xf32>
    %351 = arith.subf %350, %344 : vector<8x32xf32>
    %352 = arith.mulf %351, %349 : vector<8x32xf32>
    %353 = arith.mulf %344, %321 : vector<8x32xf32>
    %354 = arith.addf %352, %353 : vector<8x32xf32>
    %c6_99 = arith.constant 6 : index
    %c0_100 = arith.constant 0 : index
    %c0_101 = arith.constant 0 : index
    %355 = vector.load %arg16[%c6_99, %c0_100, %c0_101] : memref<8x8x32xf32, #tpu.memory_space<vmem>>, vector<1x8x32xf32>
    %356 = vector.shape_cast %355 : vector<1x8x32xf32> to vector<8x32xf32>
    %357 = vector.shape_cast %354 : vector<8x32xf32> to vector<1x8x32xf32>
    tpu.vector_store %arg16[%c6_99, %c0_100, %c0_101], %357 {strides = array<i32>} : memref<8x8x32xf32, #tpu.memory_space<vmem>>, vector<1x8x32xf32>,
    %358 = vector.extract_strided_slice %19 {offsets = [40, 0], sizes = [8, 96], strides = [1, 1]} : vector<64x96xf32> to vector<8x96xf32>
    %c0_102 = arith.constant 0 : index
    %c0_103 = arith.constant 0 : index
    %359 = vector.load %arg7[%c0_102, %c0_103] : memref<32x96xf32, #tpu.memory_space<vmem>>, vector<32x96xf32>
    %cst_104 = arith.constant dense<0.000000e+00> : vector<8x96xf32>
    %360 = tpu.matmul %354, %359, %cst_104 {dimension_numbers = #tpu.dot_dimension_numbers<[1], [0], [0], [1], [0, 0, 1, 1], [], []>} : vector<8x32xf32>, vector<32x96xf32>, vector<8x96xf32> -> vector<8x96xf32>
    %361 = arith.addf %360, %25 : vector<8x96xf32>
    %362 = vector.extract_strided_slice %358 {offsets = [0, 0], sizes = [8, 32], strides = [1, 1]} : vector<8x96xf32> to vector<8x32xf32>
    %363 = vector.extract_strided_slice %361 {offsets = [0, 0], sizes = [8, 32], strides = [1, 1]} : vector<8x96xf32> to vector<8x32xf32>
    %364 = arith.addf %362, %363 : vector<8x32xf32>
    %365 = arith.negf %364 : vector<8x32xf32>
    %366 = math.exp %365 : vector<8x32xf32>
    %cst_105 = arith.constant 1.000000e+00 : f32
    %367 = vector.broadcast %cst_105 : f32 to vector<8x32xf32>
    %368 = arith.addf %367, %366 : vector<8x32xf32>
    %369 = arith.divf %367, %368 : vector<8x32xf32>
    %370 = vector.extract_strided_slice %358 {offsets = [0, 32], sizes = [8, 32], strides = [1, 1]} : vector<8x96xf32> to vector<8x32xf32>
    %371 = vector.extract_strided_slice %361 {offsets = [0, 32], sizes = [8, 32], strides = [1, 1]} : vector<8x96xf32> to vector<8x32xf32>
    %372 = arith.addf %370, %371 : vector<8x32xf32>
    %373 = arith.negf %372 : vector<8x32xf32>
    %374 = math.exp %373 : vector<8x32xf32>
    %cst_106 = arith.constant 1.000000e+00 : f32
    %375 = vector.broadcast %cst_106 : f32 to vector<8x32xf32>
    %376 = arith.addf %375, %374 : vector<8x32xf32>
    %377 = arith.divf %375, %376 : vector<8x32xf32>
    %378 = vector.extract_strided_slice %358 {offsets = [0, 64], sizes = [8, 32], strides = [1, 1]} : vector<8x96xf32> to vector<8x32xf32>
    %379 = vector.extract_strided_slice %361 {offsets = [0, 64], sizes = [8, 32], strides = [1, 1]} : vector<8x96xf32> to vector<8x32xf32>
    %380 = arith.mulf %369, %379 : vector<8x32xf32>
    %381 = arith.addf %378, %380 : vector<8x32xf32>
    %382 = math.tanh %381 : vector<8x32xf32>
    %cst_107 = arith.constant 1.000000e+00 : f32
    %383 = vector.broadcast %cst_107 : f32 to vector<8x32xf32>
    %384 = arith.subf %383, %377 : vector<8x32xf32>
    %385 = arith.mulf %384, %382 : vector<8x32xf32>
    %386 = arith.mulf %377, %354 : vector<8x32xf32>
    %387 = arith.addf %385, %386 : vector<8x32xf32>
    %c5_108 = arith.constant 5 : index
    %c0_109 = arith.constant 0 : index
    %c0_110 = arith.constant 0 : index
    %388 = vector.load %arg16[%c5_108, %c0_109, %c0_110] : memref<8x8x32xf32, #tpu.memory_space<vmem>>, vector<1x8x32xf32>
    %389 = vector.shape_cast %388 : vector<1x8x32xf32> to vector<8x32xf32>
    %390 = vector.shape_cast %387 : vector<8x32xf32> to vector<1x8x32xf32>
    tpu.vector_store %arg16[%c5_108, %c0_109, %c0_110], %390 {strides = array<i32>} : memref<8x8x32xf32, #tpu.memory_space<vmem>>, vector<1x8x32xf32>,
    %391 = vector.extract_strided_slice %19 {offsets = [32, 0], sizes = [8, 96], strides = [1, 1]} : vector<64x96xf32> to vector<8x96xf32>
    %c0_111 = arith.constant 0 : index
    %c0_112 = arith.constant 0 : index
    %392 = vector.load %arg7[%c0_111, %c0_112] : memref<32x96xf32, #tpu.memory_space<vmem>>, vector<32x96xf32>
    %cst_113 = arith.constant dense<0.000000e+00> : vector<8x96xf32>
    %393 = tpu.matmul %387, %392, %cst_113 {dimension_numbers = #tpu.dot_dimension_numbers<[1], [0], [0], [1], [0, 0, 1, 1], [], []>} : vector<8x32xf32>, vector<32x96xf32>, vector<8x96xf32> -> vector<8x96xf32>
    %394 = arith.addf %393, %25 : vector<8x96xf32>
    %395 = vector.extract_strided_slice %391 {offsets = [0, 0], sizes = [8, 32], strides = [1, 1]} : vector<8x96xf32> to vector<8x32xf32>
    %396 = vector.extract_strided_slice %394 {offsets = [0, 0], sizes = [8, 32], strides = [1, 1]} : vector<8x96xf32> to vector<8x32xf32>
    %397 = arith.addf %395, %396 : vector<8x32xf32>
    %398 = arith.negf %397 : vector<8x32xf32>
    %399 = math.exp %398 : vector<8x32xf32>
    %cst_114 = arith.constant 1.000000e+00 : f32
    %400 = vector.broadcast %cst_114 : f32 to vector<8x32xf32>
    %401 = arith.addf %400, %399 : vector<8x32xf32>
    %402 = arith.divf %400, %401 : vector<8x32xf32>
    %403 = vector.extract_strided_slice %391 {offsets = [0, 32], sizes = [8, 32], strides = [1, 1]} : vector<8x96xf32> to vector<8x32xf32>
    %404 = vector.extract_strided_slice %394 {offsets = [0, 32], sizes = [8, 32], strides = [1, 1]} : vector<8x96xf32> to vector<8x32xf32>
    %405 = arith.addf %403, %404 : vector<8x32xf32>
    %406 = arith.negf %405 : vector<8x32xf32>
    %407 = math.exp %406 : vector<8x32xf32>
    %cst_115 = arith.constant 1.000000e+00 : f32
    %408 = vector.broadcast %cst_115 : f32 to vector<8x32xf32>
    %409 = arith.addf %408, %407 : vector<8x32xf32>
    %410 = arith.divf %408, %409 : vector<8x32xf32>
    %411 = vector.extract_strided_slice %391 {offsets = [0, 64], sizes = [8, 32], strides = [1, 1]} : vector<8x96xf32> to vector<8x32xf32>
    %412 = vector.extract_strided_slice %394 {offsets = [0, 64], sizes = [8, 32], strides = [1, 1]} : vector<8x96xf32> to vector<8x32xf32>
    %413 = arith.mulf %402, %412 : vector<8x32xf32>
    %414 = arith.addf %411, %413 : vector<8x32xf32>
    %415 = math.tanh %414 : vector<8x32xf32>
    %cst_116 = arith.constant 1.000000e+00 : f32
    %416 = vector.broadcast %cst_116 : f32 to vector<8x32xf32>
    %417 = arith.subf %416, %410 : vector<8x32xf32>
    %418 = arith.mulf %417, %415 : vector<8x32xf32>
    %419 = arith.mulf %410, %387 : vector<8x32xf32>
    %420 = arith.addf %418, %419 : vector<8x32xf32>
    %c4_117 = arith.constant 4 : index
    %c0_118 = arith.constant 0 : index
    %c0_119 = arith.constant 0 : index
    %421 = vector.load %arg16[%c4_117, %c0_118, %c0_119] : memref<8x8x32xf32, #tpu.memory_space<vmem>>, vector<1x8x32xf32>
    %422 = vector.shape_cast %421 : vector<1x8x32xf32> to vector<8x32xf32>
    %423 = vector.shape_cast %420 : vector<8x32xf32> to vector<1x8x32xf32>
    tpu.vector_store %arg16[%c4_117, %c0_118, %c0_119], %423 {strides = array<i32>} : memref<8x8x32xf32, #tpu.memory_space<vmem>>, vector<1x8x32xf32>,
    %424 = vector.extract_strided_slice %19 {offsets = [24, 0], sizes = [8, 96], strides = [1, 1]} : vector<64x96xf32> to vector<8x96xf32>
    %c0_120 = arith.constant 0 : index
    %c0_121 = arith.constant 0 : index
    %425 = vector.load %arg7[%c0_120, %c0_121] : memref<32x96xf32, #tpu.memory_space<vmem>>, vector<32x96xf32>
    %cst_122 = arith.constant dense<0.000000e+00> : vector<8x96xf32>
    %426 = tpu.matmul %420, %425, %cst_122 {dimension_numbers = #tpu.dot_dimension_numbers<[1], [0], [0], [1], [0, 0, 1, 1], [], []>} : vector<8x32xf32>, vector<32x96xf32>, vector<8x96xf32> -> vector<8x96xf32>
    %427 = arith.addf %426, %25 : vector<8x96xf32>
    %428 = vector.extract_strided_slice %424 {offsets = [0, 0], sizes = [8, 32], strides = [1, 1]} : vector<8x96xf32> to vector<8x32xf32>
    %429 = vector.extract_strided_slice %427 {offsets = [0, 0], sizes = [8, 32], strides = [1, 1]} : vector<8x96xf32> to vector<8x32xf32>
    %430 = arith.addf %428, %429 : vector<8x32xf32>
    %431 = arith.negf %430 : vector<8x32xf32>
    %432 = math.exp %431 : vector<8x32xf32>
    %cst_123 = arith.constant 1.000000e+00 : f32
    %433 = vector.broadcast %cst_123 : f32 to vector<8x32xf32>
    %434 = arith.addf %433, %432 : vector<8x32xf32>
    %435 = arith.divf %433, %434 : vector<8x32xf32>
    %436 = vector.extract_strided_slice %424 {offsets = [0, 32], sizes = [8, 32], strides = [1, 1]} : vector<8x96xf32> to vector<8x32xf32>
    %437 = vector.extract_strided_slice %427 {offsets = [0, 32], sizes = [8, 32], strides = [1, 1]} : vector<8x96xf32> to vector<8x32xf32>
    %438 = arith.addf %436, %437 : vector<8x32xf32>
    %439 = arith.negf %438 : vector<8x32xf32>
    %440 = math.exp %439 : vector<8x32xf32>
    %cst_124 = arith.constant 1.000000e+00 : f32
    %441 = vector.broadcast %cst_124 : f32 to vector<8x32xf32>
    %442 = arith.addf %441, %440 : vector<8x32xf32>
    %443 = arith.divf %441, %442 : vector<8x32xf32>
    %444 = vector.extract_strided_slice %424 {offsets = [0, 64], sizes = [8, 32], strides = [1, 1]} : vector<8x96xf32> to vector<8x32xf32>
    %445 = vector.extract_strided_slice %427 {offsets = [0, 64], sizes = [8, 32], strides = [1, 1]} : vector<8x96xf32> to vector<8x32xf32>
    %446 = arith.mulf %435, %445 : vector<8x32xf32>
    %447 = arith.addf %444, %446 : vector<8x32xf32>
    %448 = math.tanh %447 : vector<8x32xf32>
    %cst_125 = arith.constant 1.000000e+00 : f32
    %449 = vector.broadcast %cst_125 : f32 to vector<8x32xf32>
    %450 = arith.subf %449, %443 : vector<8x32xf32>
    %451 = arith.mulf %450, %448 : vector<8x32xf32>
    %452 = arith.mulf %443, %420 : vector<8x32xf32>
    %453 = arith.addf %451, %452 : vector<8x32xf32>
    %c3_126 = arith.constant 3 : index
    %c0_127 = arith.constant 0 : index
    %c0_128 = arith.constant 0 : index
    %454 = vector.load %arg16[%c3_126, %c0_127, %c0_128] : memref<8x8x32xf32, #tpu.memory_space<vmem>>, vector<1x8x32xf32>
    %455 = vector.shape_cast %454 : vector<1x8x32xf32> to vector<8x32xf32>
    %456 = vector.shape_cast %453 : vector<8x32xf32> to vector<1x8x32xf32>
    tpu.vector_store %arg16[%c3_126, %c0_127, %c0_128], %456 {strides = array<i32>} : memref<8x8x32xf32, #tpu.memory_space<vmem>>, vector<1x8x32xf32>,
    %457 = vector.extract_strided_slice %19 {offsets = [16, 0], sizes = [8, 96], strides = [1, 1]} : vector<64x96xf32> to vector<8x96xf32>
    %c0_129 = arith.constant 0 : index
    %c0_130 = arith.constant 0 : index
    %458 = vector.load %arg7[%c0_129, %c0_130] : memref<32x96xf32, #tpu.memory_space<vmem>>, vector<32x96xf32>
    %cst_131 = arith.constant dense<0.000000e+00> : vector<8x96xf32>
    %459 = tpu.matmul %453, %458, %cst_131 {dimension_numbers = #tpu.dot_dimension_numbers<[1], [0], [0], [1], [0, 0, 1, 1], [], []>} : vector<8x32xf32>, vector<32x96xf32>, vector<8x96xf32> -> vector<8x96xf32>
    %460 = arith.addf %459, %25 : vector<8x96xf32>
    %461 = vector.extract_strided_slice %457 {offsets = [0, 0], sizes = [8, 32], strides = [1, 1]} : vector<8x96xf32> to vector<8x32xf32>
    %462 = vector.extract_strided_slice %460 {offsets = [0, 0], sizes = [8, 32], strides = [1, 1]} : vector<8x96xf32> to vector<8x32xf32>
    %463 = arith.addf %461, %462 : vector<8x32xf32>
    %464 = arith.negf %463 : vector<8x32xf32>
    %465 = math.exp %464 : vector<8x32xf32>
    %cst_132 = arith.constant 1.000000e+00 : f32
    %466 = vector.broadcast %cst_132 : f32 to vector<8x32xf32>
    %467 = arith.addf %466, %465 : vector<8x32xf32>
    %468 = arith.divf %466, %467 : vector<8x32xf32>
    %469 = vector.extract_strided_slice %457 {offsets = [0, 32], sizes = [8, 32], strides = [1, 1]} : vector<8x96xf32> to vector<8x32xf32>
    %470 = vector.extract_strided_slice %460 {offsets = [0, 32], sizes = [8, 32], strides = [1, 1]} : vector<8x96xf32> to vector<8x32xf32>
    %471 = arith.addf %469, %470 : vector<8x32xf32>
    %472 = arith.negf %471 : vector<8x32xf32>
    %473 = math.exp %472 : vector<8x32xf32>
    %cst_133 = arith.constant 1.000000e+00 : f32
    %474 = vector.broadcast %cst_133 : f32 to vector<8x32xf32>
    %475 = arith.addf %474, %473 : vector<8x32xf32>
    %476 = arith.divf %474, %475 : vector<8x32xf32>
    %477 = vector.extract_strided_slice %457 {offsets = [0, 64], sizes = [8, 32], strides = [1, 1]} : vector<8x96xf32> to vector<8x32xf32>
    %478 = vector.extract_strided_slice %460 {offsets = [0, 64], sizes = [8, 32], strides = [1, 1]} : vector<8x96xf32> to vector<8x32xf32>
    %479 = arith.mulf %468, %478 : vector<8x32xf32>
    %480 = arith.addf %477, %479 : vector<8x32xf32>
    %481 = math.tanh %480 : vector<8x32xf32>
    %cst_134 = arith.constant 1.000000e+00 : f32
    %482 = vector.broadcast %cst_134 : f32 to vector<8x32xf32>
    %483 = arith.subf %482, %476 : vector<8x32xf32>
    %484 = arith.mulf %483, %481 : vector<8x32xf32>
    %485 = arith.mulf %476, %453 : vector<8x32xf32>
    %486 = arith.addf %484, %485 : vector<8x32xf32>
    %c2_135 = arith.constant 2 : index
    %c0_136 = arith.constant 0 : index
    %c0_137 = arith.constant 0 : index
    %487 = vector.load %arg16[%c2_135, %c0_136, %c0_137] : memref<8x8x32xf32, #tpu.memory_space<vmem>>, vector<1x8x32xf32>
    %488 = vector.shape_cast %487 : vector<1x8x32xf32> to vector<8x32xf32>
    %489 = vector.shape_cast %486 : vector<8x32xf32> to vector<1x8x32xf32>
    tpu.vector_store %arg16[%c2_135, %c0_136, %c0_137], %489 {strides = array<i32>} : memref<8x8x32xf32, #tpu.memory_space<vmem>>, vector<1x8x32xf32>,
    %490 = vector.extract_strided_slice %19 {offsets = [8, 0], sizes = [8, 96], strides = [1, 1]} : vector<64x96xf32> to vector<8x96xf32>
    %c0_138 = arith.constant 0 : index
    %c0_139 = arith.constant 0 : index
    %491 = vector.load %arg7[%c0_138, %c0_139] : memref<32x96xf32, #tpu.memory_space<vmem>>, vector<32x96xf32>
    %cst_140 = arith.constant dense<0.000000e+00> : vector<8x96xf32>
    %492 = tpu.matmul %486, %491, %cst_140 {dimension_numbers = #tpu.dot_dimension_numbers<[1], [0], [0], [1], [0, 0, 1, 1], [], []>} : vector<8x32xf32>, vector<32x96xf32>, vector<8x96xf32> -> vector<8x96xf32>
    %493 = arith.addf %492, %25 : vector<8x96xf32>
    %494 = vector.extract_strided_slice %490 {offsets = [0, 0], sizes = [8, 32], strides = [1, 1]} : vector<8x96xf32> to vector<8x32xf32>
    %495 = vector.extract_strided_slice %493 {offsets = [0, 0], sizes = [8, 32], strides = [1, 1]} : vector<8x96xf32> to vector<8x32xf32>
    %496 = arith.addf %494, %495 : vector<8x32xf32>
    %497 = arith.negf %496 : vector<8x32xf32>
    %498 = math.exp %497 : vector<8x32xf32>
    %cst_141 = arith.constant 1.000000e+00 : f32
    %499 = vector.broadcast %cst_141 : f32 to vector<8x32xf32>
    %500 = arith.addf %499, %498 : vector<8x32xf32>
    %501 = arith.divf %499, %500 : vector<8x32xf32>
    %502 = vector.extract_strided_slice %490 {offsets = [0, 32], sizes = [8, 32], strides = [1, 1]} : vector<8x96xf32> to vector<8x32xf32>
    %503 = vector.extract_strided_slice %493 {offsets = [0, 32], sizes = [8, 32], strides = [1, 1]} : vector<8x96xf32> to vector<8x32xf32>
    %504 = arith.addf %502, %503 : vector<8x32xf32>
    %505 = arith.negf %504 : vector<8x32xf32>
    %506 = math.exp %505 : vector<8x32xf32>
    %cst_142 = arith.constant 1.000000e+00 : f32
    %507 = vector.broadcast %cst_142 : f32 to vector<8x32xf32>
    %508 = arith.addf %507, %506 : vector<8x32xf32>
    %509 = arith.divf %507, %508 : vector<8x32xf32>
    %510 = vector.extract_strided_slice %490 {offsets = [0, 64], sizes = [8, 32], strides = [1, 1]} : vector<8x96xf32> to vector<8x32xf32>
    %511 = vector.extract_strided_slice %493 {offsets = [0, 64], sizes = [8, 32], strides = [1, 1]} : vector<8x96xf32> to vector<8x32xf32>
    %512 = arith.mulf %501, %511 : vector<8x32xf32>
    %513 = arith.addf %510, %512 : vector<8x32xf32>
    %514 = math.tanh %513 : vector<8x32xf32>
    %cst_143 = arith.constant 1.000000e+00 : f32
    %515 = vector.broadcast %cst_143 : f32 to vector<8x32xf32>
    %516 = arith.subf %515, %509 : vector<8x32xf32>
    %517 = arith.mulf %516, %514 : vector<8x32xf32>
    %518 = arith.mulf %509, %486 : vector<8x32xf32>
    %519 = arith.addf %517, %518 : vector<8x32xf32>
    %c1_144 = arith.constant 1 : index
    %c0_145 = arith.constant 0 : index
    %c0_146 = arith.constant 0 : index
    %520 = vector.load %arg16[%c1_144, %c0_145, %c0_146] : memref<8x8x32xf32, #tpu.memory_space<vmem>>, vector<1x8x32xf32>
    %521 = vector.shape_cast %520 : vector<1x8x32xf32> to vector<8x32xf32>
    %522 = vector.shape_cast %519 : vector<8x32xf32> to vector<1x8x32xf32>
    tpu.vector_store %arg16[%c1_144, %c0_145, %c0_146], %522 {strides = array<i32>} : memref<8x8x32xf32, #tpu.memory_space<vmem>>, vector<1x8x32xf32>,
    %523 = vector.extract_strided_slice %19 {offsets = [0, 0], sizes = [8, 96], strides = [1, 1]} : vector<64x96xf32> to vector<8x96xf32>
    %c0_147 = arith.constant 0 : index
    %c0_148 = arith.constant 0 : index
    %524 = vector.load %arg7[%c0_147, %c0_148] : memref<32x96xf32, #tpu.memory_space<vmem>>, vector<32x96xf32>
    %cst_149 = arith.constant dense<0.000000e+00> : vector<8x96xf32>
    %525 = tpu.matmul %519, %524, %cst_149 {dimension_numbers = #tpu.dot_dimension_numbers<[1], [0], [0], [1], [0, 0, 1, 1], [], []>} : vector<8x32xf32>, vector<32x96xf32>, vector<8x96xf32> -> vector<8x96xf32>
    %526 = arith.addf %525, %25 : vector<8x96xf32>
    %527 = vector.extract_strided_slice %523 {offsets = [0, 0], sizes = [8, 32], strides = [1, 1]} : vector<8x96xf32> to vector<8x32xf32>
    %528 = vector.extract_strided_slice %526 {offsets = [0, 0], sizes = [8, 32], strides = [1, 1]} : vector<8x96xf32> to vector<8x32xf32>
    %529 = arith.addf %527, %528 : vector<8x32xf32>
    %530 = arith.negf %529 : vector<8x32xf32>
    %531 = math.exp %530 : vector<8x32xf32>
    %cst_150 = arith.constant 1.000000e+00 : f32
    %532 = vector.broadcast %cst_150 : f32 to vector<8x32xf32>
    %533 = arith.addf %532, %531 : vector<8x32xf32>
    %534 = arith.divf %532, %533 : vector<8x32xf32>
    %535 = vector.extract_strided_slice %523 {offsets = [0, 32], sizes = [8, 32], strides = [1, 1]} : vector<8x96xf32> to vector<8x32xf32>
    %536 = vector.extract_strided_slice %526 {offsets = [0, 32], sizes = [8, 32], strides = [1, 1]} : vector<8x96xf32> to vector<8x32xf32>
    %537 = arith.addf %535, %536 : vector<8x32xf32>
    %538 = arith.negf %537 : vector<8x32xf32>
    %539 = math.exp %538 : vector<8x32xf32>
    %cst_151 = arith.constant 1.000000e+00 : f32
    %540 = vector.broadcast %cst_151 : f32 to vector<8x32xf32>
    %541 = arith.addf %540, %539 : vector<8x32xf32>
    %542 = arith.divf %540, %541 : vector<8x32xf32>
    %543 = vector.extract_strided_slice %523 {offsets = [0, 64], sizes = [8, 32], strides = [1, 1]} : vector<8x96xf32> to vector<8x32xf32>
    %544 = vector.extract_strided_slice %526 {offsets = [0, 64], sizes = [8, 32], strides = [1, 1]} : vector<8x96xf32> to vector<8x32xf32>
    %545 = arith.mulf %534, %544 : vector<8x32xf32>
    %546 = arith.addf %543, %545 : vector<8x32xf32>
    %547 = math.tanh %546 : vector<8x32xf32>
    %cst_152 = arith.constant 1.000000e+00 : f32
    %548 = vector.broadcast %cst_152 : f32 to vector<8x32xf32>
    %549 = arith.subf %548, %542 : vector<8x32xf32>
    %550 = arith.mulf %549, %547 : vector<8x32xf32>
    %551 = arith.mulf %542, %519 : vector<8x32xf32>
    %552 = arith.addf %550, %551 : vector<8x32xf32>
    %c0_153 = arith.constant 0 : index
    %c0_154 = arith.constant 0 : index
    %c0_155 = arith.constant 0 : index
    %553 = vector.load %arg16[%c0_153, %c0_154, %c0_155] : memref<8x8x32xf32, #tpu.memory_space<vmem>>, vector<1x8x32xf32>
    %554 = vector.shape_cast %553 : vector<1x8x32xf32> to vector<8x32xf32>
    %555 = vector.shape_cast %552 : vector<8x32xf32> to vector<1x8x32xf32>
    tpu.vector_store %arg16[%c0_153, %c0_154, %c0_155], %555 {strides = array<i32>} : memref<8x8x32xf32, #tpu.memory_space<vmem>>, vector<1x8x32xf32>,
    %c0_156 = arith.constant 0 : index
    %c0_157 = arith.constant 0 : index
    %556 = vector.load %arg10[%c0_156, %c0_157] : memref<32x32xf32, #tpu.memory_space<vmem>>, vector<32x32xf32>
    %cst_158 = arith.constant dense<0.000000e+00> : vector<8x32xf32>
    %557 = tpu.matmul %287, %556, %cst_158 {dimension_numbers = #tpu.dot_dimension_numbers<[1], [0], [0], [1], [0, 0, 1, 1], [], []>} : vector<8x32xf32>, vector<32x32xf32>, vector<8x32xf32> -> vector<8x32xf32>
    %c0_159 = arith.constant 0 : index
    %c0_160 = arith.constant 0 : index
    %558 = vector.load %arg11[%c0_159, %c0_160] : memref<32x32xf32, #tpu.memory_space<vmem>>, vector<32x32xf32>
    %cst_161 = arith.constant dense<0.000000e+00> : vector<8x32xf32>
    %559 = tpu.matmul %552, %558, %cst_161 {dimension_numbers = #tpu.dot_dimension_numbers<[1], [0], [0], [1], [0, 0, 1, 1], [], []>} : vector<8x32xf32>, vector<32x32xf32>, vector<8x32xf32> -> vector<8x32xf32>
    %560 = arith.addf %557, %559 : vector<8x32xf32>
    %c0_162 = arith.constant 0 : index
    %c0_163 = arith.constant 0 : index
    %561 = vector.load %arg12[%c0_162, %c0_163] : memref<1x32xf32, #tpu.memory_space<vmem>>, vector<1x32xf32>
    %562 = vector.broadcast %561 : vector<1x32xf32> to vector<8x32xf32>
    %563 = arith.addf %560, %562 : vector<8x32xf32>
    %564 = math.tanh %563 : vector<8x32xf32>
    %c0_164 = arith.constant 0 : index
    %c0_165 = arith.constant 0 : index
    %565 = vector.load %arg18[%c0_164, %c0_165] : memref<8x32xf32, #tpu.memory_space<vmem>>, vector<8x32xf32>
    tpu.vector_store %arg18[%c0_164, %c0_165], %564 {strides = array<i32>} : memref<8x32xf32, #tpu.memory_space<vmem>>, vector<8x32xf32>,
    %c0_166 = arith.constant 0 : index
    %c0_167 = arith.constant 0 : index
    %c0_168 = arith.constant 0 : index
    %566 = vector.load %arg15[%c0_166, %c0_167, %c0_168] : memref<8x8x32xf32, #tpu.memory_space<vmem>>, vector<8x8x32xf32>
    %567 = vector.shape_cast %566 : vector<8x8x32xf32> to vector<64x32xf32>
    %c0_169 = arith.constant 0 : index
    %c0_170 = arith.constant 0 : index
    %c0_171 = arith.constant 0 : index
    %568 = vector.load %arg16[%c0_169, %c0_170, %c0_171] : memref<8x8x32xf32, #tpu.memory_space<vmem>>, vector<8x8x32xf32>
    %569 = vector.shape_cast %568 : vector<8x8x32xf32> to vector<64x32xf32>
    %c0_172 = arith.constant 0 : index
    %c0_173 = arith.constant 0 : index
    %570 = vector.load %arg13[%c0_172, %c0_173] : memref<32x32xf32, #tpu.memory_space<vmem>>, vector<32x32xf32>
    %cst_174 = arith.constant dense<0.000000e+00> : vector<64x32xf32>
    %571 = tpu.matmul %567, %570, %cst_174 {dimension_numbers = #tpu.dot_dimension_numbers<[1], [0], [0], [1], [0, 0, 1, 1], [], []>} : vector<64x32xf32>, vector<32x32xf32>, vector<64x32xf32> -> vector<64x32xf32>
    %c0_175 = arith.constant 0 : index
    %c0_176 = arith.constant 0 : index
    %572 = vector.load %arg14[%c0_175, %c0_176] : memref<32x32xf32, #tpu.memory_space<vmem>>, vector<32x32xf32>
    %cst_177 = arith.constant dense<0.000000e+00> : vector<64x32xf32>
    %573 = tpu.matmul %569, %572, %cst_177 {dimension_numbers = #tpu.dot_dimension_numbers<[1], [0], [0], [1], [0, 0, 1, 1], [], []>} : vector<64x32xf32>, vector<32x32xf32>, vector<64x32xf32> -> vector<64x32xf32>
    %574 = arith.addf %571, %573 : vector<64x32xf32>
    %575 = vector.shape_cast %574 : vector<64x32xf32> to vector<8x8x32xf32>
    %c0_178 = arith.constant 0 : index
    %c0_179 = arith.constant 0 : index
    %c0_180 = arith.constant 0 : index
    %576 = vector.load %arg17[%c0_178, %c0_179, %c0_180] : memref<8x8x32xf32, #tpu.memory_space<vmem>>, vector<8x8x32xf32>
    tpu.vector_store %arg17[%c0_178, %c0_179, %c0_180], %575 {strides = array<i32>} : memref<8x8x32xf32, #tpu.memory_space<vmem>>, vector<8x8x32xf32>,
    return
  }
}

</mosaic_0001>

<llo_original>
// kernel: tpu_custom_call.1
$region0: #{tpu_custom_call.1}
  #allocation0 [shape = 'u32[]', space=smem, size = 0x4, offset = 0x4, fixed_abs, tag = 'smem constant byte address 0x4 - core index']
  #allocation1 [shape = 'u32[144,128]{1,0:T(1,128)}', space=vmem, size = 0x12000, scoped, tag = 'internal scratch']
  %s0 = inlined_call_operand.hbm [shape: s32[8,8], index: 0, kind: input, shape index: {}]
  %s1 = inlined_call_operand.vmem [shape: f32[128,32], index: 1, kind: input, shape index: {}]
  %s2 = inlined_call_operand.vmem [shape: f32[32,96], index: 2, kind: input, shape index: {}]
  %s3 = inlined_call_operand.vmem [shape: f32[32,96], index: 3, kind: input, shape index: {}]
  %s4 = inlined_call_operand.vmem [shape: f32[1,96], index: 4, kind: input, shape index: {}]
  %s5 = inlined_call_operand.vmem [shape: f32[1,96], index: 5, kind: input, shape index: {}]
  %s6 = inlined_call_operand.vmem [shape: f32[32,96], index: 6, kind: input, shape index: {}]
  %s7 = inlined_call_operand.vmem [shape: f32[32,96], index: 7, kind: input, shape index: {}]
  %s8 = inlined_call_operand.hbm [shape: f32[1,96], index: 8, kind: input, shape index: {}]
  %s9 = inlined_call_operand.hbm [shape: f32[1,96], index: 9, kind: input, shape index: {}]
  %s10 = inlined_call_operand.vmem [shape: f32[32,32], index: 10, kind: input, shape index: {}]
  %s11 = inlined_call_operand.vmem [shape: f32[32,32], index: 11, kind: input, shape index: {}]
  %s12 = inlined_call_operand.vmem [shape: f32[1,32], index: 12, kind: input, shape index: {}]
  %s13 = inlined_call_operand.hbm [shape: f32[32,32], index: 13, kind: input, shape index: {}]
  %s14 = inlined_call_operand.hbm [shape: f32[32,32], index: 14, kind: input, shape index: {}]
  %s15 = inlined_call_operand.hbm [shape: f32[8,8,32], index: 15, kind: output, shape index: {0}]
  %s16 = inlined_call_operand.hbm [shape: f32[8,8,32], index: 16, kind: output, shape index: {1}]
  %s17 = inlined_call_operand.hbm [shape: f32[8,8,32], index: 17, kind: output, shape index: {2}]
  %s18 = inlined_call_operand.hbm [shape: f32[8,32], index: 18, kind: output, shape index: {3}]
  %19 = xla_tuple %s15, %s16, %s17, %s18
  %s20 = sld [smem:[#allocation0]]
  $region114: #{tpu_custom_call.1} parent=0
    _
  %s22 = ssub.s32 1, %s20
  %s23 = scalar_select 0, %s22, %s20
  $region1: #{tpu_custom_call.1} parent=0
    #allocation2 [shape = 'u8[4096]{0}', space=vmem, size = 0x1000, scoped, tag = 'input window, operand 0, single buffered']
    #allocation3 [shape = 's32[1]{0}', space=sflag, size = 0x4, scoped, tag = 'scoped memory for tpu_custom_call.1']
    #allocation4 [shape = 's32[1]{0}', space=sflag, size = 0x4, scoped, tag = 'scoped memory for tpu_custom_call.1']
    #allocation5 [shape = 'u8[512]{0}', space=vmem, size = 0x400, scoped, tag = 'input window, operand 8, single buffered']
    #allocation6 [shape = 's32[1]{0}', space=sflag, size = 0x4, scoped, tag = 'scoped memory for tpu_custom_call.1']
    #allocation7 [shape = 'u8[512]{0}', space=vmem, size = 0x400, scoped, tag = 'input window, operand 9, single buffered']
    #allocation8 [shape = 'u8[16384]{0}', space=vmem, size = 0x4000, scoped, tag = 'input window, operand 13, single buffered']
    #allocation9 [shape = 's32[1]{0}', space=sflag, size = 0x4, scoped, tag = 'scoped memory for tpu_custom_call.1']
    #allocation10 [shape = 'u8[16384]{0}', space=vmem, size = 0x4000, scoped, tag = 'input window, operand 14, single buffered']
    #allocation11 [shape = 'u8[32768]{0}', space=vmem, size = 0x8000, scoped, tag = 'output window, operand 0, single buffered']
    #allocation12 [shape = 'u8[32768]{0}', space=vmem, size = 0x8000, scoped, tag = 'output window, operand 1, single buffered']
    #allocation13 [shape = 's32[1]{0}', space=sflag, size = 0x4, scoped, tag = 'scoped memory for tpu_custom_call.1']
    #allocation14 [shape = 'u8[32768]{0}', space=vmem, size = 0x8000, scoped, tag = 'output window, operand 2, single buffered']
    #allocation15 [shape = 'u8[4096]{0}', space=vmem, size = 0x1000, scoped, tag = 'output window, operand 3, single buffered']
    #allocation16 [shape = 's32[1]{0}', space=sflag, size = 0x4, scoped, tag = 'scoped memory for tpu_custom_call.1']
    %24 = vsyncpa [#allocation3], 0
    %25 = vsyncpa [#allocation6], 0
    %26 = vsyncpa [#allocation9], 0
    %27 = vsyncpa [#allocation4], 0
    %28 = vsyncpa [#allocation13], 0
    %29 = vsyncpa [#allocation16], 0
    // Predicated region
    $region2: #{tpu_custom_call.1} parent=1 // pred_check
      _
    $region3: #{tpu_custom_call.1} parent=1 // pred_check_branch
      %31 = sbr.rel (0) target = $region5
    $region4: #{tpu_custom_call.1} parent=1 // pred_region
      %s33 = ssub.s32 128, 128
      %34 = vsyncadd [#allocation3], %s33
      %s36 = sshll.u32 [#allocation2], 4
      %s37 = int_to_ptr.vmem [resolvable:$true] %s36
      %39 = dma.hbm_to_vmem [thread:$0]  %s0, 128, %s37, [#allocation3]
    $region5: #{tpu_custom_call.1} parent=1 // pred_fallthru
      _
    // Predicated region
    $region6: #{tpu_custom_call.1} parent=1 // pred_check
      _
    $region7: #{tpu_custom_call.1} parent=1 // pred_check_branch
      %41 = sbr.rel (0) target = $region9
    $region8: #{tpu_custom_call.1} parent=1 // pred_region
      _
    $region9: #{tpu_custom_call.1} parent=1 // pred_fallthru
      _
    // Predicated region
    $region10: #{tpu_custom_call.1} parent=1 // pred_check
      _
    $region11: #{tpu_custom_call.1} parent=1 // pred_check_branch
      %43 = sbr.rel (0) target = $region13
    $region12: #{tpu_custom_call.1} parent=1 // pred_region
      _
    $region13: #{tpu_custom_call.1} parent=1 // pred_fallthru
      _
    // Predicated region
    $region14: #{tpu_custom_call.1} parent=1 // pred_check
      _
    $region15: #{tpu_custom_call.1} parent=1 // pred_check_branch
      %45 = sbr.rel (0) target = $region17
    $region16: #{tpu_custom_call.1} parent=1 // pred_region
      _
    $region17: #{tpu_custom_call.1} parent=1 // pred_fallthru
      _
    // Predicated region
    $region18: #{tpu_custom_call.1} parent=1 // pred_check
      _
    $region19: #{tpu_custom_call.1} parent=1 // pred_check_branch
      %47 = sbr.rel (0) target = $region21
    $region20: #{tpu_custom_call.1} parent=1 // pred_region
      _
    $region21: #{tpu_custom_call.1} parent=1 // pred_fallthru
      _
    // Predicated region
    $region22: #{tpu_custom_call.1} parent=1 // pred_check
      _
    $region23: #{tpu_custom_call.1} parent=1 // pred_check_branch
      %49 = sbr.rel (0) target = $region25
    $region24: #{tpu_custom_call.1} parent=1 // pred_region
      _
    $region25: #{tpu_custom_call.1} parent=1 // pred_fallthru
      _
    // Predicated region
    $region26: #{tpu_custom_call.1} parent=1 // pred_check
      _
    $region27: #{tpu_custom_call.1} parent=1 // pred_check_branch
      %51 = sbr.rel (0) target = $region29
    $region28: #{tpu_custom_call.1} parent=1 // pred_region
      _
    $region29: #{tpu_custom_call.1} parent=1 // pred_fallthru
      _
    // Predicated region
    $region30: #{tpu_custom_call.1} parent=1 // pred_check
      _
    $region31: #{tpu_custom_call.1} parent=1 // pred_check_branch
      %53 = sbr.rel (0) target = $region33
    $region32: #{tpu_custom_call.1} parent=1 // pred_region
      _
    $region33: #{tpu_custom_call.1} parent=1 // pred_fallthru
      _
    // Predicated region
    $region34: #{tpu_custom_call.1} parent=1 // pred_check
      _
    $region35: #{tpu_custom_call.1} parent=1 // pred_check_branch
      %55 = sbr.rel (0) target = $region37
    $region36: #{tpu_custom_call.1} parent=1 // pred_region
      %s57 = ssub.s32 16, 16
      %58 = vsyncadd [#allocation6], %s57
      %s60 = sshll.u32 [#allocation5], 4
      %s61 = int_to_ptr.vmem [resolvable:$true] %s60
      %63 = dma.hbm_to_vmem [thread:$0]  %s8, 16, %s61, [#allocation6]
    $region37: #{tpu_custom_call.1} parent=1 // pred_fallthru
      _
    // Predicated region
    $region38: #{tpu_custom_call.1} parent=1 // pred_check
      _
    $region39: #{tpu_custom_call.1} parent=1 // pred_check_branch
      %65 = sbr.rel (0) target = $region41
    $region40: #{tpu_custom_call.1} parent=1 // pred_region
      %s67 = ssub.s32 16, 16
      %68 = vsyncadd [#allocation6], %s67
      %s70 = sshll.u32 [#allocation7], 4
      %s71 = int_to_ptr.vmem [resolvable:$true] %s70
      %73 = dma.hbm_to_vmem [thread:$0]  %s9, 16, %s71, [#allocation6]
    $region41: #{tpu_custom_call.1} parent=1 // pred_fallthru
      _
    // Predicated region
    $region42: #{tpu_custom_call.1} parent=1 // pred_check
      _
    $region43: #{tpu_custom_call.1} parent=1 // pred_check_branch
      %75 = sbr.rel (0) target = $region45
    $region44: #{tpu_custom_call.1} parent=1 // pred_region
      _
    $region45: #{tpu_custom_call.1} parent=1 // pred_fallthru
      _
    // Predicated region
    $region46: #{tpu_custom_call.1} parent=1 // pred_check
      _
    $region47: #{tpu_custom_call.1} parent=1 // pred_check_branch
      %77 = sbr.rel (0) target = $region49
    $region48: #{tpu_custom_call.1} parent=1 // pred_region
      _
    $region49: #{tpu_custom_call.1} parent=1 // pred_fallthru
      _
    // Predicated region
    $region50: #{tpu_custom_call.1} parent=1 // pred_check
      _
    $region51: #{tpu_custom_call.1} parent=1 // pred_check_branch
      %79 = sbr.rel (0) target = $region53
    $region52: #{tpu_custom_call.1} parent=1 // pred_region
      _
    $region53: #{tpu_custom_call.1} parent=1 // pred_fallthru
      _
    // Predicated region
    $region54: #{tpu_custom_call.1} parent=1 // pred_check
      _
    $region55: #{tpu_custom_call.1} parent=1 // pred_check_branch
      %81 = sbr.rel (0) target = $region57
    $region56: #{tpu_custom_call.1} parent=1 // pred_region
      %s83 = ssub.s32 512, 512
      %84 = vsyncadd [#allocation9], %s83
      %s85 = sshll.u32 [#allocation8], 4
      %s86 = int_to_ptr.vmem [resolvable:$true] %s85
      %91 = dma.hbm_to_vmem [thread:$0]  %s13, 512, %s86, [#allocation9], 128, 128, 8
    $region57: #{tpu_custom_call.1} parent=1 // pred_fallthru
      _
    // Predicated region
    $region58: #{tpu_custom_call.1} parent=1 // pred_check
      _
    $region59: #{tpu_custom_call.1} parent=1 // pred_check_branch
      %93 = sbr.rel (0) target = $region61
    $region60: #{tpu_custom_call.1} parent=1 // pred_region
      %s95 = ssub.s32 512, 512
      %96 = vsyncadd [#allocation9], %s95
      %s97 = sshll.u32 [#allocation10], 4
      %s98 = int_to_ptr.vmem [resolvable:$true] %s97
      %103 = dma.hbm_to_vmem [thread:$0]  %s14, 512, %s98, [#allocation9], 128, 128, 8
    $region61: #{tpu_custom_call.1} parent=1 // pred_fallthru
      _
    // Predicated region
    $region62: #{tpu_custom_call.1} parent=1 // pred_check
      _
    $region63: #{tpu_custom_call.1} parent=1 // pred_check_branch
      %105 = sbr.rel (0) target = $region65
    $region64: #{tpu_custom_call.1} parent=1 // pred_region
      %106 = dma.done [#allocation3], 128
    $region65: #{tpu_custom_call.1} parent=1 // pred_fallthru
      _
    // Predicated region
    $region66: #{tpu_custom_call.1} parent=1 // pred_check
      _
    $region67: #{tpu_custom_call.1} parent=1 // pred_check_branch
      %108 = sbr.rel (0) target = $region69
    $region68: #{tpu_custom_call.1} parent=1 // pred_region
      %109 = dma.done [#allocation6], 16
    $region69: #{tpu_custom_call.1} parent=1 // pred_fallthru
      _
    // Predicated region
    $region70: #{tpu_custom_call.1} parent=1 // pred_check
      _
    $region71: #{tpu_custom_call.1} parent=1 // pred_check_branch
      %111 = sbr.rel (0) target = $region73
    $region72: #{tpu_custom_call.1} parent=1 // pred_region
      %112 = dma.done [#allocation6], 16
    $region73: #{tpu_custom_call.1} parent=1 // pred_fallthru
      _
    // Predicated region
    $region74: #{tpu_custom_call.1} parent=1 // pred_check
      _
    $region75: #{tpu_custom_call.1} parent=1 // pred_check_branch
      %114 = sbr.rel (0) target = $region77
    $region76: #{tpu_custom_call.1} parent=1 // pred_region
      %115 = dma.done [#allocation9], 512
    $region77: #{tpu_custom_call.1} parent=1 // pred_fallthru
      _
    // Predicated region
    $region78: #{tpu_custom_call.1} parent=1 // pred_check
      _
    $region79: #{tpu_custom_call.1} parent=1 // pred_check_branch
      %117 = sbr.rel (0) target = $region81
    $region80: #{tpu_custom_call.1} parent=1 // pred_region
      %118 = dma.done [#allocation9], 512
    $region81: #{tpu_custom_call.1} parent=1 // pred_fallthru
      _
    %v119 = vld [vmem:[#allocation2] sm:$0xff]
    %v120 = vlaneseq
    %v121 = vand.u32 %v120, 127
    %v122 = vlaneseq
    %v123 = vshrl.u32 %v122, 7
    %v124 = vsub.s32 0, %v123
    %v125 = vrot.slane %v119, %v124
    %127 = vbcast.lane.b32.xlu0 %v125, 256
    %v128 = vpop.permute.xlu0 %127
    %v129 = vlaneseq
    %v130 = vshrl.u32 %v129, 7
    %v131 = vsub.s32 1, %v130
    %v132 = vrot.slane %v119, %v131
    %134 = vbcast.lane.b32.xlu0 %v132, 256
    %v135 = vpop.permute.xlu0 %134
    %v136 = vlaneseq
    %v137 = vshrl.u32 %v136, 7
    %v138 = vsub.s32 2, %v137
    %v139 = vrot.slane %v119, %v138
    %141 = vbcast.lane.b32.xlu0 %v139, 256
    %v142 = vpop.permute.xlu0 %141
    %v143 = vlaneseq
    %v144 = vshrl.u32 %v143, 7
    %v145 = vsub.s32 3, %v144
    %v146 = vrot.slane %v119, %v145
    %148 = vbcast.lane.b32.xlu0 %v146, 256
    %v149 = vpop.permute.xlu0 %148
    %v150 = vlaneseq
    %v151 = vshrl.u32 %v150, 7
    %v152 = vsub.s32 4, %v151
    %v153 = vrot.slane %v119, %v152
    %155 = vbcast.lane.b32.xlu0 %v153, 256
    %v156 = vpop.permute.xlu0 %155
    %v157 = vlaneseq
    %v158 = vshrl.u32 %v157, 7
    %v159 = vsub.s32 5, %v158
    %v160 = vrot.slane %v119, %v159
    %162 = vbcast.lane.b32.xlu0 %v160, 256
    %v163 = vpop.permute.xlu0 %162
    %v164 = vlaneseq
    %v165 = vshrl.u32 %v164, 7
    %v166 = vsub.s32 6, %v165
    %v167 = vrot.slane %v119, %v166
    %169 = vbcast.lane.b32.xlu0 %v167, 256
    %v170 = vpop.permute.xlu0 %169
    %v171 = vlaneseq
    %v172 = vshrl.u32 %v171, 7
    %v173 = vsub.s32 7, %v172
    %v174 = vrot.slane %v119, %v173
    %176 = vbcast.lane.b32.xlu0 %v174, 256
    %v177 = vpop.permute.xlu0 %176
    %vm178 = vcmp.eq.s32.totalorder %v128, %v121
    %vm179 = vcmp.eq.s32.totalorder %v135, %v121
    %vm180 = vcmp.eq.s32.totalorder %v142, %v121
    %vm181 = vcmp.eq.s32.totalorder %v149, %v121
    %vm182 = vcmp.eq.s32.totalorder %v156, %v121
    %vm183 = vcmp.eq.s32.totalorder %v163, %v121
    %vm184 = vcmp.eq.s32.totalorder %v170, %v121
    %vm185 = vcmp.eq.s32.totalorder %v177, %v121
    %v186 = vsel %vm178, 1, 0
    %v187 = vsel %vm179, 1, 0
    %v188 = vsel %vm180, 1, 0
    %v189 = vsel %vm181, 1, 0
    %v190 = vsel %vm182, 1, 0
    %v191 = vsel %vm183, 1, 0
    %v192 = vsel %vm184, 1, 0
    %v193 = vsel %vm185, 1, 0
    %v194 = vcvt.s32.f32 %v186
    %v195 = vcvt.s32.f32 %v187
    %v196 = vcvt.s32.f32 %v188
    %v197 = vcvt.s32.f32 %v189
    %v198 = vcvt.s32.f32 %v190
    %v199 = vcvt.s32.f32 %v191
    %v200 = vcvt.s32.f32 %v192
    %v201 = vcvt.s32.f32 %v193
    %v202 = vld [vmem:[%s1] sm:$0xff]
    %v203 = vld [vmem:[%s1 + $0x8] sm:$0xff]
    %v204 = vld [vmem:[%s1 + $0x10] sm:$0xff]
    %v205 = vld [vmem:[%s1 + $0x18] sm:$0xff]
    %v206 = vld [vmem:[%s1 + $0x20] sm:$0xff]
    %v207 = vld [vmem:[%s1 + $0x28] sm:$0xff]
    %v208 = vld [vmem:[%s1 + $0x30] sm:$0xff]
    %v209 = vld [vmem:[%s1 + $0x38] sm:$0xff]
    %v210 = vld [vmem:[%s1 + $0x40] sm:$0xff]
    %v211 = vld [vmem:[%s1 + $0x48] sm:$0xff]
    %v212 = vld [vmem:[%s1 + $0x50] sm:$0xff]
    %v213 = vld [vmem:[%s1 + $0x58] sm:$0xff]
    %v214 = vld [vmem:[%s1 + $0x60] sm:$0xff]
    %v215 = vld [vmem:[%s1 + $0x68] sm:$0xff]
    %v216 = vld [vmem:[%s1 + $0x70] sm:$0xff]
    %v217 = vld [vmem:[%s1 + $0x78] sm:$0xff]
    %218 = vmatprep.subr.mxu0 0.0
    %219 = vmatpush1.msra.mxu0 %v202
    %220 = vmatprep.subr.mxu0 0.0
    %221 = vmatpush1.msra.mxu0 %v203
    %222 = vmatprep.subr.mxu0 0.0
    %223 = vmatpush1.msra.mxu0 %v204
    %224 = vmatprep.subr.mxu0 0.0
    %225 = vmatpush1.msra.mxu0 %v205
    %226 = vmatprep.subr.mxu0 0.0
    %227 = vmatpush1.msra.mxu0 %v206
    %228 = vmatprep.subr.mxu0 0.0
    %229 = vmatpush1.msra.mxu0 %v207
    %230 = vmatprep.subr.mxu0 0.0
    %231 = vmatpush1.msra.mxu0 %v208
    %232 = vmatprep.subr.mxu0 0.0
    %233 = vmatpush1.msra.mxu0 %v209
    %234 = vmatprep.subr.mxu0 0.0
    %235 = vmatpush1.msra.mxu0 %v210
    %236 = vmatprep.subr.mxu0 0.0
    %237 = vmatpush1.msra.mxu0 %v211
    %238 = vmatprep.subr.mxu0 0.0
    %239 = vmatpush1.msra.mxu0 %v212
    %240 = vmatprep.subr.mxu0 0.0
    %241 = vmatpush1.msra.mxu0 %v213
    %242 = vmatprep.subr.mxu0 0.0
    %243 = vmatpush1.msra.mxu0 %v214
    %244 = vmatprep.subr.mxu0 0.0
    %245 = vmatpush1.msra.mxu0 %v215
    %246 = vmatprep.subr.mxu0 0.0
    %247 = vmatpush1.msra.mxu0 %v216
    %248 = vmatprep.subr.mxu0 0.0
    %249 = vmatpush1.msra.mxu0 %v217
    %250 = vmatprep.subr.mxu0 0.0
    %251 = vmatpush1.msra.mxu0 0.0
    %252 = vmatprep.subr.mxu0 0.0
    %253 = vmatpush1.msra.mxu0 0.0
    %254 = vmatprep.subr.mxu0 0.0
    %255 = vmatpush1.msra.mxu0 0.0
    %256 = vmatprep.subr.mxu0 0.0
    %257 = vmatpush1.msra.mxu0 0.0
    %258 = vmatprep.subr.mxu0 0.0
    %259 = vmatpush1.msra.mxu0 0.0
    %260 = vmatprep.subr.mxu0 0.0
    %261 = vmatpush1.msra.mxu0 0.0
    %262 = vmatprep.subr.mxu0 0.0
    %263 = vmatpush1.msra.mxu0 0.0
    %264 = vmatprep.subr.mxu0 0.0
    %265 = vmatpush1.msra.mxu0 0.0
    %266 = vmatprep.subr.mxu0 0.0
    %267 = vmatpush1.msra.mxu0 0.0
    %268 = vmatprep.subr.mxu0 0.0
    %269 = vmatpush1.msra.mxu0 0.0
    %270 = vmatprep.subr.mxu0 0.0
    %271 = vmatpush1.msra.mxu0 0.0
    %272 = vmatprep.subr.mxu0 0.0
    %273 = vmatpush1.msra.mxu0 0.0
    %274 = vmatprep.subr.mxu0 0.0
    %275 = vmatpush1.msra.mxu0 0.0
    %276 = vmatprep.subr.mxu0 0.0
    %277 = vmatpush1.msra.mxu0 0.0
    %278 = vmatprep.subr.mxu0 0.0
    %279 = vmatpush1.msra.mxu0 0.0
    %280 = vmatprep.subr.mxu0 0.0
    %281 = vmatpush1.msra.mxu0 0.0
    %282 = vmatprep.mubr.f32.mxu0 0.0
    %283 = vmatmul.mubr.f32.gmra.mrb[0].mxu0 %v194
    %v284 = vpop.f32.mrb[0].mxu0
    %v285 = vadd.f32 0.0, %v284
    %v286 = vpop.f32.mrb[0].mxu0
    %287 = vmatprep.mubr.f32.mxu0 0.0
    %288 = vmatmul.mubr.f32.gmra.mrb[0].mxu0 %v195
    %v289 = vpop.f32.mrb[0].mxu0
    %v290 = vadd.f32 0.0, %v289
    %v291 = vpop.f32.mrb[0].mxu0
    %292 = vmatprep.mubr.f32.mxu0 0.0
    %293 = vmatmul.mubr.f32.gmra.mrb[0].mxu0 %v196
    %v294 = vpop.f32.mrb[0].mxu0
    %v295 = vadd.f32 0.0, %v294
    %v296 = vpop.f32.mrb[0].mxu0
    %297 = vmatprep.mubr.f32.mxu0 0.0
    %298 = vmatmul.mubr.f32.gmra.mrb[0].mxu0 %v197
    %v299 = vpop.f32.mrb[0].mxu0
    %v300 = vadd.f32 0.0, %v299
    %v301 = vpop.f32.mrb[0].mxu0
    %302 = vmatprep.mubr.f32.mxu0 0.0
    %303 = vmatmul.mubr.f32.gmra.mrb[0].mxu0 %v198
    %v304 = vpop.f32.mrb[0].mxu0
    %v305 = vadd.f32 0.0, %v304
    %v306 = vpop.f32.mrb[0].mxu0
    %307 = vmatprep.mubr.f32.mxu0 0.0
    %308 = vmatmul.mubr.f32.gmra.mrb[0].mxu0 %v199
    %v309 = vpop.f32.mrb[0].mxu0
    %v310 = vadd.f32 0.0, %v309
    %v311 = vpop.f32.mrb[0].mxu0
    %312 = vmatprep.mubr.f32.mxu0 0.0
    %313 = vmatmul.mubr.f32.gmra.mrb[0].mxu0 %v200
    %v314 = vpop.f32.mrb[0].mxu0
    %v315 = vadd.f32 0.0, %v314
    %v316 = vpop.f32.mrb[0].mxu0
    %317 = vmatprep.mubr.f32.mxu0 0.0
    %318 = vmatmul.mubr.f32.gmra.mrb[0].mxu0 %v201
    %v319 = vpop.f32.mrb[0].mxu0
    %v320 = vadd.f32 0.0, %v319
    %v321 = vpop.f32.mrb[0].mxu0
    %322 = vdwg.mxu0
    %v323 = vld [vmem:[%s2] sm:$0xff]
    %v324 = vld [vmem:[%s2 + $0x8] sm:$0xff]
    %v325 = vld [vmem:[%s2 + $0x10] sm:$0xff]
    %v326 = vld [vmem:[%s2 + $0x18] sm:$0xff]
    %v327 = vld [vmem:[%s4] sm:$0x1]
    %v329 = vlaneseq
    %v330 = vshrl.u32 %v329, 7
    %v331 = vsub.s32 0, %v330
    %v332 = vrot.slane %v327, %v331
    %vm334 = vcmask 261120
    %v336 = vsel %vm334, %v285, 0
    %v339 = vsel %vm334, %v290, 0
    %v342 = vsel %vm334, %v295, 0
    %v345 = vsel %vm334, %v300, 0
    %v348 = vsel %vm334, %v305, 0
    %v351 = vsel %vm334, %v310, 0
    %v354 = vsel %vm334, %v315, 0
    %v357 = vsel %vm334, %v320, 0
    %359 = vmatprep.subr.mxu0 0.0
    %360 = vmatpush1.msra.mxu0 %v323
    %361 = vmatprep.subr.mxu0 0.0
    %362 = vmatpush1.msra.mxu0 %v324
    %363 = vmatprep.subr.mxu0 0.0
    %364 = vmatpush1.msra.mxu0 %v325
    %365 = vmatprep.subr.mxu0 0.0
    %366 = vmatpush1.msra.mxu0 %v326
    %367 = vmatprep.subr.mxu0 0.0
    %368 = vmatpush1.msra.mxu0 0.0
    %369 = vmatprep.subr.mxu0 0.0
    %370 = vmatpush1.msra.mxu0 0.0
    %371 = vmatprep.subr.mxu0 0.0
    %372 = vmatpush1.msra.mxu0 0.0
    %373 = vmatprep.subr.mxu0 0.0
    %374 = vmatpush1.msra.mxu0 0.0
    %375 = vmatprep.subr.mxu0 0.0
    %376 = vmatpush1.msra.mxu0 0.0
    %377 = vmatprep.subr.mxu0 0.0
    %378 = vmatpush1.msra.mxu0 0.0
    %379 = vmatprep.subr.mxu0 0.0
    %380 = vmatpush1.msra.mxu0 0.0
    %381 = vmatprep.subr.mxu0 0.0
    %382 = vmatpush1.msra.mxu0 0.0
    %383 = vmatprep.subr.mxu0 0.0
    %384 = vmatpush1.msra.mxu0 0.0
    %385 = vmatprep.subr.mxu0 0.0
    %386 = vmatpush1.msra.mxu0 0.0
    %387 = vmatprep.subr.mxu0 0.0
    %388 = vmatpush1.msra.mxu0 0.0
    %389 = vmatprep.subr.mxu0 0.0
    %390 = vmatpush1.msra.mxu0 0.0
    %391 = vmatprep.subr.mxu0 0.0
    %392 = vmatpush1.msra.mxu0 0.0
    %393 = vmatprep.subr.mxu0 0.0
    %394 = vmatpush1.msra.mxu0 0.0
    %395 = vmatprep.subr.mxu0 0.0
    %396 = vmatpush1.msra.mxu0 0.0
    %397 = vmatprep.subr.mxu0 0.0
    %398 = vmatpush1.msra.mxu0 0.0
    %399 = vmatprep.subr.mxu0 0.0
    %400 = vmatpush1.msra.mxu0 0.0
    %401 = vmatprep.subr.mxu0 0.0
    %402 = vmatpush1.msra.mxu0 0.0
    %403 = vmatprep.subr.mxu0 0.0
    %404 = vmatpush1.msra.mxu0 0.0
    %405 = vmatprep.subr.mxu0 0.0
    %406 = vmatpush1.msra.mxu0 0.0
    %407 = vmatprep.subr.mxu0 0.0
    %408 = vmatpush1.msra.mxu0 0.0
    %409 = vmatprep.subr.mxu0 0.0
    %410 = vmatpush1.msra.mxu0 0.0
    %411 = vmatprep.subr.mxu0 0.0
    %412 = vmatpush1.msra.mxu0 0.0
    %413 = vmatprep.subr.mxu0 0.0
    %414 = vmatpush1.msra.mxu0 0.0
    %415 = vmatprep.subr.mxu0 0.0
    %416 = vmatpush1.msra.mxu0 0.0
    %417 = vmatprep.subr.mxu0 0.0
    %418 = vmatpush1.msra.mxu0 0.0
    %419 = vmatprep.subr.mxu0 0.0
    %420 = vmatpush1.msra.mxu0 0.0
    %421 = vmatprep.subr.mxu0 0.0
    %422 = vmatpush1.msra.mxu0 0.0
    %423 = vmatprep.mubr.f32.mxu0 0.0
    %424 = vmatmul.mubr.f32.gmra.mrb[0].mxu0 %v336
    %v425 = vpop.f32.mrb[0].mxu0
    %v426 = vadd.f32 %v332, %v425
    %v427 = vpop.f32.mrb[0].mxu0
    %428 = vmatprep.mubr.f32.mxu0 0.0
    %429 = vmatmul.mubr.f32.gmra.mrb[0].mxu0 %v339
    %v430 = vpop.f32.mrb[0].mxu0
    %v431 = vadd.f32 %v332, %v430
    %v432 = vpop.f32.mrb[0].mxu0
    %433 = vmatprep.mubr.f32.mxu0 0.0
    %434 = vmatmul.mubr.f32.gmra.mrb[0].mxu0 %v342
    %v435 = vpop.f32.mrb[0].mxu0
    %v436 = vadd.f32 %v332, %v435
    %v437 = vpop.f32.mrb[0].mxu0
    %438 = vmatprep.mubr.f32.mxu0 0.0
    %439 = vmatmul.mubr.f32.gmra.mrb[0].mxu0 %v345
    %v440 = vpop.f32.mrb[0].mxu0
    %v441 = vadd.f32 %v332, %v440
    %v442 = vpop.f32.mrb[0].mxu0
    %443 = vmatprep.mubr.f32.mxu0 0.0
    %444 = vmatmul.mubr.f32.gmra.mrb[0].mxu0 %v348
    %v445 = vpop.f32.mrb[0].mxu0
    %v446 = vadd.f32 %v332, %v445
    %v447 = vpop.f32.mrb[0].mxu0
    %448 = vmatprep.mubr.f32.mxu0 0.0
    %449 = vmatmul.mubr.f32.gmra.mrb[0].mxu0 %v351
    %v450 = vpop.f32.mrb[0].mxu0
    %v451 = vadd.f32 %v332, %v450
    %v452 = vpop.f32.mrb[0].mxu0
    %453 = vmatprep.mubr.f32.mxu0 0.0
    %454 = vmatmul.mubr.f32.gmra.mrb[0].mxu0 %v354
    %v455 = vpop.f32.mrb[0].mxu0
    %v456 = vadd.f32 %v332, %v455
    %v457 = vpop.f32.mrb[0].mxu0
    %458 = vmatprep.mubr.f32.mxu0 0.0
    %459 = vmatmul.mubr.f32.gmra.mrb[0].mxu0 %v357
    %v460 = vpop.f32.mrb[0].mxu0
    %v461 = vadd.f32 %v332, %v460
    %v462 = vpop.f32.mrb[0].mxu0
    %463 = vdwg.mxu0
    %v464 = vld [vmem:[%s6] sm:$0xff]
    %v465 = vld [vmem:[%s6 + $0x8] sm:$0xff]
    %v466 = vld [vmem:[%s6 + $0x10] sm:$0xff]
    %v467 = vld [vmem:[%s6 + $0x18] sm:$0xff]
    %v468 = vld [vmem:[#allocation5] sm:$0x1]
    %v470 = vlaneseq
    %v471 = vshrl.u32 %v470, 7
    %v472 = vsub.s32 0, %v471
    %v473 = vrot.slane %v468, %v472
    %475 = vmatprep.subr.mxu0 0.0
    %476 = vmatpush1.msra.mxu0 %v464
    %477 = vmatprep.subr.mxu0 0.0
    %478 = vmatpush1.msra.mxu0 %v465
    %479 = vmatprep.subr.mxu0 0.0
    %480 = vmatpush1.msra.mxu0 %v466
    %481 = vmatprep.subr.mxu0 0.0
    %482 = vmatpush1.msra.mxu0 %v467
    %483 = vmatprep.subr.mxu0 0.0
    %484 = vmatpush1.msra.mxu0 0.0
    %485 = vmatprep.subr.mxu0 0.0
    %486 = vmatpush1.msra.mxu0 0.0
    %487 = vmatprep.subr.mxu0 0.0
    %488 = vmatpush1.msra.mxu0 0.0
    %489 = vmatprep.subr.mxu0 0.0
    %490 = vmatpush1.msra.mxu0 0.0
    %491 = vmatprep.subr.mxu0 0.0
    %492 = vmatpush1.msra.mxu0 0.0
    %493 = vmatprep.subr.mxu0 0.0
    %494 = vmatpush1.msra.mxu0 0.0
    %495 = vmatprep.subr.mxu0 0.0
    %496 = vmatpush1.msra.mxu0 0.0
    %497 = vmatprep.subr.mxu0 0.0
    %498 = vmatpush1.msra.mxu0 0.0
    %499 = vmatprep.subr.mxu0 0.0
    %500 = vmatpush1.msra.mxu0 0.0
    %501 = vmatprep.subr.mxu0 0.0
    %502 = vmatpush1.msra.mxu0 0.0
    %503 = vmatprep.subr.mxu0 0.0
    %504 = vmatpush1.msra.mxu0 0.0
    %505 = vmatprep.subr.mxu0 0.0
    %506 = vmatpush1.msra.mxu0 0.0
    %507 = vmatprep.subr.mxu0 0.0
    %508 = vmatpush1.msra.mxu0 0.0
    %509 = vmatprep.subr.mxu0 0.0
    %510 = vmatpush1.msra.mxu0 0.0
    %511 = vmatprep.subr.mxu0 0.0
    %512 = vmatpush1.msra.mxu0 0.0
    %513 = vmatprep.subr.mxu0 0.0
    %514 = vmatpush1.msra.mxu0 0.0
    %515 = vmatprep.subr.mxu0 0.0
    %516 = vmatpush1.msra.mxu0 0.0
    %517 = vmatprep.subr.mxu0 0.0
    %518 = vmatpush1.msra.mxu0 0.0
    %519 = vmatprep.subr.mxu0 0.0
    %520 = vmatpush1.msra.mxu0 0.0
    %521 = vmatprep.subr.mxu0 0.0
    %522 = vmatpush1.msra.mxu0 0.0
    %523 = vmatprep.subr.mxu0 0.0
    %524 = vmatpush1.msra.mxu0 0.0
    %525 = vmatprep.subr.mxu0 0.0
    %526 = vmatpush1.msra.mxu0 0.0
    %527 = vmatprep.subr.mxu0 0.0
    %528 = vmatpush1.msra.mxu0 0.0
    %529 = vmatprep.subr.mxu0 0.0
    %530 = vmatpush1.msra.mxu0 0.0
    %531 = vmatprep.subr.mxu0 0.0
    %532 = vmatpush1.msra.mxu0 0.0
    %533 = vmatprep.subr.mxu0 0.0
    %534 = vmatpush1.msra.mxu0 0.0
    %535 = vmatprep.subr.mxu0 0.0
    %536 = vmatpush1.msra.mxu0 0.0
    %537 = vmatprep.subr.mxu0 0.0
    %538 = vmatpush1.msra.mxu0 0.0
    %539 = vmatprep.mubr.f32.mxu0 0.0
    %540 = vmatmul.mubr.f32.gmra.mrb[0].mxu0 %v336
    %v541 = vpop.f32.mrb[0].mxu0
    %v542 = vadd.f32 %v473, %v541
    %v543 = vpop.f32.mrb[0].mxu0
    %544 = vmatprep.mubr.f32.mxu0 0.0
    %545 = vmatmul.mubr.f32.gmra.mrb[0].mxu0 %v339
    %v546 = vpop.f32.mrb[0].mxu0
    %v547 = vadd.f32 %v473, %v546
    %v548 = vpop.f32.mrb[0].mxu0
    %549 = vmatprep.mubr.f32.mxu0 0.0
    %550 = vmatmul.mubr.f32.gmra.mrb[0].mxu0 %v342
    %v551 = vpop.f32.mrb[0].mxu0
    %v552 = vadd.f32 %v473, %v551
    %v553 = vpop.f32.mrb[0].mxu0
    %554 = vmatprep.mubr.f32.mxu0 0.0
    %555 = vmatmul.mubr.f32.gmra.mrb[0].mxu0 %v345
    %v556 = vpop.f32.mrb[0].mxu0
    %v557 = vadd.f32 %v473, %v556
    %v558 = vpop.f32.mrb[0].mxu0
    %559 = vmatprep.mubr.f32.mxu0 0.0
    %560 = vmatmul.mubr.f32.gmra.mrb[0].mxu0 %v348
    %v561 = vpop.f32.mrb[0].mxu0
    %v562 = vadd.f32 %v473, %v561
    %v563 = vpop.f32.mrb[0].mxu0
    %564 = vmatprep.mubr.f32.mxu0 0.0
    %565 = vmatmul.mubr.f32.gmra.mrb[0].mxu0 %v351
    %v566 = vpop.f32.mrb[0].mxu0
    %v567 = vadd.f32 %v473, %v566
    %v568 = vpop.f32.mrb[0].mxu0
    %569 = vmatprep.mubr.f32.mxu0 0.0
    %570 = vmatmul.mubr.f32.gmra.mrb[0].mxu0 %v354
    %v571 = vpop.f32.mrb[0].mxu0
    %v572 = vadd.f32 %v473, %v571
    %v573 = vpop.f32.mrb[0].mxu0
    %574 = vmatprep.mubr.f32.mxu0 0.0
    %575 = vmatmul.mubr.f32.gmra.mrb[0].mxu0 %v357
    %v576 = vpop.f32.mrb[0].mxu0
    %v577 = vadd.f32 %v473, %v576
    %v578 = vpop.f32.mrb[0].mxu0
    %579 = vdwg.mxu0
    %v580 = vld [vmem:[%s5] sm:$0x1]
    %v582 = vlaneseq
    %v583 = vshrl.u32 %v582, 7
    %v584 = vsub.s32 0, %v583
    %v585 = vrot.slane %v580, %v584
    %v587 = vld [vmem:[#allocation7] sm:$0x1]
    %v589 = vlaneseq
    %v590 = vshrl.u32 %v589, 7
    %v591 = vsub.s32 0, %v590
    %v592 = vrot.slane %v587, %v591
    %v594 = vld [vmem:[%s3] sm:$0xff]
    %v595 = vld [vmem:[%s3 + $0x8] sm:$0xff]
    %v596 = vld [vmem:[%s3 + $0x10] sm:$0xff]
    %v597 = vld [vmem:[%s3 + $0x18] sm:$0xff]
    %v599 = vsel %vm334, 0.0, 0
    %601 = vmatprep.subr.mxu0 0.0
    %602 = vmatpush1.msra.mxu0 %v594
    %603 = vmatprep.subr.mxu0 0.0
    %604 = vmatpush1.msra.mxu0 %v595
    %605 = vmatprep.subr.mxu0 0.0
    %606 = vmatpush1.msra.mxu0 %v596
    %607 = vmatprep.subr.mxu0 0.0
    %608 = vmatpush1.msra.mxu0 %v597
    %609 = vmatprep.subr.mxu0 0.0
    %610 = vmatpush1.msra.mxu0 0.0
    %611 = vmatprep.subr.mxu0 0.0
    %612 = vmatpush1.msra.mxu0 0.0
    %613 = vmatprep.subr.mxu0 0.0
    %614 = vmatpush1.msra.mxu0 0.0
    %615 = vmatprep.subr.mxu0 0.0
    %616 = vmatpush1.msra.mxu0 0.0
    %617 = vmatprep.subr.mxu0 0.0
    %618 = vmatpush1.msra.mxu0 0.0
    %619 = vmatprep.subr.mxu0 0.0
    %620 = vmatpush1.msra.mxu0 0.0
    %621 = vmatprep.subr.mxu0 0.0
    %622 = vmatpush1.msra.mxu0 0.0
    %623 = vmatprep.subr.mxu0 0.0
    %624 = vmatpush1.msra.mxu0 0.0
    %625 = vmatprep.subr.mxu0 0.0
    %626 = vmatpush1.msra.mxu0 0.0
    %627 = vmatprep.subr.mxu0 0.0
    %628 = vmatpush1.msra.mxu0 0.0
    %629 = vmatprep.subr.mxu0 0.0
    %630 = vmatpush1.msra.mxu0 0.0
    %631 = vmatprep.subr.mxu0 0.0
    %632 = vmatpush1.msra.mxu0 0.0
    %633 = vmatprep.subr.mxu0 0.0
    %634 = vmatpush1.msra.mxu0 0.0
    %635 = vmatprep.subr.mxu0 0.0
    %636 = vmatpush1.msra.mxu0 0.0
    %637 = vmatprep.subr.mxu0 0.0
    %638 = vmatpush1.msra.mxu0 0.0
    %639 = vmatprep.subr.mxu0 0.0
    %640 = vmatpush1.msra.mxu0 0.0
    %641 = vmatprep.subr.mxu0 0.0
    %642 = vmatpush1.msra.mxu0 0.0
    %643 = vmatprep.subr.mxu0 0.0
    %644 = vmatpush1.msra.mxu0 0.0
    %645 = vmatprep.subr.mxu0 0.0
    %646 = vmatpush1.msra.mxu0 0.0
    %647 = vmatprep.subr.mxu0 0.0
    %648 = vmatpush1.msra.mxu0 0.0
    %649 = vmatprep.subr.mxu0 0.0
    %650 = vmatpush1.msra.mxu0 0.0
    %651 = vmatprep.subr.mxu0 0.0
    %652 = vmatpush1.msra.mxu0 0.0
    %653 = vmatprep.subr.mxu0 0.0
    %654 = vmatpush1.msra.mxu0 0.0
    %655 = vmatprep.subr.mxu0 0.0
    %656 = vmatpush1.msra.mxu0 0.0
    %657 = vmatprep.subr.mxu0 0.0
    %658 = vmatpush1.msra.mxu0 0.0
    %659 = vmatprep.subr.mxu0 0.0
    %660 = vmatpush1.msra.mxu0 0.0
    %661 = vmatprep.subr.mxu0 0.0
    %662 = vmatpush1.msra.mxu0 0.0
    %663 = vmatprep.subr.mxu0 0.0
    %664 = vmatpush1.msra.mxu0 0.0
    %665 = vmatprep.mubr.f32.mxu0 0.0
    %666 = vmatmul.mubr.f32.gmra.mrb[0].mxu0 %v599
    %v667 = vpop.f32.mrb[0].mxu0
    %v668 = vadd.f32 %v585, %v667
    %v669 = vpop.f32.mrb[0].mxu0
    %670 = vdwg.mxu0
    %v671 = vadd.f32 %v426, %v668
    %v672 = vxor.u32 %v671, 2147483648
    %v673 = vmul.f32 %v672, 1.442695
    %v674 = vpow.pop %v673
    %v675 = vadd.f32 %v674, 1.0
    %v676 = vrcp.pop %v675
    %v677 = vmul.f32 1.0, %v676
    %679 = vrot.lane.b32.xlu0 %v668, 64
    %v680 = vpop.permute.xlu0 %679
    %v682 = vmul.f32 %v677, %v680
    %684 = vrot.lane.b32.xlu0 %v682, 64
    %v685 = vpop.permute.xlu0 %684
    %v687 = vadd.f32 %v426, %v685
    %v688 = vtanh.pop %v687
    %v689 = vsub.f32 1.0, %v677
    %691 = vrot.lane.b32.xlu0 %v688, 96
    %v692 = vpop.permute.xlu0 %691
    %v694 = vmul.f32 %v689, %v692
    %v695 = vmul.f32 %v677, 0.0
    %v696 = vadd.f32 %v694, %v695
    %698 = vrot.lane.b32.xlu0 %v696, 96
    %v699 = vpop.permute.xlu0 %698
    %701 = vst.msk [vmem:[#allocation11] sm:$0xff] %vm334, %v699
    %v702 = vld [vmem:[%s3] sm:$0xff]
    %v703 = vld [vmem:[%s3 + $0x8] sm:$0xff]
    %v704 = vld [vmem:[%s3 + $0x10] sm:$0xff]
    %v705 = vld [vmem:[%s3 + $0x18] sm:$0xff]
    %v706 = vsel %vm334, %v699, 0
    %708 = vmatprep.subr.mxu0 0.0
    %709 = vmatpush1.msra.mxu0 %v702
    %710 = vmatprep.subr.mxu0 0.0
    %711 = vmatpush1.msra.mxu0 %v703
    %712 = vmatprep.subr.mxu0 0.0
    %713 = vmatpush1.msra.mxu0 %v704
    %714 = vmatprep.subr.mxu0 0.0
    %715 = vmatpush1.msra.mxu0 %v705
    %716 = vmatprep.subr.mxu0 0.0
    %717 = vmatpush1.msra.mxu0 0.0
    %718 = vmatprep.subr.mxu0 0.0
    %719 = vmatpush1.msra.mxu0 0.0
    %720 = vmatprep.subr.mxu0 0.0
    %721 = vmatpush1.msra.mxu0 0.0
    %722 = vmatprep.subr.mxu0 0.0
    %723 = vmatpush1.msra.mxu0 0.0
    %724 = vmatprep.subr.mxu0 0.0
    %725 = vmatpush1.msra.mxu0 0.0
    %726 = vmatprep.subr.mxu0 0.0
    %727 = vmatpush1.msra.mxu0 0.0
    %728 = vmatprep.subr.mxu0 0.0
    %729 = vmatpush1.msra.mxu0 0.0
    %730 = vmatprep.subr.mxu0 0.0
    %731 = vmatpush1.msra.mxu0 0.0
    %732 = vmatprep.subr.mxu0 0.0
    %733 = vmatpush1.msra.mxu0 0.0
    %734 = vmatprep.subr.mxu0 0.0
    %735 = vmatpush1.msra.mxu0 0.0
    %736 = vmatprep.subr.mxu0 0.0
    %737 = vmatpush1.msra.mxu0 0.0
    %738 = vmatprep.subr.mxu0 0.0
    %739 = vmatpush1.msra.mxu0 0.0
    %740 = vmatprep.subr.mxu0 0.0
    %741 = vmatpush1.msra.mxu0 0.0
    %742 = vmatprep.subr.mxu0 0.0
    %743 = vmatpush1.msra.mxu0 0.0
    %744 = vmatprep.subr.mxu0 0.0
    %745 = vmatpush1.msra.mxu0 0.0
    %746 = vmatprep.subr.mxu0 0.0
    %747 = vmatpush1.msra.mxu0 0.0
    %748 = vmatprep.subr.mxu0 0.0
    %749 = vmatpush1.msra.mxu0 0.0
    %750 = vmatprep.subr.mxu0 0.0
    %751 = vmatpush1.msra.mxu0 0.0
    %752 = vmatprep.subr.mxu0 0.0
    %753 = vmatpush1.msra.mxu0 0.0
    %754 = vmatprep.subr.mxu0 0.0
    %755 = vmatpush1.msra.mxu0 0.0
    %756 = vmatprep.subr.mxu0 0.0
    %757 = vmatpush1.msra.mxu0 0.0
    %758 = vmatprep.subr.mxu0 0.0
    %759 = vmatpush1.msra.mxu0 0.0
    %760 = vmatprep.subr.mxu0 0.0
    %761 = vmatpush1.msra.mxu0 0.0
    %762 = vmatprep.subr.mxu0 0.0
    %763 = vmatpush1.msra.mxu0 0.0
    %764 = vmatprep.subr.mxu0 0.0
    %765 = vmatpush1.msra.mxu0 0.0
    %766 = vmatprep.subr.mxu0 0.0
    %767 = vmatpush1.msra.mxu0 0.0
    %768 = vmatprep.subr.mxu0 0.0
    %769 = vmatpush1.msra.mxu0 0.0
    %770 = vmatprep.subr.mxu0 0.0
    %771 = vmatpush1.msra.mxu0 0.0
    %772 = vmatprep.mubr.f32.mxu0 0.0
    %773 = vmatmul.mubr.f32.gmra.mrb[0].mxu0 %v706
    %v774 = vpop.f32.mrb[0].mxu0
    %v775 = vadd.f32 %v585, %v774
    %v776 = vpop.f32.mrb[0].mxu0
    %777 = vdwg.mxu0
    %v778 = vadd.f32 %v431, %v775
    %v779 = vxor.u32 %v778, 2147483648
    %v780 = vmul.f32 %v779, 1.442695
    %v781 = vpow.pop %v780
    %v782 = vadd.f32 %v781, 1.0
    %v783 = vrcp.pop %v782
    %v784 = vmul.f32 1.0, %v783
    %786 = vrot.lane.b32.xlu0 %v775, 64
    %v787 = vpop.permute.xlu0 %786
    %v789 = vmul.f32 %v784, %v787
    %791 = vrot.lane.b32.xlu0 %v789, 64
    %v792 = vpop.permute.xlu0 %791
    %v794 = vadd.f32 %v431, %v792
    %v795 = vtanh.pop %v794
    %v796 = vsub.f32 1.0, %v784
    %798 = vrot.lane.b32.xlu0 %v795, 96
    %v799 = vpop.permute.xlu0 %798
    %v801 = vmul.f32 %v796, %v799
    %v802 = vmul.f32 %v784, %v696
    %v803 = vadd.f32 %v801, %v802
    %805 = vrot.lane.b32.xlu0 %v803, 96
    %v806 = vpop.permute.xlu0 %805
    %s808 = scalar_lea.vmem [#allocation11], 8
    %809 = vst.msk [vmem:[%s808] sm:$0xff] %vm334, %v806
    %v810 = vld [vmem:[%s3] sm:$0xff]
    %v811 = vld [vmem:[%s3 + $0x8] sm:$0xff]
    %v812 = vld [vmem:[%s3 + $0x10] sm:$0xff]
    %v813 = vld [vmem:[%s3 + $0x18] sm:$0xff]
    %v814 = vsel %vm334, %v806, 0
    %816 = vmatprep.subr.mxu0 0.0
    %817 = vmatpush1.msra.mxu0 %v810
    %818 = vmatprep.subr.mxu0 0.0
    %819 = vmatpush1.msra.mxu0 %v811
    %820 = vmatprep.subr.mxu0 0.0
    %821 = vmatpush1.msra.mxu0 %v812
    %822 = vmatprep.subr.mxu0 0.0
    %823 = vmatpush1.msra.mxu0 %v813
    %824 = vmatprep.subr.mxu0 0.0
    %825 = vmatpush1.msra.mxu0 0.0
    %826 = vmatprep.subr.mxu0 0.0
    %827 = vmatpush1.msra.mxu0 0.0
    %828 = vmatprep.subr.mxu0 0.0
    %829 = vmatpush1.msra.mxu0 0.0
    %830 = vmatprep.subr.mxu0 0.0
    %831 = vmatpush1.msra.mxu0 0.0
    %832 = vmatprep.subr.mxu0 0.0
    %833 = vmatpush1.msra.mxu0 0.0
    %834 = vmatprep.subr.mxu0 0.0
    %835 = vmatpush1.msra.mxu0 0.0
    %836 = vmatprep.subr.mxu0 0.0
    %837 = vmatpush1.msra.mxu0 0.0
    %838 = vmatprep.subr.mxu0 0.0
    %839 = vmatpush1.msra.mxu0 0.0
    %840 = vmatprep.subr.mxu0 0.0
    %841 = vmatpush1.msra.mxu0 0.0
    %842 = vmatprep.subr.mxu0 0.0
    %843 = vmatpush1.msra.mxu0 0.0
    %844 = vmatprep.subr.mxu0 0.0
    %845 = vmatpush1.msra.mxu0 0.0
    %846 = vmatprep.subr.mxu0 0.0
    %847 = vmatpush1.msra.mxu0 0.0
    %848 = vmatprep.subr.mxu0 0.0
    %849 = vmatpush1.msra.mxu0 0.0
    %850 = vmatprep.subr.mxu0 0.0
    %851 = vmatpush1.msra.mxu0 0.0
    %852 = vmatprep.subr.mxu0 0.0
    %853 = vmatpush1.msra.mxu0 0.0
    %854 = vmatprep.subr.mxu0 0.0
    %855 = vmatpush1.msra.mxu0 0.0
    %856 = vmatprep.subr.mxu0 0.0
    %857 = vmatpush1.msra.mxu0 0.0
    %858 = vmatprep.subr.mxu0 0.0
    %859 = vmatpush1.msra.mxu0 0.0
    %860 = vmatprep.subr.mxu0 0.0
    %861 = vmatpush1.msra.mxu0 0.0
    %862 = vmatprep.subr.mxu0 0.0
    %863 = vmatpush1.msra.mxu0 0.0
    %864 = vmatprep.subr.mxu0 0.0
    %865 = vmatpush1.msra.mxu0 0.0
    %866 = vmatprep.subr.mxu0 0.0
    %867 = vmatpush1.msra.mxu0 0.0
    %868 = vmatprep.subr.mxu0 0.0
    %869 = vmatpush1.msra.mxu0 0.0
    %870 = vmatprep.subr.mxu0 0.0
    %871 = vmatpush1.msra.mxu0 0.0
    %872 = vmatprep.subr.mxu0 0.0
    %873 = vmatpush1.msra.mxu0 0.0
    %874 = vmatprep.subr.mxu0 0.0
    %875 = vmatpush1.msra.mxu0 0.0
    %876 = vmatprep.subr.mxu0 0.0
    %877 = vmatpush1.msra.mxu0 0.0
    %878 = vmatprep.subr.mxu0 0.0
    %879 = vmatpush1.msra.mxu0 0.0
    %880 = vmatprep.mubr.f32.mxu0 0.0
    %881 = vmatmul.mubr.f32.gmra.mrb[0].mxu0 %v814
    %v882 = vpop.f32.mrb[0].mxu0
    %v883 = vadd.f32 %v585, %v882
    %v884 = vpop.f32.mrb[0].mxu0
    %885 = vdwg.mxu0
    %v886 = vadd.f32 %v436, %v883
    %v887 = vxor.u32 %v886, 2147483648
    %v888 = vmul.f32 %v887, 1.442695
    %v889 = vpow.pop %v888
    %v890 = vadd.f32 %v889, 1.0
    %v891 = vrcp.pop %v890
    %v892 = vmul.f32 1.0, %v891
    %894 = vrot.lane.b32.xlu0 %v883, 64
    %v895 = vpop.permute.xlu0 %894
    %v897 = vmul.f32 %v892, %v895
    %899 = vrot.lane.b32.xlu0 %v897, 64
    %v900 = vpop.permute.xlu0 %899
    %v902 = vadd.f32 %v436, %v900
    %v903 = vtanh.pop %v902
    %v904 = vsub.f32 1.0, %v892
    %906 = vrot.lane.b32.xlu0 %v903, 96
    %v907 = vpop.permute.xlu0 %906
    %v909 = vmul.f32 %v904, %v907
    %v910 = vmul.f32 %v892, %v803
    %v911 = vadd.f32 %v909, %v910
    %913 = vrot.lane.b32.xlu0 %v911, 96
    %v914 = vpop.permute.xlu0 %913
    %s916 = scalar_lea.vmem [#allocation11], 16
    %917 = vst.msk [vmem:[%s916] sm:$0xff] %vm334, %v914
    %v918 = vld [vmem:[%s3] sm:$0xff]
    %v919 = vld [vmem:[%s3 + $0x8] sm:$0xff]
    %v920 = vld [vmem:[%s3 + $0x10] sm:$0xff]
    %v921 = vld [vmem:[%s3 + $0x18] sm:$0xff]
    %v922 = vsel %vm334, %v914, 0
    %924 = vmatprep.subr.mxu0 0.0
    %925 = vmatpush1.msra.mxu0 %v918
    %926 = vmatprep.subr.mxu0 0.0
    %927 = vmatpush1.msra.mxu0 %v919
    %928 = vmatprep.subr.mxu0 0.0
    %929 = vmatpush1.msra.mxu0 %v920
    %930 = vmatprep.subr.mxu0 0.0
    %931 = vmatpush1.msra.mxu0 %v921
    %932 = vmatprep.subr.mxu0 0.0
    %933 = vmatpush1.msra.mxu0 0.0
    %934 = vmatprep.subr.mxu0 0.0
    %935 = vmatpush1.msra.mxu0 0.0
    %936 = vmatprep.subr.mxu0 0.0
    %937 = vmatpush1.msra.mxu0 0.0
    %938 = vmatprep.subr.mxu0 0.0
    %939 = vmatpush1.msra.mxu0 0.0
    %940 = vmatprep.subr.mxu0 0.0
    %941 = vmatpush1.msra.mxu0 0.0
    %942 = vmatprep.subr.mxu0 0.0
    %943 = vmatpush1.msra.mxu0 0.0
    %944 = vmatprep.subr.mxu0 0.0
    %945 = vmatpush1.msra.mxu0 0.0
    %946 = vmatprep.subr.mxu0 0.0
    %947 = vmatpush1.msra.mxu0 0.0
    %948 = vmatprep.subr.mxu0 0.0
    %949 = vmatpush1.msra.mxu0 0.0
    %950 = vmatprep.subr.mxu0 0.0
    %951 = vmatpush1.msra.mxu0 0.0
    %952 = vmatprep.subr.mxu0 0.0
    %953 = vmatpush1.msra.mxu0 0.0
    %954 = vmatprep.subr.mxu0 0.0
    %955 = vmatpush1.msra.mxu0 0.0
    %956 = vmatprep.subr.mxu0 0.0
    %957 = vmatpush1.msra.mxu0 0.0
    %958 = vmatprep.subr.mxu0 0.0
    %959 = vmatpush1.msra.mxu0 0.0
    %960 = vmatprep.subr.mxu0 0.0
    %961 = vmatpush1.msra.mxu0 0.0
    %962 = vmatprep.subr.mxu0 0.0
    %963 = vmatpush1.msra.mxu0 0.0
    %964 = vmatprep.subr.mxu0 0.0
    %965 = vmatpush1.msra.mxu0 0.0
    %966 = vmatprep.subr.mxu0 0.0
    %967 = vmatpush1.msra.mxu0 0.0
    %968 = vmatprep.subr.mxu0 0.0
    %969 = vmatpush1.msra.mxu0 0.0
    %970 = vmatprep.subr.mxu0 0.0
    %971 = vmatpush1.msra.mxu0 0.0
    %972 = vmatprep.subr.mxu0 0.0
    %973 = vmatpush1.msra.mxu0 0.0
    %974 = vmatprep.subr.mxu0 0.0
    %975 = vmatpush1.msra.mxu0 0.0
    %976 = vmatprep.subr.mxu0 0.0
    %977 = vmatpush1.msra.mxu0 0.0
    %978 = vmatprep.subr.mxu0 0.0
    %979 = vmatpush1.msra.mxu0 0.0
    %980 = vmatprep.subr.mxu0 0.0
    %981 = vmatpush1.msra.mxu0 0.0
    %982 = vmatprep.subr.mxu0 0.0
    %983 = vmatpush1.msra.mxu0 0.0
    %984 = vmatprep.subr.mxu0 0.0
    %985 = vmatpush1.msra.mxu0 0.0
    %986 = vmatprep.subr.mxu0 0.0
    %987 = vmatpush1.msra.mxu0 0.0
    %988 = vmatprep.mubr.f32.mxu0 0.0
    %989 = vmatmul.mubr.f32.gmra.mrb[0].mxu0 %v922
    %v990 = vpop.f32.mrb[0].mxu0
    %v991 = vadd.f32 %v585, %v990
    %v992 = vpop.f32.mrb[0].mxu0
    %993 = vdwg.mxu0
    %v994 = vadd.f32 %v441, %v991
    %v995 = vxor.u32 %v994, 2147483648
    %v996 = vmul.f32 %v995, 1.442695
    %v997 = vpow.pop %v996
    %v998 = vadd.f32 %v997, 1.0
    %v999 = vrcp.pop %v998
    %v1000 = vmul.f32 1.0, %v999
    %1002 = vrot.lane.b32.xlu0 %v991, 64
    %v1003 = vpop.permute.xlu0 %1002
    %v1005 = vmul.f32 %v1000, %v1003
    %1007 = vrot.lane.b32.xlu0 %v1005, 64
    %v1008 = vpop.permute.xlu0 %1007
    %v1010 = vadd.f32 %v441, %v1008
    %v1011 = vtanh.pop %v1010
    %v1012 = vsub.f32 1.0, %v1000
    %1014 = vrot.lane.b32.xlu0 %v1011, 96
    %v1015 = vpop.permute.xlu0 %1014
    %v1017 = vmul.f32 %v1012, %v1015
    %v1018 = vmul.f32 %v1000, %v911
    %v1019 = vadd.f32 %v1017, %v1018
    %1021 = vrot.lane.b32.xlu0 %v1019, 96
    %v1022 = vpop.permute.xlu0 %1021
    %s1024 = scalar_lea.vmem [#allocation11], 24
    %1025 = vst.msk [vmem:[%s1024] sm:$0xff] %vm334, %v1022
    %v1026 = vld [vmem:[%s3] sm:$0xff]
    %v1027 = vld [vmem:[%s3 + $0x8] sm:$0xff]
    %v1028 = vld [vmem:[%s3 + $0x10] sm:$0xff]
    %v1029 = vld [vmem:[%s3 + $0x18] sm:$0xff]
    %v1030 = vsel %vm334, %v1022, 0
    %1032 = vmatprep.subr.mxu0 0.0
    %1033 = vmatpush1.msra.mxu0 %v1026
    %1034 = vmatprep.subr.mxu0 0.0
    %1035 = vmatpush1.msra.mxu0 %v1027
    %1036 = vmatprep.subr.mxu0 0.0
    %1037 = vmatpush1.msra.mxu0 %v1028
    %1038 = vmatprep.subr.mxu0 0.0
    %1039 = vmatpush1.msra.mxu0 %v1029
    %1040 = vmatprep.subr.mxu0 0.0
    %1041 = vmatpush1.msra.mxu0 0.0
    %1042 = vmatprep.subr.mxu0 0.0
    %1043 = vmatpush1.msra.mxu0 0.0
    %1044 = vmatprep.subr.mxu0 0.0
    %1045 = vmatpush1.msra.mxu0 0.0
    %1046 = vmatprep.subr.mxu0 0.0
    %1047 = vmatpush1.msra.mxu0 0.0
    %1048 = vmatprep.subr.mxu0 0.0
    %1049 = vmatpush1.msra.mxu0 0.0
    %1050 = vmatprep.subr.mxu0 0.0
    %1051 = vmatpush1.msra.mxu0 0.0
    %1052 = vmatprep.subr.mxu0 0.0
    %1053 = vmatpush1.msra.mxu0 0.0
    %1054 = vmatprep.subr.mxu0 0.0
    %1055 = vmatpush1.msra.mxu0 0.0
    %1056 = vmatprep.subr.mxu0 0.0
    %1057 = vmatpush1.msra.mxu0 0.0
    %1058 = vmatprep.subr.mxu0 0.0
    %1059 = vmatpush1.msra.mxu0 0.0
    %1060 = vmatprep.subr.mxu0 0.0
    %1061 = vmatpush1.msra.mxu0 0.0
    %1062 = vmatprep.subr.mxu0 0.0
    %1063 = vmatpush1.msra.mxu0 0.0
    %1064 = vmatprep.subr.mxu0 0.0
    %1065 = vmatpush1.msra.mxu0 0.0
    %1066 = vmatprep.subr.mxu0 0.0
    %1067 = vmatpush1.msra.mxu0 0.0
    %1068 = vmatprep.subr.mxu0 0.0
    %1069 = vmatpush1.msra.mxu0 0.0
    %1070 = vmatprep.subr.mxu0 0.0
    %1071 = vmatpush1.msra.mxu0 0.0
    %1072 = vmatprep.subr.mxu0 0.0
    %1073 = vmatpush1.msra.mxu0 0.0
    %1074 = vmatprep.subr.mxu0 0.0
    %1075 = vmatpush1.msra.mxu0 0.0
    %1076 = vmatprep.subr.mxu0 0.0
    %1077 = vmatpush1.msra.mxu0 0.0
    %1078 = vmatprep.subr.mxu0 0.0
    %1079 = vmatpush1.msra.mxu0 0.0
    %1080 = vmatprep.subr.mxu0 0.0
    %1081 = vmatpush1.msra.mxu0 0.0
    %1082 = vmatprep.subr.mxu0 0.0
    %1083 = vmatpush1.msra.mxu0 0.0
    %1084 = vmatprep.subr.mxu0 0.0
    %1085 = vmatpush1.msra.mxu0 0.0
    %1086 = vmatprep.subr.mxu0 0.0
    %1087 = vmatpush1.msra.mxu0 0.0
    %1088 = vmatprep.subr.mxu0 0.0
    %1089 = vmatpush1.msra.mxu0 0.0
    %1090 = vmatprep.subr.mxu0 0.0
    %1091 = vmatpush1.msra.mxu0 0.0
    %1092 = vmatprep.subr.mxu0 0.0
    %1093 = vmatpush1.msra.mxu0 0.0
    %1094 = vmatprep.subr.mxu0 0.0
    %1095 = vmatpush1.msra.mxu0 0.0
    %1096 = vmatprep.mubr.f32.mxu0 0.0
    %1097 = vmatmul.mubr.f32.gmra.mrb[0].mxu0 %v1030
    %v1098 = vpop.f32.mrb[0].mxu0
    %v1099 = vadd.f32 %v585, %v1098
    %v1100 = vpop.f32.mrb[0].mxu0
    %1101 = vdwg.mxu0
    %v1102 = vadd.f32 %v446, %v1099
    %v1103 = vxor.u32 %v1102, 2147483648
    %v1104 = vmul.f32 %v1103, 1.442695
    %v1105 = vpow.pop %v1104
    %v1106 = vadd.f32 %v1105, 1.0
    %v1107 = vrcp.pop %v1106
    %v1108 = vmul.f32 1.0, %v1107
    %1110 = vrot.lane.b32.xlu0 %v1099, 64
    %v1111 = vpop.permute.xlu0 %1110
    %v1113 = vmul.f32 %v1108, %v1111
    %1115 = vrot.lane.b32.xlu0 %v1113, 64
    %v1116 = vpop.permute.xlu0 %1115
    %v1118 = vadd.f32 %v446, %v1116
    %v1119 = vtanh.pop %v1118
    %v1120 = vsub.f32 1.0, %v1108
    %1122 = vrot.lane.b32.xlu0 %v1119, 96
    %v1123 = vpop.permute.xlu0 %1122
    %v1125 = vmul.f32 %v1120, %v1123
    %v1126 = vmul.f32 %v1108, %v1019
    %v1127 = vadd.f32 %v1125, %v1126
    %1129 = vrot.lane.b32.xlu0 %v1127, 96
    %v1130 = vpop.permute.xlu0 %1129
    %s1132 = scalar_lea.vmem [#allocation11], 32
    %1133 = vst.msk [vmem:[%s1132] sm:$0xff] %vm334, %v1130
    %v1134 = vld [vmem:[%s3] sm:$0xff]
    %v1135 = vld [vmem:[%s3 + $0x8] sm:$0xff]
    %v1136 = vld [vmem:[%s3 + $0x10] sm:$0xff]
    %v1137 = vld [vmem:[%s3 + $0x18] sm:$0xff]
    %v1138 = vsel %vm334, %v1130, 0
    %1140 = vmatprep.subr.mxu0 0.0
    %1141 = vmatpush1.msra.mxu0 %v1134
    %1142 = vmatprep.subr.mxu0 0.0
    %1143 = vmatpush1.msra.mxu0 %v1135
    %1144 = vmatprep.subr.mxu0 0.0
    %1145 = vmatpush1.msra.mxu0 %v1136
    %1146 = vmatprep.subr.mxu0 0.0
    %1147 = vmatpush1.msra.mxu0 %v1137
    %1148 = vmatprep.subr.mxu0 0.0
    %1149 = vmatpush1.msra.mxu0 0.0
    %1150 = vmatprep.subr.mxu0 0.0
    %1151 = vmatpush1.msra.mxu0 0.0
    %1152 = vmatprep.subr.mxu0 0.0
    %1153 = vmatpush1.msra.mxu0 0.0
    %1154 = vmatprep.subr.mxu0 0.0
    %1155 = vmatpush1.msra.mxu0 0.0
    %1156 = vmatprep.subr.mxu0 0.0
    %1157 = vmatpush1.msra.mxu0 0.0
    %1158 = vmatprep.subr.mxu0 0.0
    %1159 = vmatpush1.msra.mxu0 0.0
    %1160 = vmatprep.subr.mxu0 0.0
    %1161 = vmatpush1.msra.mxu0 0.0
    %1162 = vmatprep.subr.mxu0 0.0
    %1163 = vmatpush1.msra.mxu0 0.0
    %1164 = vmatprep.subr.mxu0 0.0
    %1165 = vmatpush1.msra.mxu0 0.0
    %1166 = vmatprep.subr.mxu0 0.0
    %1167 = vmatpush1.msra.mxu0 0.0
    %1168 = vmatprep.subr.mxu0 0.0
    %1169 = vmatpush1.msra.mxu0 0.0
    %1170 = vmatprep.subr.mxu0 0.0
    %1171 = vmatpush1.msra.mxu0 0.0
    %1172 = vmatprep.subr.mxu0 0.0
    %1173 = vmatpush1.msra.mxu0 0.0
    %1174 = vmatprep.subr.mxu0 0.0
    %1175 = vmatpush1.msra.mxu0 0.0
    %1176 = vmatprep.subr.mxu0 0.0
    %1177 = vmatpush1.msra.mxu0 0.0
    %1178 = vmatprep.subr.mxu0 0.0
    %1179 = vmatpush1.msra.mxu0 0.0
    %1180 = vmatprep.subr.mxu0 0.0
    %1181 = vmatpush1.msra.mxu0 0.0
    %1182 = vmatprep.subr.mxu0 0.0
    %1183 = vmatpush1.msra.mxu0 0.0
    %1184 = vmatprep.subr.mxu0 0.0
    %1185 = vmatpush1.msra.mxu0 0.0
    %1186 = vmatprep.subr.mxu0 0.0
    %1187 = vmatpush1.msra.mxu0 0.0
    %1188 = vmatprep.subr.mxu0 0.0
    %1189 = vmatpush1.msra.mxu0 0.0
    %1190 = vmatprep.subr.mxu0 0.0
    %1191 = vmatpush1.msra.mxu0 0.0
    %1192 = vmatprep.subr.mxu0 0.0
    %1193 = vmatpush1.msra.mxu0 0.0
    %1194 = vmatprep.subr.mxu0 0.0
    %1195 = vmatpush1.msra.mxu0 0.0
    %1196 = vmatprep.subr.mxu0 0.0
    %1197 = vmatpush1.msra.mxu0 0.0
    %1198 = vmatprep.subr.mxu0 0.0
    %1199 = vmatpush1.msra.mxu0 0.0
    %1200 = vmatprep.subr.mxu0 0.0
    %1201 = vmatpush1.msra.mxu0 0.0
    %1202 = vmatprep.subr.mxu0 0.0
    %1203 = vmatpush1.msra.mxu0 0.0
    %1204 = vmatprep.mubr.f32.mxu0 0.0
    %1205 = vmatmul.mubr.f32.gmra.mrb[0].mxu0 %v1138
    %v1206 = vpop.f32.mrb[0].mxu0
    %v1207 = vadd.f32 %v585, %v1206
    %v1208 = vpop.f32.mrb[0].mxu0
    %1209 = vdwg.mxu0
    %v1210 = vadd.f32 %v451, %v1207
    %v1211 = vxor.u32 %v1210, 2147483648
    %v1212 = vmul.f32 %v1211, 1.442695
    %v1213 = vpow.pop %v1212
    %v1214 = vadd.f32 %v1213, 1.0
    %v1215 = vrcp.pop %v1214
    %v1216 = vmul.f32 1.0, %v1215
    %1218 = vrot.lane.b32.xlu0 %v1207, 64
    %v1219 = vpop.permute.xlu0 %1218
    %v1221 = vmul.f32 %v1216, %v1219
    %1223 = vrot.lane.b32.xlu0 %v1221, 64
    %v1224 = vpop.permute.xlu0 %1223
    %v1226 = vadd.f32 %v451, %v1224
    %v1227 = vtanh.pop %v1226
    %v1228 = vsub.f32 1.0, %v1216
    %1230 = vrot.lane.b32.xlu0 %v1227, 96
    %v1231 = vpop.permute.xlu0 %1230
    %v1233 = vmul.f32 %v1228, %v1231
    %v1234 = vmul.f32 %v1216, %v1127
    %v1235 = vadd.f32 %v1233, %v1234
    %1237 = vrot.lane.b32.xlu0 %v1235, 96
    %v1238 = vpop.permute.xlu0 %1237
    %s1240 = scalar_lea.vmem [#allocation11], 40
    %1241 = vst.msk [vmem:[%s1240] sm:$0xff] %vm334, %v1238
    %v1242 = vld [vmem:[%s3] sm:$0xff]
    %v1243 = vld [vmem:[%s3 + $0x8] sm:$0xff]
    %v1244 = vld [vmem:[%s3 + $0x10] sm:$0xff]
    %v1245 = vld [vmem:[%s3 + $0x18] sm:$0xff]
    %v1246 = vsel %vm334, %v1238, 0
    %1248 = vmatprep.subr.mxu0 0.0
    %1249 = vmatpush1.msra.mxu0 %v1242
    %1250 = vmatprep.subr.mxu0 0.0
    %1251 = vmatpush1.msra.mxu0 %v1243
    %1252 = vmatprep.subr.mxu0 0.0
    %1253 = vmatpush1.msra.mxu0 %v1244
    %1254 = vmatprep.subr.mxu0 0.0
    %1255 = vmatpush1.msra.mxu0 %v1245
    %1256 = vmatprep.subr.mxu0 0.0
    %1257 = vmatpush1.msra.mxu0 0.0
    %1258 = vmatprep.subr.mxu0 0.0
    %1259 = vmatpush1.msra.mxu0 0.0
    %1260 = vmatprep.subr.mxu0 0.0
    %1261 = vmatpush1.msra.mxu0 0.0
    %1262 = vmatprep.subr.mxu0 0.0
    %1263 = vmatpush1.msra.mxu0 0.0
    %1264 = vmatprep.subr.mxu0 0.0
    %1265 = vmatpush1.msra.mxu0 0.0
    %1266 = vmatprep.subr.mxu0 0.0
    %1267 = vmatpush1.msra.mxu0 0.0
    %1268 = vmatprep.subr.mxu0 0.0
    %1269 = vmatpush1.msra.mxu0 0.0
    %1270 = vmatprep.subr.mxu0 0.0
    %1271 = vmatpush1.msra.mxu0 0.0
    %1272 = vmatprep.subr.mxu0 0.0
    %1273 = vmatpush1.msra.mxu0 0.0
    %1274 = vmatprep.subr.mxu0 0.0
    %1275 = vmatpush1.msra.mxu0 0.0
    %1276 = vmatprep.subr.mxu0 0.0
    %1277 = vmatpush1.msra.mxu0 0.0
    %1278 = vmatprep.subr.mxu0 0.0
    %1279 = vmatpush1.msra.mxu0 0.0
    %1280 = vmatprep.subr.mxu0 0.0
    %1281 = vmatpush1.msra.mxu0 0.0
    %1282 = vmatprep.subr.mxu0 0.0
    %1283 = vmatpush1.msra.mxu0 0.0
    %1284 = vmatprep.subr.mxu0 0.0
    %1285 = vmatpush1.msra.mxu0 0.0
    %1286 = vmatprep.subr.mxu0 0.0
    %1287 = vmatpush1.msra.mxu0 0.0
    %1288 = vmatprep.subr.mxu0 0.0
    %1289 = vmatpush1.msra.mxu0 0.0
    %1290 = vmatprep.subr.mxu0 0.0
    %1291 = vmatpush1.msra.mxu0 0.0
    %1292 = vmatprep.subr.mxu0 0.0
    %1293 = vmatpush1.msra.mxu0 0.0
    %1294 = vmatprep.subr.mxu0 0.0
    %1295 = vmatpush1.msra.mxu0 0.0
    %1296 = vmatprep.subr.mxu0 0.0
    %1297 = vmatpush1.msra.mxu0 0.0
    %1298 = vmatprep.subr.mxu0 0.0
    %1299 = vmatpush1.msra.mxu0 0.0
    %1300 = vmatprep.subr.mxu0 0.0
    %1301 = vmatpush1.msra.mxu0 0.0
    %1302 = vmatprep.subr.mxu0 0.0
    %1303 = vmatpush1.msra.mxu0 0.0
    %1304 = vmatprep.subr.mxu0 0.0
    %1305 = vmatpush1.msra.mxu0 0.0
    %1306 = vmatprep.subr.mxu0 0.0
    %1307 = vmatpush1.msra.mxu0 0.0
    %1308 = vmatprep.subr.mxu0 0.0
    %1309 = vmatpush1.msra.mxu0 0.0
    %1310 = vmatprep.subr.mxu0 0.0
    %1311 = vmatpush1.msra.mxu0 0.0
    %1312 = vmatprep.mubr.f32.mxu0 0.0
    %1313 = vmatmul.mubr.f32.gmra.mrb[0].mxu0 %v1246
    %v1314 = vpop.f32.mrb[0].mxu0
    %v1315 = vadd.f32 %v585, %v1314
    %v1316 = vpop.f32.mrb[0].mxu0
    %1317 = vdwg.mxu0
    %v1318 = vadd.f32 %v456, %v1315
    %v1319 = vxor.u32 %v1318, 2147483648
    %v1320 = vmul.f32 %v1319, 1.442695
    %v1321 = vpow.pop %v1320
    %v1322 = vadd.f32 %v1321, 1.0
    %v1323 = vrcp.pop %v1322
    %v1324 = vmul.f32 1.0, %v1323
    %1326 = vrot.lane.b32.xlu0 %v1315, 64
    %v1327 = vpop.permute.xlu0 %1326
    %v1329 = vmul.f32 %v1324, %v1327
    %1331 = vrot.lane.b32.xlu0 %v1329, 64
    %v1332 = vpop.permute.xlu0 %1331
    %v1334 = vadd.f32 %v456, %v1332
    %v1335 = vtanh.pop %v1334
    %v1336 = vsub.f32 1.0, %v1324
    %1338 = vrot.lane.b32.xlu0 %v1335, 96
    %v1339 = vpop.permute.xlu0 %1338
    %v1341 = vmul.f32 %v1336, %v1339
    %v1342 = vmul.f32 %v1324, %v1235
    %v1343 = vadd.f32 %v1341, %v1342
    %1345 = vrot.lane.b32.xlu0 %v1343, 96
    %v1346 = vpop.permute.xlu0 %1345
    %s1348 = scalar_lea.vmem [#allocation11], 48
    %1349 = vst.msk [vmem:[%s1348] sm:$0xff] %vm334, %v1346
    %v1350 = vld [vmem:[%s3] sm:$0xff]
    %v1351 = vld [vmem:[%s3 + $0x8] sm:$0xff]
    %v1352 = vld [vmem:[%s3 + $0x10] sm:$0xff]
    %v1353 = vld [vmem:[%s3 + $0x18] sm:$0xff]
    %v1354 = vsel %vm334, %v1346, 0
    %1356 = vmatprep.subr.mxu0 0.0
    %1357 = vmatpush1.msra.mxu0 %v1350
    %1358 = vmatprep.subr.mxu0 0.0
    %1359 = vmatpush1.msra.mxu0 %v1351
    %1360 = vmatprep.subr.mxu0 0.0
    %1361 = vmatpush1.msra.mxu0 %v1352
    %1362 = vmatprep.subr.mxu0 0.0
    %1363 = vmatpush1.msra.mxu0 %v1353
    %1364 = vmatprep.subr.mxu0 0.0
    %1365 = vmatpush1.msra.mxu0 0.0
    %1366 = vmatprep.subr.mxu0 0.0
    %1367 = vmatpush1.msra.mxu0 0.0
    %1368 = vmatprep.subr.mxu0 0.0
    %1369 = vmatpush1.msra.mxu0 0.0
    %1370 = vmatprep.subr.mxu0 0.0
    %1371 = vmatpush1.msra.mxu0 0.0
    %1372 = vmatprep.subr.mxu0 0.0
    %1373 = vmatpush1.msra.mxu0 0.0
    %1374 = vmatprep.subr.mxu0 0.0
    %1375 = vmatpush1.msra.mxu0 0.0
    %1376 = vmatprep.subr.mxu0 0.0
    %1377 = vmatpush1.msra.mxu0 0.0
    %1378 = vmatprep.subr.mxu0 0.0
    %1379 = vmatpush1.msra.mxu0 0.0
    %1380 = vmatprep.subr.mxu0 0.0
    %1381 = vmatpush1.msra.mxu0 0.0
    %1382 = vmatprep.subr.mxu0 0.0
    %1383 = vmatpush1.msra.mxu0 0.0
    %1384 = vmatprep.subr.mxu0 0.0
    %1385 = vmatpush1.msra.mxu0 0.0
    %1386 = vmatprep.subr.mxu0 0.0
    %1387 = vmatpush1.msra.mxu0 0.0
    %1388 = vmatprep.subr.mxu0 0.0
    %1389 = vmatpush1.msra.mxu0 0.0
    %1390 = vmatprep.subr.mxu0 0.0
    %1391 = vmatpush1.msra.mxu0 0.0
    %1392 = vmatprep.subr.mxu0 0.0
    %1393 = vmatpush1.msra.mxu0 0.0
    %1394 = vmatprep.subr.mxu0 0.0
    %1395 = vmatpush1.msra.mxu0 0.0
    %1396 = vmatprep.subr.mxu0 0.0
    %1397 = vmatpush1.msra.mxu0 0.0
    %1398 = vmatprep.subr.mxu0 0.0
    %1399 = vmatpush1.msra.mxu0 0.0
    %1400 = vmatprep.subr.mxu0 0.0
    %1401 = vmatpush1.msra.mxu0 0.0
    %1402 = vmatprep.subr.mxu0 0.0
    %1403 = vmatpush1.msra.mxu0 0.0
    %1404 = vmatprep.subr.mxu0 0.0
    %1405 = vmatpush1.msra.mxu0 0.0
    %1406 = vmatprep.subr.mxu0 0.0
    %1407 = vmatpush1.msra.mxu0 0.0
    %1408 = vmatprep.subr.mxu0 0.0
    %1409 = vmatpush1.msra.mxu0 0.0
    %1410 = vmatprep.subr.mxu0 0.0
    %1411 = vmatpush1.msra.mxu0 0.0
    %1412 = vmatprep.subr.mxu0 0.0
    %1413 = vmatpush1.msra.mxu0 0.0
    %1414 = vmatprep.subr.mxu0 0.0
    %1415 = vmatpush1.msra.mxu0 0.0
    %1416 = vmatprep.subr.mxu0 0.0
    %1417 = vmatpush1.msra.mxu0 0.0
    %1418 = vmatprep.subr.mxu0 0.0
    %1419 = vmatpush1.msra.mxu0 0.0
    %1420 = vmatprep.mubr.f32.mxu0 0.0
    %1421 = vmatmul.mubr.f32.gmra.mrb[0].mxu0 %v1354
    %v1422 = vpop.f32.mrb[0].mxu0
    %v1423 = vadd.f32 %v585, %v1422
    %v1424 = vpop.f32.mrb[0].mxu0
    %1425 = vdwg.mxu0
    %v1426 = vadd.f32 %v461, %v1423
    %v1427 = vxor.u32 %v1426, 2147483648
    %v1428 = vmul.f32 %v1427, 1.442695
    %v1429 = vpow.pop %v1428
    %v1430 = vadd.f32 %v1429, 1.0
    %v1431 = vrcp.pop %v1430
    %v1432 = vmul.f32 1.0, %v1431
    %1434 = vrot.lane.b32.xlu0 %v1423, 64
    %v1435 = vpop.permute.xlu0 %1434
    %v1437 = vmul.f32 %v1432, %v1435
    %1439 = vrot.lane.b32.xlu0 %v1437, 64
    %v1440 = vpop.permute.xlu0 %1439
    %v1442 = vadd.f32 %v461, %v1440
    %v1443 = vtanh.pop %v1442
    %v1444 = vsub.f32 1.0, %v1432
    %1446 = vrot.lane.b32.xlu0 %v1443, 96
    %v1447 = vpop.permute.xlu0 %1446
    %v1449 = vmul.f32 %v1444, %v1447
    %v1450 = vmul.f32 %v1432, %v1343
    %v1451 = vadd.f32 %v1449, %v1450
    %1453 = vrot.lane.b32.xlu0 %v1451, 96
    %v1454 = vpop.permute.xlu0 %1453
    %s1456 = scalar_lea.vmem [#allocation11], 56
    %1457 = vst.msk [vmem:[%s1456] sm:$0xff] %vm334, %v1454
    %v1458 = vld [vmem:[%s7] sm:$0xff]
    %v1459 = vld [vmem:[%s7 + $0x8] sm:$0xff]
    %v1460 = vld [vmem:[%s7 + $0x10] sm:$0xff]
    %v1461 = vld [vmem:[%s7 + $0x18] sm:$0xff]
    %1462 = vmatprep.subr.mxu0 0.0
    %1463 = vmatpush1.msra.mxu0 %v1458
    %1464 = vmatprep.subr.mxu0 0.0
    %1465 = vmatpush1.msra.mxu0 %v1459
    %1466 = vmatprep.subr.mxu0 0.0
    %1467 = vmatpush1.msra.mxu0 %v1460
    %1468 = vmatprep.subr.mxu0 0.0
    %1469 = vmatpush1.msra.mxu0 %v1461
    %1470 = vmatprep.subr.mxu0 0.0
    %1471 = vmatpush1.msra.mxu0 0.0
    %1472 = vmatprep.subr.mxu0 0.0
    %1473 = vmatpush1.msra.mxu0 0.0
    %1474 = vmatprep.subr.mxu0 0.0
    %1475 = vmatpush1.msra.mxu0 0.0
    %1476 = vmatprep.subr.mxu0 0.0
    %1477 = vmatpush1.msra.mxu0 0.0
    %1478 = vmatprep.subr.mxu0 0.0
    %1479 = vmatpush1.msra.mxu0 0.0
    %1480 = vmatprep.subr.mxu0 0.0
    %1481 = vmatpush1.msra.mxu0 0.0
    %1482 = vmatprep.subr.mxu0 0.0
    %1483 = vmatpush1.msra.mxu0 0.0
    %1484 = vmatprep.subr.mxu0 0.0
    %1485 = vmatpush1.msra.mxu0 0.0
    %1486 = vmatprep.subr.mxu0 0.0
    %1487 = vmatpush1.msra.mxu0 0.0
    %1488 = vmatprep.subr.mxu0 0.0
    %1489 = vmatpush1.msra.mxu0 0.0
    %1490 = vmatprep.subr.mxu0 0.0
    %1491 = vmatpush1.msra.mxu0 0.0
    %1492 = vmatprep.subr.mxu0 0.0
    %1493 = vmatpush1.msra.mxu0 0.0
    %1494 = vmatprep.subr.mxu0 0.0
    %1495 = vmatpush1.msra.mxu0 0.0
    %1496 = vmatprep.subr.mxu0 0.0
    %1497 = vmatpush1.msra.mxu0 0.0
    %1498 = vmatprep.subr.mxu0 0.0
    %1499 = vmatpush1.msra.mxu0 0.0
    %1500 = vmatprep.subr.mxu0 0.0
    %1501 = vmatpush1.msra.mxu0 0.0
    %1502 = vmatprep.subr.mxu0 0.0
    %1503 = vmatpush1.msra.mxu0 0.0
    %1504 = vmatprep.subr.mxu0 0.0
    %1505 = vmatpush1.msra.mxu0 0.0
    %1506 = vmatprep.subr.mxu0 0.0
    %1507 = vmatpush1.msra.mxu0 0.0
    %1508 = vmatprep.subr.mxu0 0.0
    %1509 = vmatpush1.msra.mxu0 0.0
    %1510 = vmatprep.subr.mxu0 0.0
    %1511 = vmatpush1.msra.mxu0 0.0
    %1512 = vmatprep.subr.mxu0 0.0
    %1513 = vmatpush1.msra.mxu0 0.0
    %1514 = vmatprep.subr.mxu0 0.0
    %1515 = vmatpush1.msra.mxu0 0.0
    %1516 = vmatprep.subr.mxu0 0.0
    %1517 = vmatpush1.msra.mxu0 0.0
    %1518 = vmatprep.subr.mxu0 0.0
    %1519 = vmatpush1.msra.mxu0 0.0
    %1520 = vmatprep.subr.mxu0 0.0
    %1521 = vmatpush1.msra.mxu0 0.0
    %1522 = vmatprep.subr.mxu0 0.0
    %1523 = vmatpush1.msra.mxu0 0.0
    %1524 = vmatprep.subr.mxu0 0.0
    %1525 = vmatpush1.msra.mxu0 0.0
    %1526 = vmatprep.mubr.f32.mxu0 0.0
    %1527 = vmatmul.mubr.f32.gmra.mrb[0].mxu0 %v599
    %v1528 = vpop.f32.mrb[0].mxu0
    %v1529 = vadd.f32 %v592, %v1528
    %v1530 = vpop.f32.mrb[0].mxu0
    %1531 = vdwg.mxu0
    %v1532 = vadd.f32 %v577, %v1529
    %v1533 = vxor.u32 %v1532, 2147483648
    %v1534 = vmul.f32 %v1533, 1.442695
    %v1535 = vpow.pop %v1534
    %v1536 = vadd.f32 %v1535, 1.0
    %v1537 = vrcp.pop %v1536
    %v1538 = vmul.f32 1.0, %v1537
    %1540 = vrot.lane.b32.xlu0 %v1529, 64
    %v1541 = vpop.permute.xlu0 %1540
    %v1543 = vmul.f32 %v1538, %v1541
    %1545 = vrot.lane.b32.xlu0 %v1543, 64
    %v1546 = vpop.permute.xlu0 %1545
    %v1548 = vadd.f32 %v577, %v1546
    %v1549 = vtanh.pop %v1548
    %v1550 = vsub.f32 1.0, %v1538
    %1552 = vrot.lane.b32.xlu0 %v1549, 96
    %v1553 = vpop.permute.xlu0 %1552
    %v1555 = vmul.f32 %v1550, %v1553
    %v1556 = vmul.f32 %v1538, 0.0
    %v1557 = vadd.f32 %v1555, %v1556
    %1559 = vrot.lane.b32.xlu0 %v1557, 96
    %v1560 = vpop.permute.xlu0 %1559
    %s1562 = scalar_lea.vmem [#allocation12], 56
    %1563 = vst.msk [vmem:[%s1562] sm:$0xff] %vm334, %v1560
    %v1564 = vld [vmem:[%s7] sm:$0xff]
    %v1565 = vld [vmem:[%s7 + $0x8] sm:$0xff]
    %v1566 = vld [vmem:[%s7 + $0x10] sm:$0xff]
    %v1567 = vld [vmem:[%s7 + $0x18] sm:$0xff]
    %v1568 = vsel %vm334, %v1560, 0
    %1570 = vmatprep.subr.mxu0 0.0
    %1571 = vmatpush1.msra.mxu0 %v1564
    %1572 = vmatprep.subr.mxu0 0.0
    %1573 = vmatpush1.msra.mxu0 %v1565
    %1574 = vmatprep.subr.mxu0 0.0
    %1575 = vmatpush1.msra.mxu0 %v1566
    %1576 = vmatprep.subr.mxu0 0.0
    %1577 = vmatpush1.msra.mxu0 %v1567
    %1578 = vmatprep.subr.mxu0 0.0
    %1579 = vmatpush1.msra.mxu0 0.0
    %1580 = vmatprep.subr.mxu0 0.0
    %1581 = vmatpush1.msra.mxu0 0.0
    %1582 = vmatprep.subr.mxu0 0.0
    %1583 = vmatpush1.msra.mxu0 0.0
    %1584 = vmatprep.subr.mxu0 0.0
    %1585 = vmatpush1.msra.mxu0 0.0
    %1586 = vmatprep.subr.mxu0 0.0
    %1587 = vmatpush1.msra.mxu0 0.0
    %1588 = vmatprep.subr.mxu0 0.0
    %1589 = vmatpush1.msra.mxu0 0.0
    %1590 = vmatprep.subr.mxu0 0.0
    %1591 = vmatpush1.msra.mxu0 0.0
    %1592 = vmatprep.subr.mxu0 0.0
    %1593 = vmatpush1.msra.mxu0 0.0
    %1594 = vmatprep.subr.mxu0 0.0
    %1595 = vmatpush1.msra.mxu0 0.0
    %1596 = vmatprep.subr.mxu0 0.0
    %1597 = vmatpush1.msra.mxu0 0.0
    %1598 = vmatprep.subr.mxu0 0.0
    %1599 = vmatpush1.msra.mxu0 0.0
    %1600 = vmatprep.subr.mxu0 0.0
    %1601 = vmatpush1.msra.mxu0 0.0
    %1602 = vmatprep.subr.mxu0 0.0
    %1603 = vmatpush1.msra.mxu0 0.0
    %1604 = vmatprep.subr.mxu0 0.0
    %1605 = vmatpush1.msra.mxu0 0.0
    %1606 = vmatprep.subr.mxu0 0.0
    %1607 = vmatpush1.msra.mxu0 0.0
    %1608 = vmatprep.subr.mxu0 0.0
    %1609 = vmatpush1.msra.mxu0 0.0
    %1610 = vmatprep.subr.mxu0 0.0
    %1611 = vmatpush1.msra.mxu0 0.0
    %1612 = vmatprep.subr.mxu0 0.0
    %1613 = vmatpush1.msra.mxu0 0.0
    %1614 = vmatprep.subr.mxu0 0.0
    %1615 = vmatpush1.msra.mxu0 0.0
    %1616 = vmatprep.subr.mxu0 0.0
    %1617 = vmatpush1.msra.mxu0 0.0
    %1618 = vmatprep.subr.mxu0 0.0
    %1619 = vmatpush1.msra.mxu0 0.0
    %1620 = vmatprep.subr.mxu0 0.0
    %1621 = vmatpush1.msra.mxu0 0.0
    %1622 = vmatprep.subr.mxu0 0.0
    %1623 = vmatpush1.msra.mxu0 0.0
    %1624 = vmatprep.subr.mxu0 0.0
    %1625 = vmatpush1.msra.mxu0 0.0
    %1626 = vmatprep.subr.mxu0 0.0
    %1627 = vmatpush1.msra.mxu0 0.0
    %1628 = vmatprep.subr.mxu0 0.0
    %1629 = vmatpush1.msra.mxu0 0.0
    %1630 = vmatprep.subr.mxu0 0.0
    %1631 = vmatpush1.msra.mxu0 0.0
    %1632 = vmatprep.subr.mxu0 0.0
    %1633 = vmatpush1.msra.mxu0 0.0
    %1634 = vmatprep.mubr.f32.mxu0 0.0
    %1635 = vmatmul.mubr.f32.gmra.mrb[0].mxu0 %v1568
    %v1636 = vpop.f32.mrb[0].mxu0
    %v1637 = vadd.f32 %v592, %v1636
    %v1638 = vpop.f32.mrb[0].mxu0
    %1639 = vdwg.mxu0
    %v1640 = vadd.f32 %v572, %v1637
    %v1641 = vxor.u32 %v1640, 2147483648
    %v1642 = vmul.f32 %v1641, 1.442695
    %v1643 = vpow.pop %v1642
    %v1644 = vadd.f32 %v1643, 1.0
    %v1645 = vrcp.pop %v1644
    %v1646 = vmul.f32 1.0, %v1645
    %1648 = vrot.lane.b32.xlu0 %v1637, 64
    %v1649 = vpop.permute.xlu0 %1648
    %v1651 = vmul.f32 %v1646, %v1649
    %1653 = vrot.lane.b32.xlu0 %v1651, 64
    %v1654 = vpop.permute.xlu0 %1653
    %v1656 = vadd.f32 %v572, %v1654
    %v1657 = vtanh.pop %v1656
    %v1658 = vsub.f32 1.0, %v1646
    %1660 = vrot.lane.b32.xlu0 %v1657, 96
    %v1661 = vpop.permute.xlu0 %1660
    %v1663 = vmul.f32 %v1658, %v1661
    %v1664 = vmul.f32 %v1646, %v1557
    %v1665 = vadd.f32 %v1663, %v1664
    %1667 = vrot.lane.b32.xlu0 %v1665, 96
    %v1668 = vpop.permute.xlu0 %1667
    %s1670 = scalar_lea.vmem [#allocation12], 48
    %1671 = vst.msk [vmem:[%s1670] sm:$0xff] %vm334, %v1668
    %v1672 = vld [vmem:[%s7] sm:$0xff]
    %v1673 = vld [vmem:[%s7 + $0x8] sm:$0xff]
    %v1674 = vld [vmem:[%s7 + $0x10] sm:$0xff]
    %v1675 = vld [vmem:[%s7 + $0x18] sm:$0xff]
    %v1676 = vsel %vm334, %v1668, 0
    %1678 = vmatprep.subr.mxu0 0.0
    %1679 = vmatpush1.msra.mxu0 %v1672
    %1680 = vmatprep.subr.mxu0 0.0
    %1681 = vmatpush1.msra.mxu0 %v1673
    %1682 = vmatprep.subr.mxu0 0.0
    %1683 = vmatpush1.msra.mxu0 %v1674
    %1684 = vmatprep.subr.mxu0 0.0
    %1685 = vmatpush1.msra.mxu0 %v1675
    %1686 = vmatprep.subr.mxu0 0.0
    %1687 = vmatpush1.msra.mxu0 0.0
    %1688 = vmatprep.subr.mxu0 0.0
    %1689 = vmatpush1.msra.mxu0 0.0
    %1690 = vmatprep.subr.mxu0 0.0
    %1691 = vmatpush1.msra.mxu0 0.0
    %1692 = vmatprep.subr.mxu0 0.0
    %1693 = vmatpush1.msra.mxu0 0.0
    %1694 = vmatprep.subr.mxu0 0.0
    %1695 = vmatpush1.msra.mxu0 0.0
    %1696 = vmatprep.subr.mxu0 0.0
    %1697 = vmatpush1.msra.mxu0 0.0
    %1698 = vmatprep.subr.mxu0 0.0
    %1699 = vmatpush1.msra.mxu0 0.0
    %1700 = vmatprep.subr.mxu0 0.0
    %1701 = vmatpush1.msra.mxu0 0.0
    %1702 = vmatprep.subr.mxu0 0.0
    %1703 = vmatpush1.msra.mxu0 0.0
    %1704 = vmatprep.subr.mxu0 0.0
    %1705 = vmatpush1.msra.mxu0 0.0
    %1706 = vmatprep.subr.mxu0 0.0
    %1707 = vmatpush1.msra.mxu0 0.0
    %1708 = vmatprep.subr.mxu0 0.0
    %1709 = vmatpush1.msra.mxu0 0.0
    %1710 = vmatprep.subr.mxu0 0.0
    %1711 = vmatpush1.msra.mxu0 0.0
    %1712 = vmatprep.subr.mxu0 0.0
    %1713 = vmatpush1.msra.mxu0 0.0
    %1714 = vmatprep.subr.mxu0 0.0
    %1715 = vmatpush1.msra.mxu0 0.0
    %1716 = vmatprep.subr.mxu0 0.0
    %1717 = vmatpush1.msra.mxu0 0.0
    %1718 = vmatprep.subr.mxu0 0.0
    %1719 = vmatpush1.msra.mxu0 0.0
    %1720 = vmatprep.subr.mxu0 0.0
    %1721 = vmatpush1.msra.mxu0 0.0
    %1722 = vmatprep.subr.mxu0 0.0
    %1723 = vmatpush1.msra.mxu0 0.0
    %1724 = vmatprep.subr.mxu0 0.0
    %1725 = vmatpush1.msra.mxu0 0.0
    %1726 = vmatprep.subr.mxu0 0.0
    %1727 = vmatpush1.msra.mxu0 0.0
    %1728 = vmatprep.subr.mxu0 0.0
    %1729 = vmatpush1.msra.mxu0 0.0
    %1730 = vmatprep.subr.mxu0 0.0
    %1731 = vmatpush1.msra.mxu0 0.0
    %1732 = vmatprep.subr.mxu0 0.0
    %1733 = vmatpush1.msra.mxu0 0.0
    %1734 = vmatprep.subr.mxu0 0.0
    %1735 = vmatpush1.msra.mxu0 0.0
    %1736 = vmatprep.subr.mxu0 0.0
    %1737 = vmatpush1.msra.mxu0 0.0
    %1738 = vmatprep.subr.mxu0 0.0
    %1739 = vmatpush1.msra.mxu0 0.0
    %1740 = vmatprep.subr.mxu0 0.0
    %1741 = vmatpush1.msra.mxu0 0.0
    %1742 = vmatprep.mubr.f32.mxu0 0.0
    %1743 = vmatmul.mubr.f32.gmra.mrb[0].mxu0 %v1676
    %v1744 = vpop.f32.mrb[0].mxu0
    %v1745 = vadd.f32 %v592, %v1744
    %v1746 = vpop.f32.mrb[0].mxu0
    %1747 = vdwg.mxu0
    %v1748 = vadd.f32 %v567, %v1745
    %v1749 = vxor.u32 %v1748, 2147483648
    %v1750 = vmul.f32 %v1749, 1.442695
    %v1751 = vpow.pop %v1750
    %v1752 = vadd.f32 %v1751, 1.0
    %v1753 = vrcp.pop %v1752
    %v1754 = vmul.f32 1.0, %v1753
    %1756 = vrot.lane.b32.xlu0 %v1745, 64
    %v1757 = vpop.permute.xlu0 %1756
    %v1759 = vmul.f32 %v1754, %v1757
    %1761 = vrot.lane.b32.xlu0 %v1759, 64
    %v1762 = vpop.permute.xlu0 %1761
    %v1764 = vadd.f32 %v567, %v1762
    %v1765 = vtanh.pop %v1764
    %v1766 = vsub.f32 1.0, %v1754
    %1768 = vrot.lane.b32.xlu0 %v1765, 96
    %v1769 = vpop.permute.xlu0 %1768
    %v1771 = vmul.f32 %v1766, %v1769
    %v1772 = vmul.f32 %v1754, %v1665
    %v1773 = vadd.f32 %v1771, %v1772
    %1775 = vrot.lane.b32.xlu0 %v1773, 96
    %v1776 = vpop.permute.xlu0 %1775
    %s1778 = scalar_lea.vmem [#allocation12], 40
    %1779 = vst.msk [vmem:[%s1778] sm:$0xff] %vm334, %v1776
    %v1780 = vld [vmem:[%s7] sm:$0xff]
    %v1781 = vld [vmem:[%s7 + $0x8] sm:$0xff]
    %v1782 = vld [vmem:[%s7 + $0x10] sm:$0xff]
    %v1783 = vld [vmem:[%s7 + $0x18] sm:$0xff]
    %v1784 = vsel %vm334, %v1776, 0
    %1786 = vmatprep.subr.mxu0 0.0
    %1787 = vmatpush1.msra.mxu0 %v1780
    %1788 = vmatprep.subr.mxu0 0.0
    %1789 = vmatpush1.msra.mxu0 %v1781
    %1790 = vmatprep.subr.mxu0 0.0
    %1791 = vmatpush1.msra.mxu0 %v1782
    %1792 = vmatprep.subr.mxu0 0.0
    %1793 = vmatpush1.msra.mxu0 %v1783
    %1794 = vmatprep.subr.mxu0 0.0
    %1795 = vmatpush1.msra.mxu0 0.0
    %1796 = vmatprep.subr.mxu0 0.0
    %1797 = vmatpush1.msra.mxu0 0.0
    %1798 = vmatprep.subr.mxu0 0.0
    %1799 = vmatpush1.msra.mxu0 0.0
    %1800 = vmatprep.subr.mxu0 0.0
    %1801 = vmatpush1.msra.mxu0 0.0
    %1802 = vmatprep.subr.mxu0 0.0
    %1803 = vmatpush1.msra.mxu0 0.0
    %1804 = vmatprep.subr.mxu0 0.0
    %1805 = vmatpush1.msra.mxu0 0.0
    %1806 = vmatprep.subr.mxu0 0.0
    %1807 = vmatpush1.msra.mxu0 0.0
    %1808 = vmatprep.subr.mxu0 0.0
    %1809 = vmatpush1.msra.mxu0 0.0
    %1810 = vmatprep.subr.mxu0 0.0
    %1811 = vmatpush1.msra.mxu0 0.0
    %1812 = vmatprep.subr.mxu0 0.0
    %1813 = vmatpush1.msra.mxu0 0.0
    %1814 = vmatprep.subr.mxu0 0.0
    %1815 = vmatpush1.msra.mxu0 0.0
    %1816 = vmatprep.subr.mxu0 0.0
    %1817 = vmatpush1.msra.mxu0 0.0
    %1818 = vmatprep.subr.mxu0 0.0
    %1819 = vmatpush1.msra.mxu0 0.0
    %1820 = vmatprep.subr.mxu0 0.0
    %1821 = vmatpush1.msra.mxu0 0.0
    %1822 = vmatprep.subr.mxu0 0.0
    %1823 = vmatpush1.msra.mxu0 0.0
    %1824 = vmatprep.subr.mxu0 0.0
    %1825 = vmatpush1.msra.mxu0 0.0
    %1826 = vmatprep.subr.mxu0 0.0
    %1827 = vmatpush1.msra.mxu0 0.0
    %1828 = vmatprep.subr.mxu0 0.0
    %1829 = vmatpush1.msra.mxu0 0.0
    %1830 = vmatprep.subr.mxu0 0.0
    %1831 = vmatpush1.msra.mxu0 0.0
    %1832 = vmatprep.subr.mxu0 0.0
    %1833 = vmatpush1.msra.mxu0 0.0
    %1834 = vmatprep.subr.mxu0 0.0
    %1835 = vmatpush1.msra.mxu0 0.0
    %1836 = vmatprep.subr.mxu0 0.0
    %1837 = vmatpush1.msra.mxu0 0.0
    %1838 = vmatprep.subr.mxu0 0.0
    %1839 = vmatpush1.msra.mxu0 0.0
    %1840 = vmatprep.subr.mxu0 0.0
    %1841 = vmatpush1.msra.mxu0 0.0
    %1842 = vmatprep.subr.mxu0 0.0
    %1843 = vmatpush1.msra.mxu0 0.0
    %1844 = vmatprep.subr.mxu0 0.0
    %1845 = vmatpush1.msra.mxu0 0.0
    %1846 = vmatprep.subr.mxu0 0.0
    %1847 = vmatpush1.msra.mxu0 0.0
    %1848 = vmatprep.subr.mxu0 0.0
    %1849 = vmatpush1.msra.mxu0 0.0
    %1850 = vmatprep.mubr.f32.mxu0 0.0
    %1851 = vmatmul.mubr.f32.gmra.mrb[0].mxu0 %v1784
    %v1852 = vpop.f32.mrb[0].mxu0
    %v1853 = vadd.f32 %v592, %v1852
    %v1854 = vpop.f32.mrb[0].mxu0
    %1855 = vdwg.mxu0
    %v1856 = vadd.f32 %v562, %v1853
    %v1857 = vxor.u32 %v1856, 2147483648
    %v1858 = vmul.f32 %v1857, 1.442695
    %v1859 = vpow.pop %v1858
    %v1860 = vadd.f32 %v1859, 1.0
    %v1861 = vrcp.pop %v1860
    %v1862 = vmul.f32 1.0, %v1861
    %1864 = vrot.lane.b32.xlu0 %v1853, 64
    %v1865 = vpop.permute.xlu0 %1864
    %v1867 = vmul.f32 %v1862, %v1865
    %1869 = vrot.lane.b32.xlu0 %v1867, 64
    %v1870 = vpop.permute.xlu0 %1869
    %v1872 = vadd.f32 %v562, %v1870
    %v1873 = vtanh.pop %v1872
    %v1874 = vsub.f32 1.0, %v1862
    %1876 = vrot.lane.b32.xlu0 %v1873, 96
    %v1877 = vpop.permute.xlu0 %1876
    %v1879 = vmul.f32 %v1874, %v1877
    %v1880 = vmul.f32 %v1862, %v1773
    %v1881 = vadd.f32 %v1879, %v1880
    %1883 = vrot.lane.b32.xlu0 %v1881, 96
    %v1884 = vpop.permute.xlu0 %1883
    %s1886 = scalar_lea.vmem [#allocation12], 32
    %1887 = vst.msk [vmem:[%s1886] sm:$0xff] %vm334, %v1884
    %v1888 = vld [vmem:[%s7] sm:$0xff]
    %v1889 = vld [vmem:[%s7 + $0x8] sm:$0xff]
    %v1890 = vld [vmem:[%s7 + $0x10] sm:$0xff]
    %v1891 = vld [vmem:[%s7 + $0x18] sm:$0xff]
    %v1892 = vsel %vm334, %v1884, 0
    %1894 = vmatprep.subr.mxu0 0.0
    %1895 = vmatpush1.msra.mxu0 %v1888
    %1896 = vmatprep.subr.mxu0 0.0
    %1897 = vmatpush1.msra.mxu0 %v1889
    %1898 = vmatprep.subr.mxu0 0.0
    %1899 = vmatpush1.msra.mxu0 %v1890
    %1900 = vmatprep.subr.mxu0 0.0
    %1901 = vmatpush1.msra.mxu0 %v1891
    %1902 = vmatprep.subr.mxu0 0.0
    %1903 = vmatpush1.msra.mxu0 0.0
    %1904 = vmatprep.subr.mxu0 0.0
    %1905 = vmatpush1.msra.mxu0 0.0
    %1906 = vmatprep.subr.mxu0 0.0
    %1907 = vmatpush1.msra.mxu0 0.0
    %1908 = vmatprep.subr.mxu0 0.0
    %1909 = vmatpush1.msra.mxu0 0.0
    %1910 = vmatprep.subr.mxu0 0.0
    %1911 = vmatpush1.msra.mxu0 0.0
    %1912 = vmatprep.subr.mxu0 0.0
    %1913 = vmatpush1.msra.mxu0 0.0
    %1914 = vmatprep.subr.mxu0 0.0
    %1915 = vmatpush1.msra.mxu0 0.0
    %1916 = vmatprep.subr.mxu0 0.0
    %1917 = vmatpush1.msra.mxu0 0.0
    %1918 = vmatprep.subr.mxu0 0.0
    %1919 = vmatpush1.msra.mxu0 0.0
    %1920 = vmatprep.subr.mxu0 0.0
    %1921 = vmatpush1.msra.mxu0 0.0
    %1922 = vmatprep.subr.mxu0 0.0
    %1923 = vmatpush1.msra.mxu0 0.0
    %1924 = vmatprep.subr.mxu0 0.0
    %1925 = vmatpush1.msra.mxu0 0.0
    %1926 = vmatprep.subr.mxu0 0.0
    %1927 = vmatpush1.msra.mxu0 0.0
    %1928 = vmatprep.subr.mxu0 0.0
    %1929 = vmatpush1.msra.mxu0 0.0
    %1930 = vmatprep.subr.mxu0 0.0
    %1931 = vmatpush1.msra.mxu0 0.0
    %1932 = vmatprep.subr.mxu0 0.0
    %1933 = vmatpush1.msra.mxu0 0.0
    %1934 = vmatprep.subr.mxu0 0.0
    %1935 = vmatpush1.msra.mxu0 0.0
    %1936 = vmatprep.subr.mxu0 0.0
    %1937 = vmatpush1.msra.mxu0 0.0
    %1938 = vmatprep.subr.mxu0 0.0
    %1939 = vmatpush1.msra.mxu0 0.0
    %1940 = vmatprep.subr.mxu0 0.0
    %1941 = vmatpush1.msra.mxu0 0.0
    %1942 = vmatprep.subr.mxu0 0.0
    %1943 = vmatpush1.msra.mxu0 0.0
    %1944 = vmatprep.subr.mxu0 0.0
    %1945 = vmatpush1.msra.mxu0 0.0
    %1946 = vmatprep.subr.mxu0 0.0
    %1947 = vmatpush1.msra.mxu0 0.0
    %1948 = vmatprep.subr.mxu0 0.0
    %1949 = vmatpush1.msra.mxu0 0.0
    %1950 = vmatprep.subr.mxu0 0.0
    %1951 = vmatpush1.msra.mxu0 0.0
    %1952 = vmatprep.subr.mxu0 0.0
    %1953 = vmatpush1.msra.mxu0 0.0
    %1954 = vmatprep.subr.mxu0 0.0
    %1955 = vmatpush1.msra.mxu0 0.0
    %1956 = vmatprep.subr.mxu0 0.0
    %1957 = vmatpush1.msra.mxu0 0.0
    %1958 = vmatprep.mubr.f32.mxu0 0.0
    %1959 = vmatmul.mubr.f32.gmra.mrb[0].mxu0 %v1892
    %v1960 = vpop.f32.mrb[0].mxu0
    %v1961 = vadd.f32 %v592, %v1960
    %v1962 = vpop.f32.mrb[0].mxu0
    %1963 = vdwg.mxu0
    %v1964 = vadd.f32 %v557, %v1961
    %v1965 = vxor.u32 %v1964, 2147483648
    %v1966 = vmul.f32 %v1965, 1.442695
    %v1967 = vpow.pop %v1966
    %v1968 = vadd.f32 %v1967, 1.0
    %v1969 = vrcp.pop %v1968
    %v1970 = vmul.f32 1.0, %v1969
    %1972 = vrot.lane.b32.xlu0 %v1961, 64
    %v1973 = vpop.permute.xlu0 %1972
    %v1975 = vmul.f32 %v1970, %v1973
    %1977 = vrot.lane.b32.xlu0 %v1975, 64
    %v1978 = vpop.permute.xlu0 %1977
    %v1980 = vadd.f32 %v557, %v1978
    %v1981 = vtanh.pop %v1980
    %v1982 = vsub.f32 1.0, %v1970
    %1984 = vrot.lane.b32.xlu0 %v1981, 96
    %v1985 = vpop.permute.xlu0 %1984
    %v1987 = vmul.f32 %v1982, %v1985
    %v1988 = vmul.f32 %v1970, %v1881
    %v1989 = vadd.f32 %v1987, %v1988
    %1991 = vrot.lane.b32.xlu0 %v1989, 96
    %v1992 = vpop.permute.xlu0 %1991
    %s1994 = scalar_lea.vmem [#allocation12], 24
    %1995 = vst.msk [vmem:[%s1994] sm:$0xff] %vm334, %v1992
    %v1996 = vld [vmem:[%s7] sm:$0xff]
    %v1997 = vld [vmem:[%s7 + $0x8] sm:$0xff]
    %v1998 = vld [vmem:[%s7 + $0x10] sm:$0xff]
    %v1999 = vld [vmem:[%s7 + $0x18] sm:$0xff]
    %v2000 = vsel %vm334, %v1992, 0
    %2002 = vmatprep.subr.mxu0 0.0
    %2003 = vmatpush1.msra.mxu0 %v1996
    %2004 = vmatprep.subr.mxu0 0.0
    %2005 = vmatpush1.msra.mxu0 %v1997
    %2006 = vmatprep.subr.mxu0 0.0
    %2007 = vmatpush1.msra.mxu0 %v1998
    %2008 = vmatprep.subr.mxu0 0.0
    %2009 = vmatpush1.msra.mxu0 %v1999
    %2010 = vmatprep.subr.mxu0 0.0
    %2011 = vmatpush1.msra.mxu0 0.0
    %2012 = vmatprep.subr.mxu0 0.0
    %2013 = vmatpush1.msra.mxu0 0.0
    %2014 = vmatprep.subr.mxu0 0.0
    %2015 = vmatpush1.msra.mxu0 0.0
    %2016 = vmatprep.subr.mxu0 0.0
    %2017 = vmatpush1.msra.mxu0 0.0
    %2018 = vmatprep.subr.mxu0 0.0
    %2019 = vmatpush1.msra.mxu0 0.0
    %2020 = vmatprep.subr.mxu0 0.0
    %2021 = vmatpush1.msra.mxu0 0.0
    %2022 = vmatprep.subr.mxu0 0.0
    %2023 = vmatpush1.msra.mxu0 0.0
    %2024 = vmatprep.subr.mxu0 0.0
    %2025 = vmatpush1.msra.mxu0 0.0
    %2026 = vmatprep.subr.mxu0 0.0
    %2027 = vmatpush1.msra.mxu0 0.0
    %2028 = vmatprep.subr.mxu0 0.0
    %2029 = vmatpush1.msra.mxu0 0.0
    %2030 = vmatprep.subr.mxu0 0.0
    %2031 = vmatpush1.msra.mxu0 0.0
    %2032 = vmatprep.subr.mxu0 0.0
    %2033 = vmatpush1.msra.mxu0 0.0
    %2034 = vmatprep.subr.mxu0 0.0
    %2035 = vmatpush1.msra.mxu0 0.0
    %2036 = vmatprep.subr.mxu0 0.0
    %2037 = vmatpush1.msra.mxu0 0.0
    %2038 = vmatprep.subr.mxu0 0.0
    %2039 = vmatpush1.msra.mxu0 0.0
    %2040 = vmatprep.subr.mxu0 0.0
    %2041 = vmatpush1.msra.mxu0 0.0
    %2042 = vmatprep.subr.mxu0 0.0
    %2043 = vmatpush1.msra.mxu0 0.0
    %2044 = vmatprep.subr.mxu0 0.0
    %2045 = vmatpush1.msra.mxu0 0.0
    %2046 = vmatprep.subr.mxu0 0.0
    %2047 = vmatpush1.msra.mxu0 0.0
    %2048 = vmatprep.subr.mxu0 0.0
    %2049 = vmatpush1.msra.mxu0 0.0
    %2050 = vmatprep.subr.mxu0 0.0
    %2051 = vmatpush1.msra.mxu0 0.0
    %2052 = vmatprep.subr.mxu0 0.0
    %2053 = vmatpush1.msra.mxu0 0.0
    %2054 = vmatprep.subr.mxu0 0.0
    %2055 = vmatpush1.msra.mxu0 0.0
    %2056 = vmatprep.subr.mxu0 0.0
    %2057 = vmatpush1.msra.mxu0 0.0
    %2058 = vmatprep.subr.mxu0 0.0
    %2059 = vmatpush1.msra.mxu0 0.0
    %2060 = vmatprep.subr.mxu0 0.0
    %2061 = vmatpush1.msra.mxu0 0.0
    %2062 = vmatprep.subr.mxu0 0.0
    %2063 = vmatpush1.msra.mxu0 0.0
    %2064 = vmatprep.subr.mxu0 0.0
    %2065 = vmatpush1.msra.mxu0 0.0
    %2066 = vmatprep.mubr.f32.mxu0 0.0
    %2067 = vmatmul.mubr.f32.gmra.mrb[0].mxu0 %v2000
    %v2068 = vpop.f32.mrb[0].mxu0
    %v2069 = vadd.f32 %v592, %v2068
    %v2070 = vpop.f32.mrb[0].mxu0
    %2071 = vdwg.mxu0
    %v2072 = vadd.f32 %v552, %v2069
    %v2073 = vxor.u32 %v2072, 2147483648
    %v2074 = vmul.f32 %v2073, 1.442695
    %v2075 = vpow.pop %v2074
    %v2076 = vadd.f32 %v2075, 1.0
    %v2077 = vrcp.pop %v2076
    %v2078 = vmul.f32 1.0, %v2077
    %2080 = vrot.lane.b32.xlu0 %v2069, 64
    %v2081 = vpop.permute.xlu0 %2080
    %v2083 = vmul.f32 %v2078, %v2081
    %2085 = vrot.lane.b32.xlu0 %v2083, 64
    %v2086 = vpop.permute.xlu0 %2085
    %v2088 = vadd.f32 %v552, %v2086
    %v2089 = vtanh.pop %v2088
    %v2090 = vsub.f32 1.0, %v2078
    %2092 = vrot.lane.b32.xlu0 %v2089, 96
    %v2093 = vpop.permute.xlu0 %2092
    %v2095 = vmul.f32 %v2090, %v2093
    %v2096 = vmul.f32 %v2078, %v1989
    %v2097 = vadd.f32 %v2095, %v2096
    %2099 = vrot.lane.b32.xlu0 %v2097, 96
    %v2100 = vpop.permute.xlu0 %2099
    %s2102 = scalar_lea.vmem [#allocation12], 16
    %2103 = vst.msk [vmem:[%s2102] sm:$0xff] %vm334, %v2100
    %v2104 = vld [vmem:[%s7] sm:$0xff]
    %v2105 = vld [vmem:[%s7 + $0x8] sm:$0xff]
    %v2106 = vld [vmem:[%s7 + $0x10] sm:$0xff]
    %v2107 = vld [vmem:[%s7 + $0x18] sm:$0xff]
    %v2108 = vsel %vm334, %v2100, 0
    %2110 = vmatprep.subr.mxu0 0.0
    %2111 = vmatpush1.msra.mxu0 %v2104
    %2112 = vmatprep.subr.mxu0 0.0
    %2113 = vmatpush1.msra.mxu0 %v2105
    %2114 = vmatprep.subr.mxu0 0.0
    %2115 = vmatpush1.msra.mxu0 %v2106
    %2116 = vmatprep.subr.mxu0 0.0
    %2117 = vmatpush1.msra.mxu0 %v2107
    %2118 = vmatprep.subr.mxu0 0.0
    %2119 = vmatpush1.msra.mxu0 0.0
    %2120 = vmatprep.subr.mxu0 0.0
    %2121 = vmatpush1.msra.mxu0 0.0
    %2122 = vmatprep.subr.mxu0 0.0
    %2123 = vmatpush1.msra.mxu0 0.0
    %2124 = vmatprep.subr.mxu0 0.0
    %2125 = vmatpush1.msra.mxu0 0.0
    %2126 = vmatprep.subr.mxu0 0.0
    %2127 = vmatpush1.msra.mxu0 0.0
    %2128 = vmatprep.subr.mxu0 0.0
    %2129 = vmatpush1.msra.mxu0 0.0
    %2130 = vmatprep.subr.mxu0 0.0
    %2131 = vmatpush1.msra.mxu0 0.0
    %2132 = vmatprep.subr.mxu0 0.0
    %2133 = vmatpush1.msra.mxu0 0.0
    %2134 = vmatprep.subr.mxu0 0.0
    %2135 = vmatpush1.msra.mxu0 0.0
    %2136 = vmatprep.subr.mxu0 0.0
    %2137 = vmatpush1.msra.mxu0 0.0
    %2138 = vmatprep.subr.mxu0 0.0
    %2139 = vmatpush1.msra.mxu0 0.0
    %2140 = vmatprep.subr.mxu0 0.0
    %2141 = vmatpush1.msra.mxu0 0.0
    %2142 = vmatprep.subr.mxu0 0.0
    %2143 = vmatpush1.msra.mxu0 0.0
    %2144 = vmatprep.subr.mxu0 0.0
    %2145 = vmatpush1.msra.mxu0 0.0
    %2146 = vmatprep.subr.mxu0 0.0
    %2147 = vmatpush1.msra.mxu0 0.0
    %2148 = vmatprep.subr.mxu0 0.0
    %2149 = vmatpush1.msra.mxu0 0.0
    %2150 = vmatprep.subr.mxu0 0.0
    %2151 = vmatpush1.msra.mxu0 0.0
    %2152 = vmatprep.subr.mxu0 0.0
    %2153 = vmatpush1.msra.mxu0 0.0
    %2154 = vmatprep.subr.mxu0 0.0
    %2155 = vmatpush1.msra.mxu0 0.0
    %2156 = vmatprep.subr.mxu0 0.0
    %2157 = vmatpush1.msra.mxu0 0.0
    %2158 = vmatprep.subr.mxu0 0.0
    %2159 = vmatpush1.msra.mxu0 0.0
    %2160 = vmatprep.subr.mxu0 0.0
    %2161 = vmatpush1.msra.mxu0 0.0
    %2162 = vmatprep.subr.mxu0 0.0
    %2163 = vmatpush1.msra.mxu0 0.0
    %2164 = vmatprep.subr.mxu0 0.0
    %2165 = vmatpush1.msra.mxu0 0.0
    %2166 = vmatprep.subr.mxu0 0.0
    %2167 = vmatpush1.msra.mxu0 0.0
    %2168 = vmatprep.subr.mxu0 0.0
    %2169 = vmatpush1.msra.mxu0 0.0
    %2170 = vmatprep.subr.mxu0 0.0
    %2171 = vmatpush1.msra.mxu0 0.0
    %2172 = vmatprep.subr.mxu0 0.0
    %2173 = vmatpush1.msra.mxu0 0.0
    %2174 = vmatprep.mubr.f32.mxu0 0.0
    %2175 = vmatmul.mubr.f32.gmra.mrb[0].mxu0 %v2108
    %v2176 = vpop.f32.mrb[0].mxu0
    %v2177 = vadd.f32 %v592, %v2176
    %v2178 = vpop.f32.mrb[0].mxu0
    %2179 = vdwg.mxu0
    %v2180 = vadd.f32 %v547, %v2177
    %v2181 = vxor.u32 %v2180, 2147483648
    %v2182 = vmul.f32 %v2181, 1.442695
    %v2183 = vpow.pop %v2182
    %v2184 = vadd.f32 %v2183, 1.0
    %v2185 = vrcp.pop %v2184
    %v2186 = vmul.f32 1.0, %v2185
    %2188 = vrot.lane.b32.xlu0 %v2177, 64
    %v2189 = vpop.permute.xlu0 %2188
    %v2191 = vmul.f32 %v2186, %v2189
    %2193 = vrot.lane.b32.xlu0 %v2191, 64
    %v2194 = vpop.permute.xlu0 %2193
    %v2196 = vadd.f32 %v547, %v2194
    %v2197 = vtanh.pop %v2196
    %v2198 = vsub.f32 1.0, %v2186
    %2200 = vrot.lane.b32.xlu0 %v2197, 96
    %v2201 = vpop.permute.xlu0 %2200
    %v2203 = vmul.f32 %v2198, %v2201
    %v2204 = vmul.f32 %v2186, %v2097
    %v2205 = vadd.f32 %v2203, %v2204
    %2207 = vrot.lane.b32.xlu0 %v2205, 96
    %v2208 = vpop.permute.xlu0 %2207
    %s2210 = scalar_lea.vmem [#allocation12], 8
    %2211 = vst.msk [vmem:[%s2210] sm:$0xff] %vm334, %v2208
    %v2212 = vld [vmem:[%s7] sm:$0xff]
    %v2213 = vld [vmem:[%s7 + $0x8] sm:$0xff]
    %v2214 = vld [vmem:[%s7 + $0x10] sm:$0xff]
    %v2215 = vld [vmem:[%s7 + $0x18] sm:$0xff]
    %v2216 = vsel %vm334, %v2208, 0
    %2218 = vmatprep.subr.mxu0 0.0
    %2219 = vmatpush1.msra.mxu0 %v2212
    %2220 = vmatprep.subr.mxu0 0.0
    %2221 = vmatpush1.msra.mxu0 %v2213
    %2222 = vmatprep.subr.mxu0 0.0
    %2223 = vmatpush1.msra.mxu0 %v2214
    %2224 = vmatprep.subr.mxu0 0.0
    %2225 = vmatpush1.msra.mxu0 %v2215
    %2226 = vmatprep.subr.mxu0 0.0
    %2227 = vmatpush1.msra.mxu0 0.0
    %2228 = vmatprep.subr.mxu0 0.0
    %2229 = vmatpush1.msra.mxu0 0.0
    %2230 = vmatprep.subr.mxu0 0.0
    %2231 = vmatpush1.msra.mxu0 0.0
    %2232 = vmatprep.subr.mxu0 0.0
    %2233 = vmatpush1.msra.mxu0 0.0
    %2234 = vmatprep.subr.mxu0 0.0
    %2235 = vmatpush1.msra.mxu0 0.0
    %2236 = vmatprep.subr.mxu0 0.0
    %2237 = vmatpush1.msra.mxu0 0.0
    %2238 = vmatprep.subr.mxu0 0.0
    %2239 = vmatpush1.msra.mxu0 0.0
    %2240 = vmatprep.subr.mxu0 0.0
    %2241 = vmatpush1.msra.mxu0 0.0
    %2242 = vmatprep.subr.mxu0 0.0
    %2243 = vmatpush1.msra.mxu0 0.0
    %2244 = vmatprep.subr.mxu0 0.0
    %2245 = vmatpush1.msra.mxu0 0.0
    %2246 = vmatprep.subr.mxu0 0.0
    %2247 = vmatpush1.msra.mxu0 0.0
    %2248 = vmatprep.subr.mxu0 0.0
    %2249 = vmatpush1.msra.mxu0 0.0
    %2250 = vmatprep.subr.mxu0 0.0
    %2251 = vmatpush1.msra.mxu0 0.0
    %2252 = vmatprep.subr.mxu0 0.0
    %2253 = vmatpush1.msra.mxu0 0.0
    %2254 = vmatprep.subr.mxu0 0.0
    %2255 = vmatpush1.msra.mxu0 0.0
    %2256 = vmatprep.subr.mxu0 0.0
    %2257 = vmatpush1.msra.mxu0 0.0
    %2258 = vmatprep.subr.mxu0 0.0
    %2259 = vmatpush1.msra.mxu0 0.0
    %2260 = vmatprep.subr.mxu0 0.0
    %2261 = vmatpush1.msra.mxu0 0.0
    %2262 = vmatprep.subr.mxu0 0.0
    %2263 = vmatpush1.msra.mxu0 0.0
    %2264 = vmatprep.subr.mxu0 0.0
    %2265 = vmatpush1.msra.mxu0 0.0
    %2266 = vmatprep.subr.mxu0 0.0
    %2267 = vmatpush1.msra.mxu0 0.0
    %2268 = vmatprep.subr.mxu0 0.0
    %2269 = vmatpush1.msra.mxu0 0.0
    %2270 = vmatprep.subr.mxu0 0.0
    %2271 = vmatpush1.msra.mxu0 0.0
    %2272 = vmatprep.subr.mxu0 0.0
    %2273 = vmatpush1.msra.mxu0 0.0
    %2274 = vmatprep.subr.mxu0 0.0
    %2275 = vmatpush1.msra.mxu0 0.0
    %2276 = vmatprep.subr.mxu0 0.0
    %2277 = vmatpush1.msra.mxu0 0.0
    %2278 = vmatprep.subr.mxu0 0.0
    %2279 = vmatpush1.msra.mxu0 0.0
    %2280 = vmatprep.subr.mxu0 0.0
    %2281 = vmatpush1.msra.mxu0 0.0
    %2282 = vmatprep.mubr.f32.mxu0 0.0
    %2283 = vmatmul.mubr.f32.gmra.mrb[0].mxu0 %v2216
    %v2284 = vpop.f32.mrb[0].mxu0
    %v2285 = vadd.f32 %v592, %v2284
    %v2286 = vpop.f32.mrb[0].mxu0
    %2287 = vdwg.mxu0
    %v2288 = vadd.f32 %v542, %v2285
    %v2289 = vxor.u32 %v2288, 2147483648
    %v2290 = vmul.f32 %v2289, 1.442695
    %v2291 = vpow.pop %v2290
    %v2292 = vadd.f32 %v2291, 1.0
    %v2293 = vrcp.pop %v2292
    %v2294 = vmul.f32 1.0, %v2293
    %2296 = vrot.lane.b32.xlu0 %v2285, 64
    %v2297 = vpop.permute.xlu0 %2296
    %v2299 = vmul.f32 %v2294, %v2297
    %2301 = vrot.lane.b32.xlu0 %v2299, 64
    %v2302 = vpop.permute.xlu0 %2301
    %v2304 = vadd.f32 %v542, %v2302
    %v2305 = vtanh.pop %v2304
    %v2306 = vsub.f32 1.0, %v2294
    %2308 = vrot.lane.b32.xlu0 %v2305, 96
    %v2309 = vpop.permute.xlu0 %2308
    %v2311 = vmul.f32 %v2306, %v2309
    %v2312 = vmul.f32 %v2294, %v2205
    %v2313 = vadd.f32 %v2311, %v2312
    %2315 = vrot.lane.b32.xlu0 %v2313, 96
    %v2316 = vpop.permute.xlu0 %2315
    %2318 = vst.msk [vmem:[#allocation12] sm:$0xff] %vm334, %v2316
    %v2319 = vld [vmem:[%s10] sm:$0xff]
    %v2320 = vld [vmem:[%s10 + $0x8] sm:$0xff]
    %v2321 = vld [vmem:[%s10 + $0x10] sm:$0xff]
    %v2322 = vld [vmem:[%s10 + $0x18] sm:$0xff]
    %v2323 = vld [vmem:[%s11] sm:$0xff]
    %v2324 = vld [vmem:[%s11 + $0x8] sm:$0xff]
    %v2325 = vld [vmem:[%s11 + $0x10] sm:$0xff]
    %v2326 = vld [vmem:[%s11 + $0x18] sm:$0xff]
    %v2327 = vsel %vm334, %v2316, 0
    %2329 = vmatprep.subr.mxu0 0.0
    %2330 = vmatpush1.msra.mxu0 %v2323
    %2331 = vmatprep.subr.mxu0 0.0
    %2332 = vmatpush1.msra.mxu0 %v2324
    %2333 = vmatprep.subr.mxu0 0.0
    %2334 = vmatpush1.msra.mxu0 %v2325
    %2335 = vmatprep.subr.mxu0 0.0
    %2336 = vmatpush1.msra.mxu0 %v2326
    %2337 = vmatprep.subr.mxu0 0.0
    %2338 = vmatpush1.msra.mxu0 0.0
    %2339 = vmatprep.subr.mxu0 0.0
    %2340 = vmatpush1.msra.mxu0 0.0
    %2341 = vmatprep.subr.mxu0 0.0
    %2342 = vmatpush1.msra.mxu0 0.0
    %2343 = vmatprep.subr.mxu0 0.0
    %2344 = vmatpush1.msra.mxu0 0.0
    %2345 = vmatprep.subr.mxu0 0.0
    %2346 = vmatpush1.msra.mxu0 0.0
    %2347 = vmatprep.subr.mxu0 0.0
    %2348 = vmatpush1.msra.mxu0 0.0
    %2349 = vmatprep.subr.mxu0 0.0
    %2350 = vmatpush1.msra.mxu0 0.0
    %2351 = vmatprep.subr.mxu0 0.0
    %2352 = vmatpush1.msra.mxu0 0.0
    %2353 = vmatprep.subr.mxu0 0.0
    %2354 = vmatpush1.msra.mxu0 0.0
    %2355 = vmatprep.subr.mxu0 0.0
    %2356 = vmatpush1.msra.mxu0 0.0
    %2357 = vmatprep.subr.mxu0 0.0
    %2358 = vmatpush1.msra.mxu0 0.0
    %2359 = vmatprep.subr.mxu0 0.0
    %2360 = vmatpush1.msra.mxu0 0.0
    %2361 = vmatprep.subr.mxu0 0.0
    %2362 = vmatpush1.msra.mxu0 0.0
    %2363 = vmatprep.subr.mxu0 0.0
    %2364 = vmatpush1.msra.mxu0 0.0
    %2365 = vmatprep.subr.mxu0 0.0
    %2366 = vmatpush1.msra.mxu0 0.0
    %2367 = vmatprep.subr.mxu0 0.0
    %2368 = vmatpush1.msra.mxu0 0.0
    %2369 = vmatprep.subr.mxu0 0.0
    %2370 = vmatpush1.msra.mxu0 0.0
    %2371 = vmatprep.subr.mxu0 0.0
    %2372 = vmatpush1.msra.mxu0 0.0
    %2373 = vmatprep.subr.mxu0 0.0
    %2374 = vmatpush1.msra.mxu0 0.0
    %2375 = vmatprep.subr.mxu0 0.0
    %2376 = vmatpush1.msra.mxu0 0.0
    %2377 = vmatprep.subr.mxu0 0.0
    %2378 = vmatpush1.msra.mxu0 0.0
    %2379 = vmatprep.subr.mxu0 0.0
    %2380 = vmatpush1.msra.mxu0 0.0
    %2381 = vmatprep.subr.mxu0 0.0
    %2382 = vmatpush1.msra.mxu0 0.0
    %2383 = vmatprep.subr.mxu0 0.0
    %2384 = vmatpush1.msra.mxu0 0.0
    %2385 = vmatprep.subr.mxu0 0.0
    %2386 = vmatpush1.msra.mxu0 0.0
    %2387 = vmatprep.subr.mxu0 0.0
    %2388 = vmatpush1.msra.mxu0 0.0
    %2389 = vmatprep.subr.mxu0 0.0
    %2390 = vmatpush1.msra.mxu0 0.0
    %2391 = vmatprep.subr.mxu0 0.0
    %2392 = vmatpush1.msra.mxu0 0.0
    %2393 = vmatprep.mubr.f32.mxu0 0.0
    %2394 = vmatmul.mubr.f32.gmra.mrb[0].mxu0 %v2327
    %v2395 = vpop.f32.mrb[0].mxu0
    %v2396 = vadd.f32 0.0, %v2395
    %v2397 = vpop.f32.mrb[0].mxu0
    %2398 = vdwg.mxu0
    %v2399 = vsel %vm334, %v1454, 0
    %2401 = vmatprep.subr.mxu0 0.0
    %2402 = vmatpush1.msra.mxu0 %v2319
    %2403 = vmatprep.subr.mxu0 0.0
    %2404 = vmatpush1.msra.mxu0 %v2320
    %2405 = vmatprep.subr.mxu0 0.0
    %2406 = vmatpush1.msra.mxu0 %v2321
    %2407 = vmatprep.subr.mxu0 0.0
    %2408 = vmatpush1.msra.mxu0 %v2322
    %2409 = vmatprep.subr.mxu0 0.0
    %2410 = vmatpush1.msra.mxu0 0.0
    %2411 = vmatprep.subr.mxu0 0.0
    %2412 = vmatpush1.msra.mxu0 0.0
    %2413 = vmatprep.subr.mxu0 0.0
    %2414 = vmatpush1.msra.mxu0 0.0
    %2415 = vmatprep.subr.mxu0 0.0
    %2416 = vmatpush1.msra.mxu0 0.0
    %2417 = vmatprep.subr.mxu0 0.0
    %2418 = vmatpush1.msra.mxu0 0.0
    %2419 = vmatprep.subr.mxu0 0.0
    %2420 = vmatpush1.msra.mxu0 0.0
    %2421 = vmatprep.subr.mxu0 0.0
    %2422 = vmatpush1.msra.mxu0 0.0
    %2423 = vmatprep.subr.mxu0 0.0
    %2424 = vmatpush1.msra.mxu0 0.0
    %2425 = vmatprep.subr.mxu0 0.0
    %2426 = vmatpush1.msra.mxu0 0.0
    %2427 = vmatprep.subr.mxu0 0.0
    %2428 = vmatpush1.msra.mxu0 0.0
    %2429 = vmatprep.subr.mxu0 0.0
    %2430 = vmatpush1.msra.mxu0 0.0
    %2431 = vmatprep.subr.mxu0 0.0
    %2432 = vmatpush1.msra.mxu0 0.0
    %2433 = vmatprep.subr.mxu0 0.0
    %2434 = vmatpush1.msra.mxu0 0.0
    %2435 = vmatprep.subr.mxu0 0.0
    %2436 = vmatpush1.msra.mxu0 0.0
    %2437 = vmatprep.subr.mxu0 0.0
    %2438 = vmatpush1.msra.mxu0 0.0
    %2439 = vmatprep.subr.mxu0 0.0
    %2440 = vmatpush1.msra.mxu0 0.0
    %2441 = vmatprep.subr.mxu0 0.0
    %2442 = vmatpush1.msra.mxu0 0.0
    %2443 = vmatprep.subr.mxu0 0.0
    %2444 = vmatpush1.msra.mxu0 0.0
    %2445 = vmatprep.subr.mxu0 0.0
    %2446 = vmatpush1.msra.mxu0 0.0
    %2447 = vmatprep.subr.mxu0 0.0
    %2448 = vmatpush1.msra.mxu0 0.0
    %2449 = vmatprep.subr.mxu0 0.0
    %2450 = vmatpush1.msra.mxu0 0.0
    %2451 = vmatprep.subr.mxu0 0.0
    %2452 = vmatpush1.msra.mxu0 0.0
    %2453 = vmatprep.subr.mxu0 0.0
    %2454 = vmatpush1.msra.mxu0 0.0
    %2455 = vmatprep.subr.mxu0 0.0
    %2456 = vmatpush1.msra.mxu0 0.0
    %2457 = vmatprep.subr.mxu0 0.0
    %2458 = vmatpush1.msra.mxu0 0.0
    %2459 = vmatprep.subr.mxu0 0.0
    %2460 = vmatpush1.msra.mxu0 0.0
    %2461 = vmatprep.subr.mxu0 0.0
    %2462 = vmatpush1.msra.mxu0 0.0
    %2463 = vmatprep.subr.mxu0 0.0
    %2464 = vmatpush1.msra.mxu0 0.0
    %2465 = vmatprep.mubr.f32.mxu0 0.0
    %2466 = vmatmul.mubr.f32.gmra.mrb[0].mxu0 %v2399
    %v2467 = vpop.f32.mrb[0].mxu0
    %v2468 = vadd.f32 %v2396, %v2467
    %v2469 = vpop.f32.mrb[0].mxu0
    %2470 = vdwg.mxu0
    %v2471 = vld [vmem:[%s12] sm:$0x1]
    %v2473 = vlaneseq
    %v2474 = vshrl.u32 %v2473, 7
    %v2475 = vsub.s32 0, %v2474
    %v2476 = vrot.slane %v2471, %v2475
    %v2478 = vadd.f32 %v2468, %v2476
    %v2479 = vtanh.pop %v2478
    %2480 = vst.msk [vmem:[#allocation15] sm:$0xff] %vm334, %v2479
    %v2481 = vld [vmem:[#allocation11] sm:$0xff]
    %v2482 = vld [vmem:[#allocation11 + $0x8] sm:$0xff]
    %v2483 = vld [vmem:[#allocation11 + $0x10] sm:$0xff]
    %v2484 = vld [vmem:[#allocation11 + $0x18] sm:$0xff]
    %v2485 = vld [vmem:[#allocation11 + $0x20] sm:$0xff]
    %v2486 = vld [vmem:[#allocation11 + $0x28] sm:$0xff]
    %v2487 = vld [vmem:[#allocation11 + $0x30] sm:$0xff]
    %v2488 = vld [vmem:[#allocation11 + $0x38] sm:$0xff]
    %v2489 = vld [vmem:[#allocation12] sm:$0xff]
    %v2490 = vld [vmem:[#allocation12 + $0x8] sm:$0xff]
    %v2491 = vld [vmem:[#allocation12 + $0x10] sm:$0xff]
    %v2492 = vld [vmem:[#allocation12 + $0x18] sm:$0xff]
    %v2493 = vld [vmem:[#allocation12 + $0x20] sm:$0xff]
    %v2494 = vld [vmem:[#allocation12 + $0x28] sm:$0xff]
    %v2495 = vld [vmem:[#allocation12 + $0x30] sm:$0xff]
    %v2496 = vld [vmem:[#allocation12 + $0x38] sm:$0xff]
    %v2497 = vld [vmem:[#allocation8] sm:$0xff]
    %v2498 = vld [vmem:[#allocation8 + $0x8] sm:$0xff]
    %v2499 = vld [vmem:[#allocation8 + $0x10] sm:$0xff]
    %v2500 = vld [vmem:[#allocation8 + $0x18] sm:$0xff]
    %v2501 = vld [vmem:[#allocation10] sm:$0xff]
    %v2502 = vld [vmem:[#allocation10 + $0x8] sm:$0xff]
    %v2503 = vld [vmem:[#allocation10 + $0x10] sm:$0xff]
    %v2504 = vld [vmem:[#allocation10 + $0x18] sm:$0xff]
    %v2506 = vsel %vm334, %v2489, 0
    %v2509 = vsel %vm334, %v2490, 0
    %v2512 = vsel %vm334, %v2491, 0
    %v2515 = vsel %vm334, %v2492, 0
    %v2518 = vsel %vm334, %v2493, 0
    %v2521 = vsel %vm334, %v2494, 0
    %v2524 = vsel %vm334, %v2495, 0
    %v2527 = vsel %vm334, %v2496, 0
    %2529 = vmatprep.subr.mxu0 0.0
    %2530 = vmatpush1.msra.mxu0 %v2501
    %2531 = vmatprep.subr.mxu0 0.0
    %2532 = vmatpush1.msra.mxu0 %v2502
    %2533 = vmatprep.subr.mxu0 0.0
    %2534 = vmatpush1.msra.mxu0 %v2503
    %2535 = vmatprep.subr.mxu0 0.0
    %2536 = vmatpush1.msra.mxu0 %v2504
    %2537 = vmatprep.subr.mxu0 0.0
    %2538 = vmatpush1.msra.mxu0 0.0
    %2539 = vmatprep.subr.mxu0 0.0
    %2540 = vmatpush1.msra.mxu0 0.0
    %2541 = vmatprep.subr.mxu0 0.0
    %2542 = vmatpush1.msra.mxu0 0.0
    %2543 = vmatprep.subr.mxu0 0.0
    %2544 = vmatpush1.msra.mxu0 0.0
    %2545 = vmatprep.subr.mxu0 0.0
    %2546 = vmatpush1.msra.mxu0 0.0
    %2547 = vmatprep.subr.mxu0 0.0
    %2548 = vmatpush1.msra.mxu0 0.0
    %2549 = vmatprep.subr.mxu0 0.0
    %2550 = vmatpush1.msra.mxu0 0.0
    %2551 = vmatprep.subr.mxu0 0.0
    %2552 = vmatpush1.msra.mxu0 0.0
    %2553 = vmatprep.subr.mxu0 0.0
    %2554 = vmatpush1.msra.mxu0 0.0
    %2555 = vmatprep.subr.mxu0 0.0
    %2556 = vmatpush1.msra.mxu0 0.0
    %2557 = vmatprep.subr.mxu0 0.0
    %2558 = vmatpush1.msra.mxu0 0.0
    %2559 = vmatprep.subr.mxu0 0.0
    %2560 = vmatpush1.msra.mxu0 0.0
    %2561 = vmatprep.subr.mxu0 0.0
    %2562 = vmatpush1.msra.mxu0 0.0
    %2563 = vmatprep.subr.mxu0 0.0
    %2564 = vmatpush1.msra.mxu0 0.0
    %2565 = vmatprep.subr.mxu0 0.0
    %2566 = vmatpush1.msra.mxu0 0.0
    %2567 = vmatprep.subr.mxu0 0.0
    %2568 = vmatpush1.msra.mxu0 0.0
    %2569 = vmatprep.subr.mxu0 0.0
    %2570 = vmatpush1.msra.mxu0 0.0
    %2571 = vmatprep.subr.mxu0 0.0
    %2572 = vmatpush1.msra.mxu0 0.0
    %2573 = vmatprep.subr.mxu0 0.0
    %2574 = vmatpush1.msra.mxu0 0.0
    %2575 = vmatprep.subr.mxu0 0.0
    %2576 = vmatpush1.msra.mxu0 0.0
    %2577 = vmatprep.subr.mxu0 0.0
    %2578 = vmatpush1.msra.mxu0 0.0
    %2579 = vmatprep.subr.mxu0 0.0
    %2580 = vmatpush1.msra.mxu0 0.0
    %2581 = vmatprep.subr.mxu0 0.0
    %2582 = vmatpush1.msra.mxu0 0.0
    %2583 = vmatprep.subr.mxu0 0.0
    %2584 = vmatpush1.msra.mxu0 0.0
    %2585 = vmatprep.subr.mxu0 0.0
    %2586 = vmatpush1.msra.mxu0 0.0
    %2587 = vmatprep.subr.mxu0 0.0
    %2588 = vmatpush1.msra.mxu0 0.0
    %2589 = vmatprep.subr.mxu0 0.0
    %2590 = vmatpush1.msra.mxu0 0.0
    %2591 = vmatprep.subr.mxu0 0.0
    %2592 = vmatpush1.msra.mxu0 0.0
    %2593 = vmatprep.mubr.f32.mxu0 0.0
    %2594 = vmatmul.mubr.f32.gmra.mrb[0].mxu0 %v2506
    %v2595 = vpop.f32.mrb[0].mxu0
    %v2596 = vadd.f32 0.0, %v2595
    %v2597 = vpop.f32.mrb[0].mxu0
    %2598 = vmatprep.mubr.f32.mxu0 0.0
    %2599 = vmatmul.mubr.f32.gmra.mrb[0].mxu0 %v2509
    %v2600 = vpop.f32.mrb[0].mxu0
    %v2601 = vadd.f32 0.0, %v2600
    %v2602 = vpop.f32.mrb[0].mxu0
    %2603 = vmatprep.mubr.f32.mxu0 0.0
    %2604 = vmatmul.mubr.f32.gmra.mrb[0].mxu0 %v2512
    %v2605 = vpop.f32.mrb[0].mxu0
    %v2606 = vadd.f32 0.0, %v2605
    %v2607 = vpop.f32.mrb[0].mxu0
    %2608 = vmatprep.mubr.f32.mxu0 0.0
    %2609 = vmatmul.mubr.f32.gmra.mrb[0].mxu0 %v2515
    %v2610 = vpop.f32.mrb[0].mxu0
    %v2611 = vadd.f32 0.0, %v2610
    %v2612 = vpop.f32.mrb[0].mxu0
    %2613 = vmatprep.mubr.f32.mxu0 0.0
    %2614 = vmatmul.mubr.f32.gmra.mrb[0].mxu0 %v2518
    %v2615 = vpop.f32.mrb[0].mxu0
    %v2616 = vadd.f32 0.0, %v2615
    %v2617 = vpop.f32.mrb[0].mxu0
    %2618 = vmatprep.mubr.f32.mxu0 0.0
    %2619 = vmatmul.mubr.f32.gmra.mrb[0].mxu0 %v2521
    %v2620 = vpop.f32.mrb[0].mxu0
    %v2621 = vadd.f32 0.0, %v2620
    %v2622 = vpop.f32.mrb[0].mxu0
    %2623 = vmatprep.mubr.f32.mxu0 0.0
    %2624 = vmatmul.mubr.f32.gmra.mrb[0].mxu0 %v2524
    %v2625 = vpop.f32.mrb[0].mxu0
    %v2626 = vadd.f32 0.0, %v2625
    %v2627 = vpop.f32.mrb[0].mxu0
    %2628 = vmatprep.mubr.f32.mxu0 0.0
    %2629 = vmatmul.mubr.f32.gmra.mrb[0].mxu0 %v2527
    %v2630 = vpop.f32.mrb[0].mxu0
    %v2631 = vadd.f32 0.0, %v2630
    %v2632 = vpop.f32.mrb[0].mxu0
    %2633 = vdwg.mxu0
    %v2635 = vsel %vm334, %v2481, 0
    %v2638 = vsel %vm334, %v2482, 0
    %v2641 = vsel %vm334, %v2483, 0
    %v2644 = vsel %vm334, %v2484, 0
    %v2647 = vsel %vm334, %v2485, 0
    %v2650 = vsel %vm334, %v2486, 0
    %v2653 = vsel %vm334, %v2487, 0
    %v2656 = vsel %vm334, %v2488, 0
    %2658 = vmatprep.subr.mxu0 0.0
    %2659 = vmatpush1.msra.mxu0 %v2497
    %2660 = vmatprep.subr.mxu0 0.0
    %2661 = vmatpush1.msra.mxu0 %v2498
    %2662 = vmatprep.subr.mxu0 0.0
    %2663 = vmatpush1.msra.mxu0 %v2499
    %2664 = vmatprep.subr.mxu0 0.0
    %2665 = vmatpush1.msra.mxu0 %v2500
    %2666 = vmatprep.subr.mxu0 0.0
    %2667 = vmatpush1.msra.mxu0 0.0
    %2668 = vmatprep.subr.mxu0 0.0
    %2669 = vmatpush1.msra.mxu0 0.0
    %2670 = vmatprep.subr.mxu0 0.0
    %2671 = vmatpush1.msra.mxu0 0.0
    %2672 = vmatprep.subr.mxu0 0.0
    %2673 = vmatpush1.msra.mxu0 0.0
    %2674 = vmatprep.subr.mxu0 0.0
    %2675 = vmatpush1.msra.mxu0 0.0
    %2676 = vmatprep.subr.mxu0 0.0
    %2677 = vmatpush1.msra.mxu0 0.0
    %2678 = vmatprep.subr.mxu0 0.0
    %2679 = vmatpush1.msra.mxu0 0.0
    %2680 = vmatprep.subr.mxu0 0.0
    %2681 = vmatpush1.msra.mxu0 0.0
    %2682 = vmatprep.subr.mxu0 0.0
    %2683 = vmatpush1.msra.mxu0 0.0
    %2684 = vmatprep.subr.mxu0 0.0
    %2685 = vmatpush1.msra.mxu0 0.0
    %2686 = vmatprep.subr.mxu0 0.0
    %2687 = vmatpush1.msra.mxu0 0.0
    %2688 = vmatprep.subr.mxu0 0.0
    %2689 = vmatpush1.msra.mxu0 0.0
    %2690 = vmatprep.subr.mxu0 0.0
    %2691 = vmatpush1.msra.mxu0 0.0
    %2692 = vmatprep.subr.mxu0 0.0
    %2693 = vmatpush1.msra.mxu0 0.0
    %2694 = vmatprep.subr.mxu0 0.0
    %2695 = vmatpush1.msra.mxu0 0.0
    %2696 = vmatprep.subr.mxu0 0.0
    %2697 = vmatpush1.msra.mxu0 0.0
    %2698 = vmatprep.subr.mxu0 0.0
    %2699 = vmatpush1.msra.mxu0 0.0
    %2700 = vmatprep.subr.mxu0 0.0
    %2701 = vmatpush1.msra.mxu0 0.0
    %2702 = vmatprep.subr.mxu0 0.0
    %2703 = vmatpush1.msra.mxu0 0.0
    %2704 = vmatprep.subr.mxu0 0.0
    %2705 = vmatpush1.msra.mxu0 0.0
    %2706 = vmatprep.subr.mxu0 0.0
    %2707 = vmatpush1.msra.mxu0 0.0
    %2708 = vmatprep.subr.mxu0 0.0
    %2709 = vmatpush1.msra.mxu0 0.0
    %2710 = vmatprep.subr.mxu0 0.0
    %2711 = vmatpush1.msra.mxu0 0.0
    %2712 = vmatprep.subr.mxu0 0.0
    %2713 = vmatpush1.msra.mxu0 0.0
    %2714 = vmatprep.subr.mxu0 0.0
    %2715 = vmatpush1.msra.mxu0 0.0
    %2716 = vmatprep.subr.mxu0 0.0
    %2717 = vmatpush1.msra.mxu0 0.0
    %2718 = vmatprep.subr.mxu0 0.0
    %2719 = vmatpush1.msra.mxu0 0.0
    %2720 = vmatprep.subr.mxu0 0.0
    %2721 = vmatpush1.msra.mxu0 0.0
    %2722 = vmatprep.mubr.f32.mxu0 0.0
    %2723 = vmatmul.mubr.f32.gmra.mrb[0].mxu0 %v2635
    %v2724 = vpop.f32.mrb[0].mxu0
    %v2725 = vadd.f32 %v2596, %v2724
    %v2726 = vpop.f32.mrb[0].mxu0
    %2727 = vmatprep.mubr.f32.mxu0 0.0
    %2728 = vmatmul.mubr.f32.gmra.mrb[0].mxu0 %v2638
    %v2729 = vpop.f32.mrb[0].mxu0
    %v2730 = vadd.f32 %v2601, %v2729
    %v2731 = vpop.f32.mrb[0].mxu0
    %2732 = vmatprep.mubr.f32.mxu0 0.0
    %2733 = vmatmul.mubr.f32.gmra.mrb[0].mxu0 %v2641
    %v2734 = vpop.f32.mrb[0].mxu0
    %v2735 = vadd.f32 %v2606, %v2734
    %v2736 = vpop.f32.mrb[0].mxu0
    %2737 = vmatprep.mubr.f32.mxu0 0.0
    %2738 = vmatmul.mubr.f32.gmra.mrb[0].mxu0 %v2644
    %v2739 = vpop.f32.mrb[0].mxu0
    %v2740 = vadd.f32 %v2611, %v2739
    %v2741 = vpop.f32.mrb[0].mxu0
    %2742 = vmatprep.mubr.f32.mxu0 0.0
    %2743 = vmatmul.mubr.f32.gmra.mrb[0].mxu0 %v2647
    %v2744 = vpop.f32.mrb[0].mxu0
    %v2745 = vadd.f32 %v2616, %v2744
    %v2746 = vpop.f32.mrb[0].mxu0
    %2747 = vmatprep.mubr.f32.mxu0 0.0
    %2748 = vmatmul.mubr.f32.gmra.mrb[0].mxu0 %v2650
    %v2749 = vpop.f32.mrb[0].mxu0
    %v2750 = vadd.f32 %v2621, %v2749
    %v2751 = vpop.f32.mrb[0].mxu0
    %2752 = vmatprep.mubr.f32.mxu0 0.0
    %2753 = vmatmul.mubr.f32.gmra.mrb[0].mxu0 %v2653
    %v2754 = vpop.f32.mrb[0].mxu0
    %v2755 = vadd.f32 %v2626, %v2754
    %v2756 = vpop.f32.mrb[0].mxu0
    %2757 = vmatprep.mubr.f32.mxu0 0.0
    %2758 = vmatmul.mubr.f32.gmra.mrb[0].mxu0 %v2656
    %v2759 = vpop.f32.mrb[0].mxu0
    %v2760 = vadd.f32 %v2631, %v2759
    %v2761 = vpop.f32.mrb[0].mxu0
    %2762 = vdwg.mxu0
    %2763 = vst.msk [vmem:[#allocation14] sm:$0xff] %vm334, %v2725
    %2764 = vst.msk [vmem:[#allocation14 + $0x8] sm:$0xff] %vm334, %v2730
    %2765 = vst.msk [vmem:[#allocation14 + $0x10] sm:$0xff] %vm334, %v2735
    %2766 = vst.msk [vmem:[#allocation14 + $0x18] sm:$0xff] %vm334, %v2740
    %2767 = vst.msk [vmem:[#allocation14 + $0x20] sm:$0xff] %vm334, %v2745
    %2768 = vst.msk [vmem:[#allocation14 + $0x28] sm:$0xff] %vm334, %v2750
    %2769 = vst.msk [vmem:[#allocation14 + $0x30] sm:$0xff] %vm334, %v2755
    %2770 = vst.msk [vmem:[#allocation14 + $0x38] sm:$0xff] %vm334, %v2760
    // Predicated region
    $region82: #{tpu_custom_call.1} parent=1 // pred_check
      _
    $region83: #{tpu_custom_call.1} parent=1 // pred_check_branch
      %2772 = sbr.rel (0) target = $region85
    $region84: #{tpu_custom_call.1} parent=1 // pred_region
      %s2774 = ssub.s32 1024, 1024
      %2775 = vsyncadd [#allocation4], %s2774
      %s2776 = sshll.u32 [#allocation11], 4
      %s2777 = int_to_ptr.vmem [resolvable:$true] %s2776
      %2782 = dma.vmem_to_hbm [thread:$0]  %s2777, 1024, %s15, [#allocation4], 128, 128, 8
    $region85: #{tpu_custom_call.1} parent=1 // pred_fallthru
      _
    // Predicated region
    $region86: #{tpu_custom_call.1} parent=1 // pred_check
      _
    $region87: #{tpu_custom_call.1} parent=1 // pred_check_branch
      %2784 = sbr.rel (0) target = $region89
    $region88: #{tpu_custom_call.1} parent=1 // pred_region
      %s2786 = ssub.s32 1024, 1024
      %2787 = vsyncadd [#allocation13], %s2786
      %s2788 = sshll.u32 [#allocation12], 4
      %s2789 = int_to_ptr.vmem [resolvable:$true] %s2788
      %2794 = dma.vmem_to_hbm [thread:$0]  %s2789, 1024, %s16, [#allocation13], 128, 128, 8
    $region89: #{tpu_custom_call.1} parent=1 // pred_fallthru
      _
    // Predicated region
    $region90: #{tpu_custom_call.1} parent=1 // pred_check
      _
    $region91: #{tpu_custom_call.1} parent=1 // pred_check_branch
      %2796 = sbr.rel (0) target = $region93
    $region92: #{tpu_custom_call.1} parent=1 // pred_region
      %s2798 = ssub.s32 1024, 1024
      %2799 = vsyncadd [#allocation13], %s2798
      %s2800 = sshll.u32 [#allocation14], 4
      %s2801 = int_to_ptr.vmem [resolvable:$true] %s2800
      %2806 = dma.vmem_to_hbm [thread:$0]  %s2801, 1024, %s17, [#allocation13], 128, 128, 8
    $region93: #{tpu_custom_call.1} parent=1 // pred_fallthru
      _
    // Predicated region
    $region94: #{tpu_custom_call.1} parent=1 // pred_check
      _
    $region95: #{tpu_custom_call.1} parent=1 // pred_check_branch
      %2808 = sbr.rel (0) target = $region97
    $region96: #{tpu_custom_call.1} parent=1 // pred_region
      %s2810 = ssub.s32 128, 128
      %2811 = vsyncadd [#allocation16], %s2810
      %s2813 = sshll.u32 [#allocation15], 4
      %s2814 = int_to_ptr.vmem [resolvable:$true] %s2813
      %2816 = dma.vmem_to_hbm [thread:$0]  %s2814, 128, %s18, [#allocation16]
    $region97: #{tpu_custom_call.1} parent=1 // pred_fallthru
      _
    // Predicated region
    $region98: #{tpu_custom_call.1} parent=1 // pred_check
      _
    $region99: #{tpu_custom_call.1} parent=1 // pred_check_branch
      %2818 = sbr.rel (0) target = $region101
    $region100: #{tpu_custom_call.1} parent=1 // pred_region
      %2819 = dma.done [#allocation4], 1024
    $region101: #{tpu_custom_call.1} parent=1 // pred_fallthru
      _
    // Predicated region
    $region102: #{tpu_custom_call.1} parent=1 // pred_check
      _
    $region103: #{tpu_custom_call.1} parent=1 // pred_check_branch
      %2821 = sbr.rel (0) target = $region105
    $region104: #{tpu_custom_call.1} parent=1 // pred_region
      %2822 = dma.done [#allocation13], 1024
    $region105: #{tpu_custom_call.1} parent=1 // pred_fallthru
      _
    // Predicated region
    $region106: #{tpu_custom_call.1} parent=1 // pred_check
      _
    $region107: #{tpu_custom_call.1} parent=1 // pred_check_branch
      %2824 = sbr.rel (0) target = $region109
    $region108: #{tpu_custom_call.1} parent=1 // pred_region
      %2825 = dma.done [#allocation13], 1024
    $region109: #{tpu_custom_call.1} parent=1 // pred_fallthru
      _
    // Predicated region
    $region110: #{tpu_custom_call.1} parent=1 // pred_check
      _
    $region111: #{tpu_custom_call.1} parent=1 // pred_check_branch
      %2827 = sbr.rel (0) target = $region113
    $region112: #{tpu_custom_call.1} parent=1 // pred_region
      %2828 = dma.done [#allocation16], 128
    $region113: #{tpu_custom_call.1} parent=1 // pred_fallthru
      _
    %2829 = vsyncpa [#allocation3], 1
    %2830 = vsyncpa [#allocation6], 1
    %2831 = vsyncpa [#allocation9], 1
    %2832 = vsyncpa [#allocation4], 1
    %2833 = vsyncpa [#allocation13], 1
    %2834 = vsyncpa [#allocation16], 1

</llo_original>
